<compile_context>
chip_gen: v6e
topology: v6e:2x2x1
jax: 0.10.0
libtpu: 0.0.40
codegen_flags: <defaults>
</compile_context>

<pallas_src>
import jax
import jax.numpy as jnp
from jax.experimental import pallas as pl
from jax.experimental.pallas import tpu as pltpu  # noqa: F401  (TPU backend assumed)

DIM = 768                    # hidden dim fixed by the module (dim=768)
HID = 512                    # MLP hidden fixed by _build_mlp
NUM_LABELS = 2
PAD_NL = 128                 # logits lane-padded to 128 -> unmasked stores
FUSED_N = HID + PAD_NL       # 640: [ w_mlp1 (512) | w_fc_half (2) | zero pad (126) ]


# ----------------------------- Pallas kernel --------------------------------

def fused_head_kernel(x_ref, w1_ref, b1_ref, w2_ref, b2_ref, o_ref):
    """Single invocation; both branches unrolled.

    branch 0: x = text embedding  -> text_fused path  (fc first half + fc_text)
    branch 1: x = image embedding -> imag_fused path  (fc second half + fc_image)

    Per branch, one fused first-layer matmul [D, 640] produces both the MLP
    hidden (lanes 0:512) and this branch's image_text partial logits
    (lanes 512:640, lane-padded), then one [512, 128] matmul gives the padded
    MLP head logits.  All stores are 128-lane aligned.
    """
    for br in range(2):                                             # static unroll (2)
        x = x_ref[br]                                               # [B, D]   bf16
        y = jnp.dot(x, w1_ref[br],
                    preferred_element_type=jnp.float32) + b1_ref[br]  # [B, 640] f32
        h = jnp.maximum(y[:, :HID], 0.0)                            # [B, 512] f32
        it = y[:, HID:]                                             # [B, 128] f32
        head = jnp.dot(h.astype(jnp.bfloat16), w2_ref[br],
                       preferred_element_type=jnp.float32) + b2_ref[br]  # [B, 128] f32
        o_ref[br, :, :PAD_NL] = it
        o_ref[br, :, PAD_NL:] = head


def pipnet_fusion_head(text_emb, img_emb, fused):
    """Runs the folded fusion / classification hot path in one Pallas call."""
    B = text_emb.shape[0]
    x = jnp.stack([text_emb, img_emb], axis=0).astype(jnp.bfloat16)  # [2, B, D]

    flops = 2 * 2 * B * DIM * FUSED_N + 2 * 2 * B * HID * PAD_NL
    bytes_accessed = (2 * B * DIM * 2             # x        bf16
                      + 2 * DIM * FUSED_N * 2     # w1       bf16
                      + 2 * 1 * FUSED_N * 4       # b1       f32
                      + 2 * HID * PAD_NL * 2      # w2       bf16
                      + 2 * 1 * PAD_NL * 4        # b2       f32
                      + 2 * B * 2 * PAD_NL * 4)   # out      f32

    # No grid: whole arrays (~2.3 MB total) live in VMEM for one invocation.
    out = pl.pallas_call(
        fused_head_kernel,
        out_shape=jax.ShapeDtypeStruct((2, B, 2 * PAD_NL), jnp.float32),
        cost_estimate=pl.CostEstimate(flops=flops, transcendentals=0,
                                      bytes_accessed=bytes_accessed),
    )(x, fused["w1"], fused["b1"], fused["w2"], fused["b2"])

    # out[br, :, :128]   = this branch's partial image_text logits (padded)
    # out[br, :, 128:]   = this branch's MLP-head logits            (padded)
    return {
        "image_text": out[0, :, :NUM_LABELS] + out[1, :, :NUM_LABELS],
        "text": out[0, :, PAD_NL:PAD_NL + NUM_LABELS],
        "image": out[1, :, PAD_NL:PAD_NL + NUM_LABELS],
    }


# ----------------------- host-side parameter folding -------------------------

def prepare_fused_params(p):
    """Fold the (exact) seq_len==1 attention algebra into the heads and fuse.

    text_fused = te @ (wv_t@wo_t) + (bv_t@wo_t + bo_t)   (softmax over 1 key == 1)
    imag_fused = ie @ (wv_i@wo_i) + (bv_i@wo_i + bo_i)
    Nothing nonlinear sits in between, so those matrices fold into
    fc / fc_text / fc_image.  The per-branch first-layer matmuls (MLP-1 and the
    fc half) are then concatenated into one [D, 640] matrix; logits lanes are
    padded to 128.  Folding done once in f32; matrices stored bf16, biases f32.
    """
    def fold_branch(wv, bv, wo, bo, fc_w_half, fc_b_part, w1, b1, w2, b2):
        W = wv @ wo                              # [D, D]
        bF = bv @ wo + bo                        # [1, D]
        w_h = W @ w1                             # [D, HID]
        b_h = bF @ w1 + b1                       # [1, HID]
        w_it = W @ fc_w_half                     # [D, NL]
        b_it = bF @ fc_w_half + fc_b_part        # [1, NL]
        pad_w = jnp.zeros((DIM, PAD_NL - NUM_LABELS), jnp.float32)
        pad_b = jnp.zeros((1, PAD_NL - NUM_LABELS), jnp.float32)
        w1f = jnp.concatenate([w_h, w_it, pad_w], axis=1)           # [D, 640]
        b1f = jnp.concatenate([b_h, b_it, pad_b], axis=1)           # [1, 640]
        w2p = jnp.pad(w2, ((0, 0), (0, PAD_NL - NUM_LABELS)))       # [HID, 128]
        b2p = jnp.pad(b2, ((0, 0), (0, PAD_NL - NUM_LABELS)))       # [1, 128]
        return w1f, b1f, w2p, b2p

    t = fold_branch(p["wv_t"], p["bv_t"], p["wo_t"], p["bo_t"],
                    p["fc_wa"], p["fc_b"],
                    p["ft_w1"], p["ft_b1"], p["ft_w2"], p["ft_b2"])
    i = fold_branch(p["wv_i"], p["bv_i"], p["wo_i"], p["bo_i"],
                    p["fc_wb"], jnp.zeros_like(p["fc_b"]),  # fc bias added once (text branch)
                    p["fi_w1"], p["fi_b1"], p["fi_w2"], p["fi_b2"])

    stk = lambda a, b: jnp.stack([a, b], axis=0)
    return {
        "w1": stk(t[0], i[0]).astype(jnp.bfloat16),   # [2, D, 640]
        "b1": stk(t[1], i[1]).astype(jnp.float32),    # [2, 1, 640]
        "w2": stk(t[2], i[2]).astype(jnp.bfloat16),   # [2, HID, 128]
        "b2": stk(t[3], i[3]).astype(jnp.float32),    # [2, 1, 128]
    }


# --------------------------- plain-JAX glue ----------------------------------

def text_encoder_stub(input_ids, attention_mask, emb_table, pool_w, pool_b):
    # TODO(synk): BertEncoder is an external module (not in the source file);
    # stand-in = embedding lookup + masked mean pooling + tanh pooler -> [B, 768].
    tok = emb_table[input_ids]                                      # [B, S, D]
    mask = attention_mask[..., None].astype(jnp.float32)
    pooled = (tok * mask).sum(axis=1) / jnp.maximum(mask.sum(axis=1), 1.0)
    return jnp.tanh(pooled @ pool_w + pool_b)                       # [B, D]


def image_encoder_stub(image_nchw, proj_w, proj_b):
    # TODO(synk): getnetwork() (PIPNet backbone) is an external module; stand-in
    # = global average pool over H,W + linear projection -> [B, 768].
    feat = image_nchw.mean(axis=(2, 3))                             # [B, C]
    return feat @ proj_w + proj_b                                   # [B, D]


def init_params(key, vocab_size, in_channels):
    ks = iter(jax.random.split(key, 64))

    def lin(fin, fout):
        w = jax.random.normal(next(ks), (fin, fout), jnp.float32) / jnp.sqrt(jnp.float32(fin))
        b = jax.random.normal(next(ks), (1, fout), jnp.float32) * 0.01
        return w, b

    p = {}
    # textbased_cross_attention (q from image, kv from text) — q/k kept only for
    # the pure-JAX reference; they are provably dead (softmax over 1 key == 1).
    p["wq_t"], p["bq_t"] = lin(DIM, DIM)
    p["wk_t"], p["bk_t"] = lin(DIM, DIM)
    p["wv_t"], p["bv_t"] = lin(DIM, DIM)
    p["wo_t"], p["bo_t"] = lin(DIM, DIM)
    # imagbased_cross_attention (q from text, kv from image)
    p["wq_i"], p["bq_i"] = lin(DIM, DIM)
    p["wk_i"], p["bk_i"] = lin(DIM, DIM)
    p["wv_i"], p["bv_i"] = lin(DIM, DIM)
    p["wo_i"], p["bo_i"] = lin(DIM, DIM)
    # fc: Linear(768*2, num_labels) — split the [1536, NL] weight into two halves
    fc_w, p["fc_b"] = lin(2 * DIM, NUM_LABELS)
    p["fc_wa"], p["fc_wb"] = fc_w[:DIM], fc_w[DIM:]
    # fc_text / fc_image MLP heads
    p["ft_w1"], p["ft_b1"] = lin(DIM, HID)
    p["ft_w2"], p["ft_b2"] = lin(HID, NUM_LABELS)
    p["fi_w1"], p["fi_b1"] = lin(DIM, HID)
    p["fi_w2"], p["fi_b2"] = lin(HID, NUM_LABELS)
    # stand-in encoder params (glue)
    p["emb_table"] = jax.random.normal(next(ks), (vocab_size, DIM), jnp.float32) * 0.02
    p["pool_w"], p["pool_b"] = lin(DIM, DIM)
    p["proj_w"], p["proj_b"] = lin(in_channels, DIM)
    # TODO(synk): I2Iattention / avg_pool / avg_pool2 are constructed in the
    # PyTorch module but never used in forward(); omitted here.
    return p


def pipnet_with_our_forward(batch_data, params, fused_params):
    text_embedding = text_encoder_stub(batch_data["input_ids"],
                                       batch_data["attention_mask"],
                                       params["emb_table"],
                                       params["pool_w"], params["pool_b"])
    image_embedding = image_encoder_stub(batch_data["transformed_image"],
                                         params["proj_w"], params["proj_b"])
    return pipnet_fusion_head(text_embedding, image_embedding, fused_params)


# pure-JAX f32 reference of the fusion head, with the FULL attention math
# (q/k projections + softmax over the single key), for a sanity check only.
def _fusion_ref(te, ie, p):
    def xattn(qx, kvx, wq, wk, wv, wo, bq, bk, bv, bo):
        q, k, v = qx @ wq + bq, kvx @ wk + bk, kvx @ wv + bv
        s = jnp.sum(q * k, -1, keepdims=True) / jnp.sqrt(jnp.float32(DIM))
        return (jnp.exp(s - s) * v) @ wo + bo          # softmax over 1 key == 1
    tf = xattn(ie, te, p["wq_t"], p["wk_t"], p["wv_t"], p["wo_t"],
               p["bq_t"], p["bk_t"], p["bv_t"], p["bo_t"])
    imf = xattn(te, ie, p["wq_i"], p["wk_i"], p["wv_i"], p["wo_i"],
                p["bq_i"], p["bk_i"], p["bv_i"], p["bo_i"])
    it = tf @ p["fc_wa"] + imf @ p["fc_wb"] + p["fc_b"]
    t = jnp.maximum(tf @ p["ft_w1"] + p["ft_b1"], 0.0) @ p["ft_w2"] + p["ft_b2"]
    i = jnp.maximum(imf @ p["fi_w1"] + p["fi_b1"], 0.0) @ p["fi_w2"] + p["fi_b2"]
    return {"image_text": it, "text": t, "image": i}


if __name__ == "__main__":
    key = jax.random.PRNGKey(0)
    k_ids, k_img, k_par = jax.random.split(key, 3)

    B, S, C, H, W = 2, 8, 3, 16, 16
    VOCAB = 100

    batch_data = {
        "input_ids": jax.random.randint(k_ids, (B, S), 0, VOCAB, dtype=jnp.int32),
        "attention_mask": jnp.ones((B, S), dtype=jnp.int32),
        "transformed_image": jax.random.normal(k_img, (B, C, H, W), dtype=jnp.float32),
    }
    params = init_params(k_par, VOCAB, C)
    fused_params = prepare_fused_params(params)   # one-time host-side folding

    out = pipnet_with_our_forward(batch_data, params, fused_params)
    jax.block_until_ready(out)

    # light sanity check against a pure-JAX f32 reference of the fused head
    te = text_encoder_stub(batch_data["input_ids"], batch_data["attention_mask"],
                           params["emb_table"], params["pool_w"], params["pool_b"])
    ie = image_encoder_stub(batch_data["transformed_image"],
                            params["proj_w"], params["proj_b"])
    ref = _fusion_ref(te, ie, params)
    for name in ("image_text", "text", "image"):
        assert out[name].shape == (B, NUM_LABELS)
        assert jnp.allclose(out[name], ref[name], rtol=5e-2, atol=5e-2)

    print("KERNEL_OK")
</pallas_src>

<mosaic_0001>
module attributes {stable_mosaic.version = 11 : i64} {
  func.func @fused_head_kernel(%arg0: memref<2x2x768xbf16, #tpu.memory_space<vmem>>, %arg1: memref<2x768x640xbf16, #tpu.memory_space<vmem>>, %arg2: memref<2x1x640xf32, #tpu.memory_space<vmem>>, %arg3: memref<2x512x128xbf16, #tpu.memory_space<vmem>>, %arg4: memref<2x1x128xf32, #tpu.memory_space<vmem>>, %arg5: memref<2x2x256xf32, #tpu.memory_space<vmem>>) attributes {dimension_semantics = [], scalar_prefetch = 0 : i64, scratch_operands = 0 : i64, tpu.core_type = #tpu.core_type<tc>} {
    %c0 = arith.constant 0 : index
    %c0_0 = arith.constant 0 : index
    %c0_1 = arith.constant 0 : index
    %0 = vector.load %arg0[%c0, %c0_0, %c0_1] : memref<2x2x768xbf16, #tpu.memory_space<vmem>>, vector<1x2x768xbf16>
    %1 = vector.shape_cast %0 : vector<1x2x768xbf16> to vector<2x768xbf16>
    %c0_2 = arith.constant 0 : index
    %c0_3 = arith.constant 0 : index
    %c0_4 = arith.constant 0 : index
    %2 = vector.load %arg1[%c0_2, %c0_3, %c0_4] : memref<2x768x640xbf16, #tpu.memory_space<vmem>>, vector<1x768x640xbf16>
    %3 = vector.shape_cast %2 : vector<1x768x640xbf16> to vector<768x640xbf16>
    %cst = arith.constant dense<0.000000e+00> : vector<2x640xf32>
    %4 = tpu.matmul %1, %3, %cst {dimension_numbers = #tpu.dot_dimension_numbers<[1], [0], [0], [1], [0, 0, 1, 1], [], []>} : vector<2x768xbf16>, vector<768x640xbf16>, vector<2x640xf32> -> vector<2x640xf32>
    %c0_5 = arith.constant 0 : index
    %c0_6 = arith.constant 0 : index
    %c0_7 = arith.constant 0 : index
    %5 = vector.load %arg2[%c0_5, %c0_6, %c0_7] : memref<2x1x640xf32, #tpu.memory_space<vmem>>, vector<1x1x640xf32>
    %6 = vector.shape_cast %5 : vector<1x1x640xf32> to vector<1x640xf32>
    %7 = vector.broadcast %6 : vector<1x640xf32> to vector<2x640xf32>
    %8 = arith.addf %4, %7 : vector<2x640xf32>
    %9 = vector.extract_strided_slice %8 {offsets = [0, 0], sizes = [2, 512], strides = [1, 1]} : vector<2x640xf32> to vector<2x512xf32>
    %cst_8 = arith.constant 0.000000e+00 : f32
    %10 = vector.broadcast %cst_8 : f32 to vector<2x512xf32>
    %11 = arith.maximumf %9, %10 : vector<2x512xf32>
    %12 = vector.extract_strided_slice %8 {offsets = [0, 512], sizes = [2, 128], strides = [1, 1]} : vector<2x640xf32> to vector<2x128xf32>
    %13 = arith.truncf %11 : vector<2x512xf32> to vector<2x512xbf16>
    %c0_9 = arith.constant 0 : index
    %c0_10 = arith.constant 0 : index
    %c0_11 = arith.constant 0 : index
    %14 = vector.load %arg3[%c0_9, %c0_10, %c0_11] : memref<2x512x128xbf16, #tpu.memory_space<vmem>>, vector<1x512x128xbf16>
    %15 = vector.shape_cast %14 : vector<1x512x128xbf16> to vector<512x128xbf16>
    %cst_12 = arith.constant dense<0.000000e+00> : vector<2x128xf32>
    %16 = tpu.matmul %13, %15, %cst_12 {dimension_numbers = #tpu.dot_dimension_numbers<[1], [0], [0], [1], [0, 0, 1, 1], [], []>} : vector<2x512xbf16>, vector<512x128xbf16>, vector<2x128xf32> -> vector<2x128xf32>
    %c0_13 = arith.constant 0 : index
    %c0_14 = arith.constant 0 : index
    %c0_15 = arith.constant 0 : index
    %17 = vector.load %arg4[%c0_13, %c0_14, %c0_15] : memref<2x1x128xf32, #tpu.memory_space<vmem>>, vector<1x1x128xf32>
    %18 = vector.shape_cast %17 : vector<1x1x128xf32> to vector<1x128xf32>
    %19 = vector.broadcast %18 : vector<1x128xf32> to vector<2x128xf32>
    %20 = arith.addf %16, %19 : vector<2x128xf32>
    %c0_16 = arith.constant 0 : index
    %c0_17 = arith.constant 0 : index
    %c0_18 = arith.constant 0 : index
    %21 = vector.load %arg5[%c0_16, %c0_17, %c0_18] : memref<2x2x256xf32, #tpu.memory_space<vmem>>, vector<1x2x128xf32>
    %22 = vector.shape_cast %21 : vector<1x2x128xf32> to vector<2x128xf32>
    %23 = vector.shape_cast %12 : vector<2x128xf32> to vector<1x2x128xf32>
    tpu.vector_store %arg5[%c0_16, %c0_17, %c0_18], %23 {strides = array<i32>} : memref<2x2x256xf32, #tpu.memory_space<vmem>>, vector<1x2x128xf32>,
    %c0_19 = arith.constant 0 : index
    %c0_20 = arith.constant 0 : index
    %c128 = arith.constant 128 : index
    %24 = vector.load %arg5[%c0_19, %c0_20, %c128] : memref<2x2x256xf32, #tpu.memory_space<vmem>>, vector<1x2x128xf32>
    %25 = vector.shape_cast %24 : vector<1x2x128xf32> to vector<2x128xf32>
    %26 = vector.shape_cast %20 : vector<2x128xf32> to vector<1x2x128xf32>
    tpu.vector_store %arg5[%c0_19, %c0_20, %c128], %26 {strides = array<i32>} : memref<2x2x256xf32, #tpu.memory_space<vmem>>, vector<1x2x128xf32>,
    %c1 = arith.constant 1 : index
    %c0_21 = arith.constant 0 : index
    %c0_22 = arith.constant 0 : index
    %27 = vector.load %arg0[%c1, %c0_21, %c0_22] : memref<2x2x768xbf16, #tpu.memory_space<vmem>>, vector<1x2x768xbf16>
    %28 = vector.shape_cast %27 : vector<1x2x768xbf16> to vector<2x768xbf16>
    %c1_23 = arith.constant 1 : index
    %c0_24 = arith.constant 0 : index
    %c0_25 = arith.constant 0 : index
    %29 = vector.load %arg1[%c1_23, %c0_24, %c0_25] : memref<2x768x640xbf16, #tpu.memory_space<vmem>>, vector<1x768x640xbf16>
    %30 = vector.shape_cast %29 : vector<1x768x640xbf16> to vector<768x640xbf16>
    %cst_26 = arith.constant dense<0.000000e+00> : vector<2x640xf32>
    %31 = tpu.matmul %28, %30, %cst_26 {dimension_numbers = #tpu.dot_dimension_numbers<[1], [0], [0], [1], [0, 0, 1, 1], [], []>} : vector<2x768xbf16>, vector<768x640xbf16>, vector<2x640xf32> -> vector<2x640xf32>
    %c1_27 = arith.constant 1 : index
    %c0_28 = arith.constant 0 : index
    %c0_29 = arith.constant 0 : index
    %32 = vector.load %arg2[%c1_27, %c0_28, %c0_29] : memref<2x1x640xf32, #tpu.memory_space<vmem>>, vector<1x1x640xf32>
    %33 = vector.shape_cast %32 : vector<1x1x640xf32> to vector<1x640xf32>
    %34 = vector.broadcast %33 : vector<1x640xf32> to vector<2x640xf32>
    %35 = arith.addf %31, %34 : vector<2x640xf32>
    %36 = vector.extract_strided_slice %35 {offsets = [0, 0], sizes = [2, 512], strides = [1, 1]} : vector<2x640xf32> to vector<2x512xf32>
    %cst_30 = arith.constant 0.000000e+00 : f32
    %37 = vector.broadcast %cst_30 : f32 to vector<2x512xf32>
    %38 = arith.maximumf %36, %37 : vector<2x512xf32>
    %39 = vector.extract_strided_slice %35 {offsets = [0, 512], sizes = [2, 128], strides = [1, 1]} : vector<2x640xf32> to vector<2x128xf32>
    %40 = arith.truncf %38 : vector<2x512xf32> to vector<2x512xbf16>
    %c1_31 = arith.constant 1 : index
    %c0_32 = arith.constant 0 : index
    %c0_33 = arith.constant 0 : index
    %41 = vector.load %arg3[%c1_31, %c0_32, %c0_33] : memref<2x512x128xbf16, #tpu.memory_space<vmem>>, vector<1x512x128xbf16>
    %42 = vector.shape_cast %41 : vector<1x512x128xbf16> to vector<512x128xbf16>
    %cst_34 = arith.constant dense<0.000000e+00> : vector<2x128xf32>
    %43 = tpu.matmul %40, %42, %cst_34 {dimension_numbers = #tpu.dot_dimension_numbers<[1], [0], [0], [1], [0, 0, 1, 1], [], []>} : vector<2x512xbf16>, vector<512x128xbf16>, vector<2x128xf32> -> vector<2x128xf32>
    %c1_35 = arith.constant 1 : index
    %c0_36 = arith.constant 0 : index
    %c0_37 = arith.constant 0 : index
    %44 = vector.load %arg4[%c1_35, %c0_36, %c0_37] : memref<2x1x128xf32, #tpu.memory_space<vmem>>, vector<1x1x128xf32>
    %45 = vector.shape_cast %44 : vector<1x1x128xf32> to vector<1x128xf32>
    %46 = vector.broadcast %45 : vector<1x128xf32> to vector<2x128xf32>
    %47 = arith.addf %43, %46 : vector<2x128xf32>
    %c1_38 = arith.constant 1 : index
    %c0_39 = arith.constant 0 : index
    %c0_40 = arith.constant 0 : index
    %48 = vector.load %arg5[%c1_38, %c0_39, %c0_40] : memref<2x2x256xf32, #tpu.memory_space<vmem>>, vector<1x2x128xf32>
    %49 = vector.shape_cast %48 : vector<1x2x128xf32> to vector<2x128xf32>
    %50 = vector.shape_cast %39 : vector<2x128xf32> to vector<1x2x128xf32>
    tpu.vector_store %arg5[%c1_38, %c0_39, %c0_40], %50 {strides = array<i32>} : memref<2x2x256xf32, #tpu.memory_space<vmem>>, vector<1x2x128xf32>,
    %c1_41 = arith.constant 1 : index
    %c0_42 = arith.constant 0 : index
    %c128_43 = arith.constant 128 : index
    %51 = vector.load %arg5[%c1_41, %c0_42, %c128_43] : memref<2x2x256xf32, #tpu.memory_space<vmem>>, vector<1x2x128xf32>
    %52 = vector.shape_cast %51 : vector<1x2x128xf32> to vector<2x128xf32>
    %53 = vector.shape_cast %47 : vector<2x128xf32> to vector<1x2x128xf32>
    tpu.vector_store %arg5[%c1_41, %c0_42, %c128_43], %53 {strides = array<i32>} : memref<2x2x256xf32, #tpu.memory_space<vmem>>, vector<1x2x128xf32>,
    return
  }
}

</mosaic_0001>

<llo_original>
// kernel: tpu_custom_call.1
$region0: #{tpu_custom_call.1}
  #allocation0 [shape = 'u32[]', space=smem, size = 0x4, offset = 0x4, fixed_abs, tag = 'smem constant byte address 0x4 - core index']
  #allocation1 [shape = 'u32[144,128]{1,0:T(1,128)}', space=vmem, size = 0x12000, scoped, tag = 'internal scratch']
  %s0 = inlined_call_operand.hbm [shape: bf16[2,2,768], index: 0, kind: input, shape index: {}]
  %s1 = inlined_call_operand.hbm [shape: bf16[2,768,640], index: 1, kind: input, shape index: {}]
  %s2 = inlined_call_operand.hbm [shape: f32[2,1,640], index: 2, kind: input, shape index: {}]
  %s3 = inlined_call_operand.hbm [shape: bf16[2,512,128], index: 3, kind: input, shape index: {}]
  %s4 = inlined_call_operand.hbm [shape: f32[2,1,128], index: 4, kind: input, shape index: {}]
  %s5 = inlined_call_operand.hbm [shape: f32[2,2,256], index: 5, kind: output, shape index: {}]
  %s6 = sld [smem:[#allocation0]]
  $region50: #{tpu_custom_call.1} parent=0
    _
  %s8 = ssub.s32 1, %s6
  %s9 = scalar_select 0, %s8, %s6
  $region1: #{tpu_custom_call.1} parent=0
    #allocation2 [shape = 'u8[6144]{0}', space=vmem, size = 0x1800, scoped, tag = 'input window, operand 0, single buffered']
    #allocation3 [shape = 's32[1]{0}', space=sflag, size = 0x4, scoped, tag = 'scoped memory for tpu_custom_call.1']
    #allocation4 [shape = 's32[1]{0}', space=sflag, size = 0x4, scoped, tag = 'scoped memory for tpu_custom_call.1']
    #allocation5 [shape = 'u8[1966080]{0}', space=vmem, size = 0x1e0000, scoped, tag = 'input window, operand 1, single buffered']
    #allocation6 [shape = 's32[1]{0}', space=sflag, size = 0x4, scoped, tag = 'scoped memory for tpu_custom_call.1']
    #allocation7 [shape = 'u8[5120]{0}', space=vmem, size = 0x1400, scoped, tag = 'input window, operand 2, single buffered']
    #allocation8 [shape = 'u8[262144]{0}', space=vmem, size = 0x40000, scoped, tag = 'input window, operand 3, single buffered']
    #allocation9 [shape = 's32[1]{0}', space=sflag, size = 0x4, scoped, tag = 'scoped memory for tpu_custom_call.1']
    #allocation10 [shape = 'u8[1024]{0}', space=vmem, size = 0x400, scoped, tag = 'input window, operand 4, single buffered']
    #allocation11 [shape = 'u8[4096]{0}', space=vmem, size = 0x1000, scoped, tag = 'output window, operand 0, single buffered']
    %10 = vsyncpa [#allocation3], 0
    %11 = vsyncpa [#allocation6], 0
    %12 = vsyncpa [#allocation9], 0
    %13 = vsyncpa [#allocation4], 0
    // Predicated region
    $region2: #{tpu_custom_call.1} parent=1 // pred_check
      _
    $region3: #{tpu_custom_call.1} parent=1 // pred_check_branch
      %15 = sbr.rel (0) target = $region5
    $region4: #{tpu_custom_call.1} parent=1 // pred_region
      %s17 = ssub.s32 192, 192
      %18 = vsyncadd [#allocation3], %s17
      %s19 = sshll.u32 [#allocation2], 4
      %s20 = int_to_ptr.vmem [resolvable:$true] %s19
      %25 = dma.hbm_to_vmem [thread:$0]  %s0, 192, %s20, [#allocation3], 96, 96, 6
    $region5: #{tpu_custom_call.1} parent=1 // pred_fallthru
      _
    // Predicated region
    $region6: #{tpu_custom_call.1} parent=1 // pred_check
      _
    $region7: #{tpu_custom_call.1} parent=1 // pred_check_branch
      %27 = sbr.rel (0) target = $region9
    $region8: #{tpu_custom_call.1} parent=1 // pred_region
      %s29 = ssub.s32 61440, 61440
      %30 = vsyncadd [#allocation6], %s29
      %s31 = sshll.u32 [#allocation5], 4
      %s32 = int_to_ptr.vmem [resolvable:$true] %s31
      %37 = dma.hbm_to_vmem [thread:$0]  %s1, 61440, %s32, [#allocation6], 320, 320, 20
    $region9: #{tpu_custom_call.1} parent=1 // pred_fallthru
      _
    // Predicated region
    $region10: #{tpu_custom_call.1} parent=1 // pred_check
      _
    $region11: #{tpu_custom_call.1} parent=1 // pred_check_branch
      %39 = sbr.rel (0) target = $region13
    $region12: #{tpu_custom_call.1} parent=1 // pred_region
      %s41 = ssub.s32 160, 160
      %42 = vsyncadd [#allocation6], %s41
      %s43 = sshll.u32 [#allocation7], 4
      %s44 = int_to_ptr.vmem [resolvable:$true] %s43
      %49 = dma.hbm_to_vmem [thread:$0]  %s2, 160, %s44, [#allocation6], 80, 80, 5
    $region13: #{tpu_custom_call.1} parent=1 // pred_fallthru
      _
    // Predicated region
    $region14: #{tpu_custom_call.1} parent=1 // pred_check
      _
    $region15: #{tpu_custom_call.1} parent=1 // pred_check_branch
      %51 = sbr.rel (0) target = $region17
    $region16: #{tpu_custom_call.1} parent=1 // pred_region
      %s53 = ssub.s32 8192, 8192
      %54 = vsyncadd [#allocation9], %s53
      %s55 = sshll.u32 [#allocation8], 4
      %s56 = int_to_ptr.vmem [resolvable:$true] %s55
      %61 = dma.hbm_to_vmem [thread:$0]  %s3, 8192, %s56, [#allocation9], 64, 64, 4
    $region17: #{tpu_custom_call.1} parent=1 // pred_fallthru
      _
    // Predicated region
    $region18: #{tpu_custom_call.1} parent=1 // pred_check
      _
    $region19: #{tpu_custom_call.1} parent=1 // pred_check_branch
      %63 = sbr.rel (0) target = $region21
    $region20: #{tpu_custom_call.1} parent=1 // pred_region
      %s65 = ssub.s32 32, 32
      %66 = vsyncadd [#allocation9], %s65
      %s67 = sshll.u32 [#allocation10], 4
      %s68 = int_to_ptr.vmem [resolvable:$true] %s67
      %73 = dma.hbm_to_vmem [thread:$0]  %s4, 32, %s68, [#allocation9], 16, 16, 1
    $region21: #{tpu_custom_call.1} parent=1 // pred_fallthru
      _
    // Predicated region
    $region22: #{tpu_custom_call.1} parent=1 // pred_check
      _
    $region23: #{tpu_custom_call.1} parent=1 // pred_check_branch
      %75 = sbr.rel (0) target = $region25
    $region24: #{tpu_custom_call.1} parent=1 // pred_region
      %76 = dma.done [#allocation3], 192
    $region25: #{tpu_custom_call.1} parent=1 // pred_fallthru
      _
    // Predicated region
    $region26: #{tpu_custom_call.1} parent=1 // pred_check
      _
    $region27: #{tpu_custom_call.1} parent=1 // pred_check_branch
      %78 = sbr.rel (0) target = $region29
    $region28: #{tpu_custom_call.1} parent=1 // pred_region
      %79 = dma.done [#allocation6], 61440
    $region29: #{tpu_custom_call.1} parent=1 // pred_fallthru
      _
    // Predicated region
    $region30: #{tpu_custom_call.1} parent=1 // pred_check
      _
    $region31: #{tpu_custom_call.1} parent=1 // pred_check_branch
      %81 = sbr.rel (0) target = $region33
    $region32: #{tpu_custom_call.1} parent=1 // pred_region
      %82 = dma.done [#allocation6], 160
    $region33: #{tpu_custom_call.1} parent=1 // pred_fallthru
      _
    // Predicated region
    $region34: #{tpu_custom_call.1} parent=1 // pred_check
      _
    $region35: #{tpu_custom_call.1} parent=1 // pred_check_branch
      %84 = sbr.rel (0) target = $region37
    $region36: #{tpu_custom_call.1} parent=1 // pred_region
      %85 = dma.done [#allocation9], 8192
    $region37: #{tpu_custom_call.1} parent=1 // pred_fallthru
      _
    // Predicated region
    $region38: #{tpu_custom_call.1} parent=1 // pred_check
      _
    $region39: #{tpu_custom_call.1} parent=1 // pred_check_branch
      %87 = sbr.rel (0) target = $region41
    $region40: #{tpu_custom_call.1} parent=1 // pred_region
      %88 = dma.done [#allocation9], 32
    $region41: #{tpu_custom_call.1} parent=1 // pred_fallthru
      _
    %v90 = vld [vmem:[#allocation2] sm:$0x3f]
    %v91 = vld [vmem:[#allocation5] sm:$0xff]
    %v92 = vld [vmem:[#allocation5 + $0x8] sm:$0xff]
    %v93 = vld [vmem:[#allocation5 + $0x10] sm:$0xf]
    %v94 = vld [vmem:[#allocation5 + $0x14] sm:$0xff]
    %v95 = vld [vmem:[#allocation5 + $0x1c] sm:$0xff]
    %v96 = vld [vmem:[#allocation5 + $0x24] sm:$0xf]
    %v97 = vld [vmem:[#allocation5 + $0x28] sm:$0xff]
    %v98 = vld [vmem:[#allocation5 + $0x30] sm:$0xff]
    %v99 = vld [vmem:[#allocation5 + $0x38] sm:$0xf]
    %v100 = vld [vmem:[#allocation5 + $0x3c] sm:$0xff]
    %v101 = vld [vmem:[#allocation5 + $0x44] sm:$0xff]
    %v102 = vld [vmem:[#allocation5 + $0x4c] sm:$0xf]
    %v103 = vld [vmem:[#allocation5 + $0x50] sm:$0xff]
    %v104 = vld [vmem:[#allocation5 + $0x58] sm:$0xff]
    %v105 = vld [vmem:[#allocation5 + $0x60] sm:$0xf]
    %v106 = vld [vmem:[#allocation5 + $0x64] sm:$0xff]
    %v107 = vld [vmem:[#allocation5 + $0x6c] sm:$0xff]
    %v108 = vld [vmem:[#allocation5 + $0x74] sm:$0xf]
    %v109 = vld [vmem:[#allocation5 + $0x78] sm:$0xff]
    %v110 = vld [vmem:[#allocation5 + $0x80] sm:$0xff]
    %v111 = vld [vmem:[#allocation5 + $0x88] sm:$0xf]
    %v112 = vld [vmem:[#allocation5 + $0x8c] sm:$0xff]
    %v113 = vld [vmem:[#allocation5 + $0x94] sm:$0xff]
    %v114 = vld [vmem:[#allocation5 + $0x9c] sm:$0xf]
    %v115 = vld [vmem:[#allocation5 + $0xa0] sm:$0xff]
    %v116 = vld [vmem:[#allocation5 + $0xa8] sm:$0xff]
    %v117 = vld [vmem:[#allocation5 + $0xb0] sm:$0xf]
    %v118 = vld [vmem:[#allocation5 + $0xb4] sm:$0xff]
    %v119 = vld [vmem:[#allocation5 + $0xbc] sm:$0xff]
    %v120 = vld [vmem:[#allocation5 + $0xc4] sm:$0xf]
    %v121 = vld [vmem:[#allocation5 + $0xc8] sm:$0xff]
    %v122 = vld [vmem:[#allocation5 + $0xd0] sm:$0xff]
    %v123 = vld [vmem:[#allocation5 + $0xd8] sm:$0xf]
    %v124 = vld [vmem:[#allocation5 + $0xdc] sm:$0xff]
    %v125 = vld [vmem:[#allocation5 + $0xe4] sm:$0xff]
    %v126 = vld [vmem:[#allocation5 + $0xec] sm:$0xf]
    %v127 = vld [vmem:[#allocation5 + $0xf0] sm:$0xff]
    %v128 = vld [vmem:[#allocation5 + $0xf8] sm:$0xff]
    %v129 = vld [vmem:[#allocation5 + $0x100] sm:$0xf]
    %v130 = vld [vmem:[#allocation5 + $0x104] sm:$0xff]
    %v131 = vld [vmem:[#allocation5 + $0x10c] sm:$0xff]
    %v132 = vld [vmem:[#allocation5 + $0x114] sm:$0xf]
    %v133 = vld [vmem:[#allocation5 + $0x118] sm:$0xff]
    %v134 = vld [vmem:[#allocation5 + $0x120] sm:$0xff]
    %v135 = vld [vmem:[#allocation5 + $0x128] sm:$0xf]
    %v136 = vld [vmem:[#allocation5 + $0x12c] sm:$0xff]
    %v137 = vld [vmem:[#allocation5 + $0x134] sm:$0xff]
    %v138 = vld [vmem:[#allocation5 + $0x13c] sm:$0xf]
    %v139 = vld [vmem:[#allocation5 + $0x140] sm:$0xff]
    %v140 = vld [vmem:[#allocation5 + $0x148] sm:$0xff]
    %v141 = vld [vmem:[#allocation5 + $0x150] sm:$0xf]
    %v142 = vld [vmem:[#allocation5 + $0x154] sm:$0xff]
    %v143 = vld [vmem:[#allocation5 + $0x15c] sm:$0xff]
    %v144 = vld [vmem:[#allocation5 + $0x164] sm:$0xf]
    %v145 = vld [vmem:[#allocation5 + $0x168] sm:$0xff]
    %v146 = vld [vmem:[#allocation5 + $0x170] sm:$0xff]
    %v147 = vld [vmem:[#allocation5 + $0x178] sm:$0xf]
    %v148 = vld [vmem:[#allocation5 + $0x17c] sm:$0xff]
    %v149 = vld [vmem:[#allocation5 + $0x184] sm:$0xff]
    %v150 = vld [vmem:[#allocation5 + $0x18c] sm:$0xf]
    %v151 = vld [vmem:[#allocation5 + $0x190] sm:$0xff]
    %v152 = vld [vmem:[#allocation5 + $0x198] sm:$0xff]
    %v153 = vld [vmem:[#allocation5 + $0x1a0] sm:$0xf]
    %v154 = vld [vmem:[#allocation5 + $0x1a4] sm:$0xff]
    %v155 = vld [vmem:[#allocation5 + $0x1ac] sm:$0xff]
    %v156 = vld [vmem:[#allocation5 + $0x1b4] sm:$0xf]
    %v157 = vld [vmem:[#allocation5 + $0x1b8] sm:$0xff]
    %v158 = vld [vmem:[#allocation5 + $0x1c0] sm:$0xff]
    %v159 = vld [vmem:[#allocation5 + $0x1c8] sm:$0xf]
    %v160 = vld [vmem:[#allocation5 + $0x1cc] sm:$0xff]
    %v161 = vld [vmem:[#allocation5 + $0x1d4] sm:$0xff]
    %v162 = vld [vmem:[#allocation5 + $0x1dc] sm:$0xf]
    %v163 = vld [vmem:[#allocation5 + $0x1e0] sm:$0xff]
    %v164 = vld [vmem:[#allocation5 + $0x1e8] sm:$0xff]
    %v165 = vld [vmem:[#allocation5 + $0x1f0] sm:$0xf]
    %v166 = vld [vmem:[#allocation5 + $0x1f4] sm:$0xff]
    %v167 = vld [vmem:[#allocation5 + $0x1fc] sm:$0xff]
    %v168 = vld [vmem:[#allocation5 + $0x204] sm:$0xf]
    %v169 = vld [vmem:[#allocation5 + $0x208] sm:$0xff]
    %v170 = vld [vmem:[#allocation5 + $0x210] sm:$0xff]
    %v171 = vld [vmem:[#allocation5 + $0x218] sm:$0xf]
    %v172 = vld [vmem:[#allocation5 + $0x21c] sm:$0xff]
    %v173 = vld [vmem:[#allocation5 + $0x224] sm:$0xff]
    %v174 = vld [vmem:[#allocation5 + $0x22c] sm:$0xf]
    %v175 = vld [vmem:[#allocation5 + $0x230] sm:$0xff]
    %v176 = vld [vmem:[#allocation5 + $0x238] sm:$0xff]
    %v177 = vld [vmem:[#allocation5 + $0x240] sm:$0xf]
    %v178 = vld [vmem:[#allocation5 + $0x244] sm:$0xff]
    %v179 = vld [vmem:[#allocation5 + $0x24c] sm:$0xff]
    %v180 = vld [vmem:[#allocation5 + $0x254] sm:$0xf]
    %v181 = vld [vmem:[#allocation5 + $0x258] sm:$0xff]
    %v182 = vld [vmem:[#allocation5 + $0x260] sm:$0xff]
    %v183 = vld [vmem:[#allocation5 + $0x268] sm:$0xf]
    %v184 = vld [vmem:[#allocation5 + $0x26c] sm:$0xff]
    %v185 = vld [vmem:[#allocation5 + $0x274] sm:$0xff]
    %v186 = vld [vmem:[#allocation5 + $0x27c] sm:$0xf]
    %v187 = vld [vmem:[#allocation5 + $0x280] sm:$0xff]
    %v188 = vld [vmem:[#allocation5 + $0x288] sm:$0xff]
    %v189 = vld [vmem:[#allocation5 + $0x290] sm:$0xf]
    %v190 = vld [vmem:[#allocation5 + $0x294] sm:$0xff]
    %v191 = vld [vmem:[#allocation5 + $0x29c] sm:$0xff]
    %v192 = vld [vmem:[#allocation5 + $0x2a4] sm:$0xf]
    %v193 = vld [vmem:[#allocation5 + $0x2a8] sm:$0xff]
    %v194 = vld [vmem:[#allocation5 + $0x2b0] sm:$0xff]
    %v195 = vld [vmem:[#allocation5 + $0x2b8] sm:$0xf]
    %v196 = vld [vmem:[#allocation5 + $0x2bc] sm:$0xff]
    %v197 = vld [vmem:[#allocation5 + $0x2c4] sm:$0xff]
    %v198 = vld [vmem:[#allocation5 + $0x2cc] sm:$0xf]
    %v199 = vld [vmem:[#allocation5 + $0x2d0] sm:$0xff]
    %v200 = vld [vmem:[#allocation5 + $0x2d8] sm:$0xff]
    %v201 = vld [vmem:[#allocation5 + $0x2e0] sm:$0xf]
    %v202 = vld [vmem:[#allocation5 + $0x2e4] sm:$0xff]
    %v203 = vld [vmem:[#allocation5 + $0x2ec] sm:$0xff]
    %v204 = vld [vmem:[#allocation5 + $0x2f4] sm:$0xf]
    %v205 = vld [vmem:[#allocation5 + $0x2f8] sm:$0xff]
    %v206 = vld [vmem:[#allocation5 + $0x300] sm:$0xff]
    %v207 = vld [vmem:[#allocation5 + $0x308] sm:$0xf]
    %v208 = vld [vmem:[#allocation5 + $0x30c] sm:$0xff]
    %v209 = vld [vmem:[#allocation5 + $0x314] sm:$0xff]
    %v210 = vld [vmem:[#allocation5 + $0x31c] sm:$0xf]
    %v211 = vld [vmem:[#allocation5 + $0x320] sm:$0xff]
    %v212 = vld [vmem:[#allocation5 + $0x328] sm:$0xff]
    %v213 = vld [vmem:[#allocation5 + $0x330] sm:$0xf]
    %v214 = vld [vmem:[#allocation5 + $0x334] sm:$0xff]
    %v215 = vld [vmem:[#allocation5 + $0x33c] sm:$0xff]
    %v216 = vld [vmem:[#allocation5 + $0x344] sm:$0xf]
    %v217 = vld [vmem:[#allocation5 + $0x348] sm:$0xff]
    %v218 = vld [vmem:[#allocation5 + $0x350] sm:$0xff]
    %v219 = vld [vmem:[#allocation5 + $0x358] sm:$0xf]
    %v220 = vld [vmem:[#allocation5 + $0x35c] sm:$0xff]
    %v221 = vld [vmem:[#allocation5 + $0x364] sm:$0xff]
    %v222 = vld [vmem:[#allocation5 + $0x36c] sm:$0xf]
    %v223 = vld [vmem:[#allocation5 + $0x370] sm:$0xff]
    %v224 = vld [vmem:[#allocation5 + $0x378] sm:$0xff]
    %v225 = vld [vmem:[#allocation5 + $0x380] sm:$0xf]
    %v226 = vld [vmem:[#allocation5 + $0x384] sm:$0xff]
    %v227 = vld [vmem:[#allocation5 + $0x38c] sm:$0xff]
    %v228 = vld [vmem:[#allocation5 + $0x394] sm:$0xf]
    %v229 = vld [vmem:[#allocation5 + $0x398] sm:$0xff]
    %v230 = vld [vmem:[#allocation5 + $0x3a0] sm:$0xff]
    %v231 = vld [vmem:[#allocation5 + $0x3a8] sm:$0xf]
    %v232 = vld [vmem:[#allocation5 + $0x3ac] sm:$0xff]
    %v233 = vld [vmem:[#allocation5 + $0x3b4] sm:$0xff]
    %v234 = vld [vmem:[#allocation5 + $0x3bc] sm:$0xf]
    %v235 = vld [vmem:[#allocation5 + $0x3c0] sm:$0xff]
    %v236 = vld [vmem:[#allocation5 + $0x3c8] sm:$0xff]
    %v237 = vld [vmem:[#allocation5 + $0x3d0] sm:$0xf]
    %v238 = vld [vmem:[#allocation5 + $0x3d4] sm:$0xff]
    %v239 = vld [vmem:[#allocation5 + $0x3dc] sm:$0xff]
    %v240 = vld [vmem:[#allocation5 + $0x3e4] sm:$0xf]
    %v241 = vld [vmem:[#allocation5 + $0x3e8] sm:$0xff]
    %v242 = vld [vmem:[#allocation5 + $0x3f0] sm:$0xff]
    %v243 = vld [vmem:[#allocation5 + $0x3f8] sm:$0xf]
    %v244 = vld [vmem:[#allocation5 + $0x3fc] sm:$0xff]
    %v245 = vld [vmem:[#allocation5 + $0x404] sm:$0xff]
    %v246 = vld [vmem:[#allocation5 + $0x40c] sm:$0xf]
    %v247 = vld [vmem:[#allocation5 + $0x410] sm:$0xff]
    %v248 = vld [vmem:[#allocation5 + $0x418] sm:$0xff]
    %v249 = vld [vmem:[#allocation5 + $0x420] sm:$0xf]
    %v250 = vld [vmem:[#allocation5 + $0x424] sm:$0xff]
    %v251 = vld [vmem:[#allocation5 + $0x42c] sm:$0xff]
    %v252 = vld [vmem:[#allocation5 + $0x434] sm:$0xf]
    %v253 = vld [vmem:[#allocation5 + $0x438] sm:$0xff]
    %v254 = vld [vmem:[#allocation5 + $0x440] sm:$0xff]
    %v255 = vld [vmem:[#allocation5 + $0x448] sm:$0xf]
    %v256 = vld [vmem:[#allocation5 + $0x44c] sm:$0xff]
    %v257 = vld [vmem:[#allocation5 + $0x454] sm:$0xff]
    %v258 = vld [vmem:[#allocation5 + $0x45c] sm:$0xf]
    %v259 = vld [vmem:[#allocation5 + $0x460] sm:$0xff]
    %v260 = vld [vmem:[#allocation5 + $0x468] sm:$0xff]
    %v261 = vld [vmem:[#allocation5 + $0x470] sm:$0xf]
    %v262 = vld [vmem:[#allocation5 + $0x474] sm:$0xff]
    %v263 = vld [vmem:[#allocation5 + $0x47c] sm:$0xff]
    %v264 = vld [vmem:[#allocation5 + $0x484] sm:$0xf]
    %v265 = vld [vmem:[#allocation5 + $0x488] sm:$0xff]
    %v266 = vld [vmem:[#allocation5 + $0x490] sm:$0xff]
    %v267 = vld [vmem:[#allocation5 + $0x498] sm:$0xf]
    %v268 = vld [vmem:[#allocation5 + $0x49c] sm:$0xff]
    %v269 = vld [vmem:[#allocation5 + $0x4a4] sm:$0xff]
    %v270 = vld [vmem:[#allocation5 + $0x4ac] sm:$0xf]
    %v271 = vld [vmem:[#allocation5 + $0x4b0] sm:$0xff]
    %v272 = vld [vmem:[#allocation5 + $0x4b8] sm:$0xff]
    %v273 = vld [vmem:[#allocation5 + $0x4c0] sm:$0xf]
    %v274 = vld [vmem:[#allocation5 + $0x4c4] sm:$0xff]
    %v275 = vld [vmem:[#allocation5 + $0x4cc] sm:$0xff]
    %v276 = vld [vmem:[#allocation5 + $0x4d4] sm:$0xf]
    %v277 = vld [vmem:[#allocation5 + $0x4d8] sm:$0xff]
    %v278 = vld [vmem:[#allocation5 + $0x4e0] sm:$0xff]
    %v279 = vld [vmem:[#allocation5 + $0x4e8] sm:$0xf]
    %v280 = vld [vmem:[#allocation5 + $0x4ec] sm:$0xff]
    %v281 = vld [vmem:[#allocation5 + $0x4f4] sm:$0xff]
    %v282 = vld [vmem:[#allocation5 + $0x4fc] sm:$0xf]
    %v283 = vld [vmem:[#allocation5 + $0x500] sm:$0xff]
    %v284 = vld [vmem:[#allocation5 + $0x508] sm:$0xff]
    %v285 = vld [vmem:[#allocation5 + $0x510] sm:$0xf]
    %v286 = vld [vmem:[#allocation5 + $0x514] sm:$0xff]
    %v287 = vld [vmem:[#allocation5 + $0x51c] sm:$0xff]
    %v288 = vld [vmem:[#allocation5 + $0x524] sm:$0xf]
    %v289 = vld [vmem:[#allocation5 + $0x528] sm:$0xff]
    %v290 = vld [vmem:[#allocation5 + $0x530] sm:$0xff]
    %v291 = vld [vmem:[#allocation5 + $0x538] sm:$0xf]
    %v292 = vld [vmem:[#allocation5 + $0x53c] sm:$0xff]
    %v293 = vld [vmem:[#allocation5 + $0x544] sm:$0xff]
    %v294 = vld [vmem:[#allocation5 + $0x54c] sm:$0xf]
    %v295 = vld [vmem:[#allocation5 + $0x550] sm:$0xff]
    %v296 = vld [vmem:[#allocation5 + $0x558] sm:$0xff]
    %v297 = vld [vmem:[#allocation5 + $0x560] sm:$0xf]
    %v298 = vld [vmem:[#allocation5 + $0x564] sm:$0xff]
    %v299 = vld [vmem:[#allocation5 + $0x56c] sm:$0xff]
    %v300 = vld [vmem:[#allocation5 + $0x574] sm:$0xf]
    %v301 = vld [vmem:[#allocation5 + $0x578] sm:$0xff]
    %v302 = vld [vmem:[#allocation5 + $0x580] sm:$0xff]
    %v303 = vld [vmem:[#allocation5 + $0x588] sm:$0xf]
    %v304 = vld [vmem:[#allocation5 + $0x58c] sm:$0xff]
    %v305 = vld [vmem:[#allocation5 + $0x594] sm:$0xff]
    %v306 = vld [vmem:[#allocation5 + $0x59c] sm:$0xf]
    %v307 = vld [vmem:[#allocation5 + $0x5a0] sm:$0xff]
    %v308 = vld [vmem:[#allocation5 + $0x5a8] sm:$0xff]
    %v309 = vld [vmem:[#allocation5 + $0x5b0] sm:$0xf]
    %v310 = vld [vmem:[#allocation5 + $0x5b4] sm:$0xff]
    %v311 = vld [vmem:[#allocation5 + $0x5bc] sm:$0xff]
    %v312 = vld [vmem:[#allocation5 + $0x5c4] sm:$0xf]
    %v313 = vld [vmem:[#allocation5 + $0x5c8] sm:$0xff]
    %v314 = vld [vmem:[#allocation5 + $0x5d0] sm:$0xff]
    %v315 = vld [vmem:[#allocation5 + $0x5d8] sm:$0xf]
    %v316 = vld [vmem:[#allocation5 + $0x5dc] sm:$0xff]
    %v317 = vld [vmem:[#allocation5 + $0x5e4] sm:$0xff]
    %v318 = vld [vmem:[#allocation5 + $0x5ec] sm:$0xf]
    %v319 = vld [vmem:[#allocation5 + $0x5f0] sm:$0xff]
    %v320 = vld [vmem:[#allocation5 + $0x5f8] sm:$0xff]
    %v321 = vld [vmem:[#allocation5 + $0x600] sm:$0xf]
    %v322 = vld [vmem:[#allocation5 + $0x604] sm:$0xff]
    %v323 = vld [vmem:[#allocation5 + $0x60c] sm:$0xff]
    %v324 = vld [vmem:[#allocation5 + $0x614] sm:$0xf]
    %v325 = vld [vmem:[#allocation5 + $0x618] sm:$0xff]
    %v326 = vld [vmem:[#allocation5 + $0x620] sm:$0xff]
    %v327 = vld [vmem:[#allocation5 + $0x628] sm:$0xf]
    %v328 = vld [vmem:[#allocation5 + $0x62c] sm:$0xff]
    %v329 = vld [vmem:[#allocation5 + $0x634] sm:$0xff]
    %v330 = vld [vmem:[#allocation5 + $0x63c] sm:$0xf]
    %v331 = vld [vmem:[#allocation5 + $0x640] sm:$0xff]
    %v332 = vld [vmem:[#allocation5 + $0x648] sm:$0xff]
    %v333 = vld [vmem:[#allocation5 + $0x650] sm:$0xf]
    %v334 = vld [vmem:[#allocation5 + $0x654] sm:$0xff]
    %v335 = vld [vmem:[#allocation5 + $0x65c] sm:$0xff]
    %v336 = vld [vmem:[#allocation5 + $0x664] sm:$0xf]
    %v337 = vld [vmem:[#allocation5 + $0x668] sm:$0xff]
    %v338 = vld [vmem:[#allocation5 + $0x670] sm:$0xff]
    %v339 = vld [vmem:[#allocation5 + $0x678] sm:$0xf]
    %v340 = vld [vmem:[#allocation5 + $0x67c] sm:$0xff]
    %v341 = vld [vmem:[#allocation5 + $0x684] sm:$0xff]
    %v342 = vld [vmem:[#allocation5 + $0x68c] sm:$0xf]
    %v343 = vld [vmem:[#allocation5 + $0x690] sm:$0xff]
    %v344 = vld [vmem:[#allocation5 + $0x698] sm:$0xff]
    %v345 = vld [vmem:[#allocation5 + $0x6a0] sm:$0xf]
    %v346 = vld [vmem:[#allocation5 + $0x6a4] sm:$0xff]
    %v347 = vld [vmem:[#allocation5 + $0x6ac] sm:$0xff]
    %v348 = vld [vmem:[#allocation5 + $0x6b4] sm:$0xf]
    %v349 = vld [vmem:[#allocation5 + $0x6b8] sm:$0xff]
    %v350 = vld [vmem:[#allocation5 + $0x6c0] sm:$0xff]
    %v351 = vld [vmem:[#allocation5 + $0x6c8] sm:$0xf]
    %v352 = vld [vmem:[#allocation5 + $0x6cc] sm:$0xff]
    %v353 = vld [vmem:[#allocation5 + $0x6d4] sm:$0xff]
    %v354 = vld [vmem:[#allocation5 + $0x6dc] sm:$0xf]
    %v355 = vld [vmem:[#allocation5 + $0x6e0] sm:$0xff]
    %v356 = vld [vmem:[#allocation5 + $0x6e8] sm:$0xff]
    %v357 = vld [vmem:[#allocation5 + $0x6f0] sm:$0xf]
    %v358 = vld [vmem:[#allocation5 + $0x6f4] sm:$0xff]
    %v359 = vld [vmem:[#allocation5 + $0x6fc] sm:$0xff]
    %v360 = vld [vmem:[#allocation5 + $0x704] sm:$0xf]
    %v361 = vld [vmem:[#allocation5 + $0x708] sm:$0xff]
    %v362 = vld [vmem:[#allocation5 + $0x710] sm:$0xff]
    %v363 = vld [vmem:[#allocation5 + $0x718] sm:$0xf]
    %v364 = vld [vmem:[#allocation5 + $0x71c] sm:$0xff]
    %v365 = vld [vmem:[#allocation5 + $0x724] sm:$0xff]
    %v366 = vld [vmem:[#allocation5 + $0x72c] sm:$0xf]
    %v367 = vld [vmem:[#allocation5 + $0x730] sm:$0xff]
    %v368 = vld [vmem:[#allocation5 + $0x738] sm:$0xff]
    %v369 = vld [vmem:[#allocation5 + $0x740] sm:$0xf]
    %v370 = vld [vmem:[#allocation5 + $0x744] sm:$0xff]
    %v371 = vld [vmem:[#allocation5 + $0x74c] sm:$0xff]
    %v372 = vld [vmem:[#allocation5 + $0x754] sm:$0xf]
    %v373 = vld [vmem:[#allocation5 + $0x758] sm:$0xff]
    %v374 = vld [vmem:[#allocation5 + $0x760] sm:$0xff]
    %v375 = vld [vmem:[#allocation5 + $0x768] sm:$0xf]
    %v376 = vld [vmem:[#allocation5 + $0x76c] sm:$0xff]
    %v377 = vld [vmem:[#allocation5 + $0x774] sm:$0xff]
    %v378 = vld [vmem:[#allocation5 + $0x77c] sm:$0xf]
    %v379 = vld [vmem:[#allocation7] sm:$0x1f]
    %v381 = vlaneseq
    %v382 = vshrl.u32 %v381, 7
    %v383 = vsub.s32 0, %v382
    %v384 = vrot.slane %v379, %v383
    %v385 = vlaneseq
    %v386 = vshrl.u32 %v385, 7
    %v387 = vsub.s32 1, %v386
    %v388 = vrot.slane %v379, %v387
    %v389 = vlaneseq
    %v390 = vshrl.u32 %v389, 7
    %v391 = vsub.s32 2, %v390
    %v392 = vrot.slane %v379, %v391
    %v393 = vlaneseq
    %v394 = vshrl.u32 %v393, 7
    %v395 = vsub.s32 3, %v394
    %v396 = vrot.slane %v379, %v395
    %v397 = vlaneseq
    %v398 = vshrl.u32 %v397, 7
    %v399 = vsub.s32 4, %v398
    %v400 = vrot.slane %v379, %v399
    %v407 = vcombine.high %v90, %v90
    %v409 = vunpack.c.l.s4 1966171168
    %v410 = vunpack.c.0.s8 %v409
    %v411 = vlaneseq
    %v412 = vshrl.u32 %v411, 7
    %v413 = vsub.s32 %v410, %v412
    %v414 = vrot.slane %v90, %v413
    %v416 = vunpack.c.l.s4 1966171168
    %v417 = vunpack.c.0.s8 %v416
    %v418 = vlaneseq
    %v419 = vshrl.u32 %v418, 7
    %v420 = vsub.s32 %v417, %v419
    %v421 = vrot.slane %v407, %v420
    %v422 = vcombine.high %v414, %v414
    %v423 = vcombine.high %v421, %v421
    %v425 = vunpack.c.l.s4 1966171168
    %v426 = vunpack.c.0.s8 %v425
    %v427 = vlaneseq
    %v428 = vshrl.u32 %v427, 7
    %v429 = vsub.s32 %v426, %v428
    %v430 = vrot.slane %v414, %v429
    %v432 = vunpack.c.l.s4 1966171168
    %v433 = vunpack.c.0.s8 %v432
    %v434 = vlaneseq
    %v435 = vshrl.u32 %v434, 7
    %v436 = vsub.s32 %v433, %v435
    %v437 = vrot.slane %v421, %v436
    %v439 = vunpack.c.l.s4 1966171168
    %v440 = vunpack.c.0.s8 %v439
    %v441 = vlaneseq
    %v442 = vshrl.u32 %v441, 7
    %v443 = vsub.s32 %v440, %v442
    %v444 = vrot.slane %v422, %v443
    %v446 = vunpack.c.l.s4 1966171168
    %v447 = vunpack.c.0.s8 %v446
    %v448 = vlaneseq
    %v449 = vshrl.u32 %v448, 7
    %v450 = vsub.s32 %v447, %v449
    %v451 = vrot.slane %v423, %v450
    %v452 = vcombine.high %v430, %v430
    %v453 = vcombine.high %v444, %v444
    %v748 = vunpack.c.l.b16 %v91
    %v749 = vunpack.c.h.b16 %v91
    %v750 = vunpack.c.l.b16 %v92
    %v751 = vunpack.c.h.b16 %v92
    %v752 = vunpack.c.l.b16 %v93
    %v753 = vunpack.c.l.b16 %v94
    %v754 = vunpack.c.h.b16 %v94
    %v755 = vunpack.c.l.b16 %v95
    %v756 = vunpack.c.h.b16 %v95
    %v757 = vunpack.c.l.b16 %v96
    %v758 = vunpack.c.l.b16 %v97
    %v759 = vunpack.c.h.b16 %v97
    %v760 = vunpack.c.l.b16 %v98
    %v761 = vunpack.c.h.b16 %v98
    %v762 = vunpack.c.l.b16 %v99
    %v763 = vunpack.c.l.b16 %v100
    %v764 = vunpack.c.h.b16 %v100
    %v765 = vunpack.c.l.b16 %v101
    %v766 = vunpack.c.h.b16 %v101
    %v767 = vunpack.c.l.b16 %v102
    %v768 = vunpack.c.l.b16 %v103
    %v769 = vunpack.c.h.b16 %v103
    %v770 = vunpack.c.l.b16 %v104
    %v771 = vunpack.c.h.b16 %v104
    %v772 = vunpack.c.l.b16 %v105
    %v773 = vunpack.c.l.b16 %v106
    %v774 = vunpack.c.h.b16 %v106
    %v775 = vunpack.c.l.b16 %v107
    %v776 = vunpack.c.h.b16 %v107
    %v777 = vunpack.c.l.b16 %v108
    %v778 = vunpack.c.l.b16 %v109
    %v779 = vunpack.c.h.b16 %v109
    %v780 = vunpack.c.l.b16 %v110
    %v781 = vunpack.c.h.b16 %v110
    %v782 = vunpack.c.l.b16 %v111
    %v783 = vunpack.c.l.b16 %v112
    %v784 = vunpack.c.h.b16 %v112
    %v785 = vunpack.c.l.b16 %v113
    %v786 = vunpack.c.h.b16 %v113
    %v787 = vunpack.c.l.b16 %v114
    %v788 = vunpack.c.l.b16 %v115
    %v789 = vunpack.c.h.b16 %v115
    %v790 = vunpack.c.l.b16 %v116
    %v791 = vunpack.c.h.b16 %v116
    %v792 = vunpack.c.l.b16 %v117
    %v793 = vunpack.c.l.b16 %v118
    %v794 = vunpack.c.h.b16 %v118
    %v795 = vunpack.c.l.b16 %v119
    %v796 = vunpack.c.h.b16 %v119
    %v797 = vunpack.c.l.b16 %v120
    %v798 = vunpack.c.l.b16 %v121
    %v799 = vunpack.c.h.b16 %v121
    %v800 = vunpack.c.l.b16 %v122
    %v801 = vunpack.c.h.b16 %v122
    %v802 = vunpack.c.l.b16 %v123
    %v803 = vunpack.c.l.b16 %v124
    %v804 = vunpack.c.h.b16 %v124
    %v805 = vunpack.c.l.b16 %v125
    %v806 = vunpack.c.h.b16 %v125
    %v807 = vunpack.c.l.b16 %v126
    %v808 = vunpack.c.l.b16 %v127
    %v809 = vunpack.c.h.b16 %v127
    %v810 = vunpack.c.l.b16 %v128
    %v811 = vunpack.c.h.b16 %v128
    %v812 = vunpack.c.l.b16 %v129
    %v813 = vunpack.c.l.b16 %v130
    %v814 = vunpack.c.h.b16 %v130
    %v815 = vunpack.c.l.b16 %v131
    %v816 = vunpack.c.h.b16 %v131
    %v817 = vunpack.c.l.b16 %v132
    %v818 = vunpack.c.l.b16 %v133
    %v819 = vunpack.c.h.b16 %v133
    %v820 = vunpack.c.l.b16 %v134
    %v821 = vunpack.c.h.b16 %v134
    %v822 = vunpack.c.l.b16 %v135
    %v823 = vunpack.c.l.b16 %v136
    %v824 = vunpack.c.h.b16 %v136
    %v825 = vunpack.c.l.b16 %v137
    %v826 = vunpack.c.h.b16 %v137
    %v827 = vunpack.c.l.b16 %v138
    %v828 = vunpack.c.l.b16 %v139
    %v829 = vunpack.c.h.b16 %v139
    %v830 = vunpack.c.l.b16 %v140
    %v831 = vunpack.c.h.b16 %v140
    %v832 = vunpack.c.l.b16 %v141
    %v833 = vunpack.c.l.b16 %v142
    %v834 = vunpack.c.h.b16 %v142
    %v835 = vunpack.c.l.b16 %v143
    %v836 = vunpack.c.h.b16 %v143
    %v837 = vunpack.c.l.b16 %v144
    %v838 = vunpack.c.l.b16 %v145
    %v839 = vunpack.c.h.b16 %v145
    %v840 = vunpack.c.l.b16 %v146
    %v841 = vunpack.c.h.b16 %v146
    %v842 = vunpack.c.l.b16 %v147
    %v843 = vunpack.c.l.b16 %v148
    %v844 = vunpack.c.h.b16 %v148
    %v845 = vunpack.c.l.b16 %v149
    %v846 = vunpack.c.h.b16 %v149
    %v847 = vunpack.c.l.b16 %v150
    %v848 = vunpack.c.l.b16 %v151
    %v849 = vunpack.c.h.b16 %v151
    %v850 = vunpack.c.l.b16 %v152
    %v851 = vunpack.c.h.b16 %v152
    %v852 = vunpack.c.l.b16 %v153
    %v853 = vunpack.c.l.b16 %v154
    %v854 = vunpack.c.h.b16 %v154
    %v855 = vunpack.c.l.b16 %v155
    %v856 = vunpack.c.h.b16 %v155
    %v857 = vunpack.c.l.b16 %v156
    %v858 = vunpack.c.l.b16 %v157
    %v859 = vunpack.c.h.b16 %v157
    %v860 = vunpack.c.l.b16 %v158
    %v861 = vunpack.c.h.b16 %v158
    %v862 = vunpack.c.l.b16 %v159
    %v863 = vunpack.c.l.b16 %v160
    %v864 = vunpack.c.h.b16 %v160
    %v865 = vunpack.c.l.b16 %v161
    %v866 = vunpack.c.h.b16 %v161
    %v867 = vunpack.c.l.b16 %v162
    %v868 = vunpack.c.l.b16 %v163
    %v869 = vunpack.c.h.b16 %v163
    %v870 = vunpack.c.l.b16 %v164
    %v871 = vunpack.c.h.b16 %v164
    %v872 = vunpack.c.l.b16 %v165
    %v873 = vunpack.c.l.b16 %v166
    %v874 = vunpack.c.h.b16 %v166
    %v875 = vunpack.c.l.b16 %v167
    %v876 = vunpack.c.h.b16 %v167
    %v877 = vunpack.c.l.b16 %v168
    %v878 = vunpack.c.l.b16 %v169
    %v879 = vunpack.c.h.b16 %v169
    %v880 = vunpack.c.l.b16 %v170
    %v881 = vunpack.c.h.b16 %v170
    %v882 = vunpack.c.l.b16 %v171
    %v883 = vunpack.c.l.b16 %v172
    %v884 = vunpack.c.h.b16 %v172
    %v885 = vunpack.c.l.b16 %v173
    %v886 = vunpack.c.h.b16 %v173
    %v887 = vunpack.c.l.b16 %v174
    %v888 = vunpack.c.l.b16 %v175
    %v889 = vunpack.c.h.b16 %v175
    %v890 = vunpack.c.l.b16 %v176
    %v891 = vunpack.c.h.b16 %v176
    %v892 = vunpack.c.l.b16 %v177
    %v893 = vunpack.c.l.b16 %v178
    %v894 = vunpack.c.h.b16 %v178
    %v895 = vunpack.c.l.b16 %v179
    %v896 = vunpack.c.h.b16 %v179
    %v897 = vunpack.c.l.b16 %v180
    %v898 = vunpack.c.l.b16 %v181
    %v899 = vunpack.c.h.b16 %v181
    %v900 = vunpack.c.l.b16 %v182
    %v901 = vunpack.c.h.b16 %v182
    %v902 = vunpack.c.l.b16 %v183
    %v903 = vunpack.c.l.b16 %v184
    %v904 = vunpack.c.h.b16 %v184
    %v905 = vunpack.c.l.b16 %v185
    %v906 = vunpack.c.h.b16 %v185
    %v907 = vunpack.c.l.b16 %v186
    %v908 = vunpack.c.l.b16 %v187
    %v909 = vunpack.c.h.b16 %v187
    %v910 = vunpack.c.l.b16 %v188
    %v911 = vunpack.c.h.b16 %v188
    %v912 = vunpack.c.l.b16 %v189
    %v913 = vunpack.c.l.b16 %v190
    %v914 = vunpack.c.h.b16 %v190
    %v915 = vunpack.c.l.b16 %v191
    %v916 = vunpack.c.h.b16 %v191
    %v917 = vunpack.c.l.b16 %v192
    %v918 = vunpack.c.l.b16 %v193
    %v919 = vunpack.c.h.b16 %v193
    %v920 = vunpack.c.l.b16 %v194
    %v921 = vunpack.c.h.b16 %v194
    %v922 = vunpack.c.l.b16 %v195
    %v923 = vunpack.c.l.b16 %v196
    %v924 = vunpack.c.h.b16 %v196
    %v925 = vunpack.c.l.b16 %v197
    %v926 = vunpack.c.h.b16 %v197
    %v927 = vunpack.c.l.b16 %v198
    %v928 = vunpack.c.l.b16 %v199
    %v929 = vunpack.c.h.b16 %v199
    %v930 = vunpack.c.l.b16 %v200
    %v931 = vunpack.c.h.b16 %v200
    %v932 = vunpack.c.l.b16 %v201
    %v933 = vunpack.c.l.b16 %v202
    %v934 = vunpack.c.h.b16 %v202
    %v935 = vunpack.c.l.b16 %v203
    %v936 = vunpack.c.h.b16 %v203
    %v937 = vunpack.c.l.b16 %v204
    %v938 = vunpack.c.l.b16 %v205
    %v939 = vunpack.c.h.b16 %v205
    %v940 = vunpack.c.l.b16 %v206
    %v941 = vunpack.c.h.b16 %v206
    %v942 = vunpack.c.l.b16 %v207
    %v943 = vunpack.c.l.b16 %v208
    %v944 = vunpack.c.h.b16 %v208
    %v945 = vunpack.c.l.b16 %v209
    %v946 = vunpack.c.h.b16 %v209
    %v947 = vunpack.c.l.b16 %v210
    %v948 = vunpack.c.l.b16 %v211
    %v949 = vunpack.c.h.b16 %v211
    %v950 = vunpack.c.l.b16 %v212
    %v951 = vunpack.c.h.b16 %v212
    %v952 = vunpack.c.l.b16 %v213
    %v953 = vunpack.c.l.b16 %v214
    %v954 = vunpack.c.h.b16 %v214
    %v955 = vunpack.c.l.b16 %v215
    %v956 = vunpack.c.h.b16 %v215
    %v957 = vunpack.c.l.b16 %v216
    %v958 = vunpack.c.l.b16 %v217
    %v959 = vunpack.c.h.b16 %v217
    %v960 = vunpack.c.l.b16 %v218
    %v961 = vunpack.c.h.b16 %v218
    %v962 = vunpack.c.l.b16 %v219
    %v963 = vunpack.c.l.b16 %v220
    %v964 = vunpack.c.h.b16 %v220
    %v965 = vunpack.c.l.b16 %v221
    %v966 = vunpack.c.h.b16 %v221
    %v967 = vunpack.c.l.b16 %v222
    %v968 = vunpack.c.l.b16 %v223
    %v969 = vunpack.c.h.b16 %v223
    %v970 = vunpack.c.l.b16 %v224
    %v971 = vunpack.c.h.b16 %v224
    %v972 = vunpack.c.l.b16 %v225
    %v973 = vunpack.c.l.b16 %v226
    %v974 = vunpack.c.h.b16 %v226
    %v975 = vunpack.c.l.b16 %v227
    %v976 = vunpack.c.h.b16 %v227
    %v977 = vunpack.c.l.b16 %v228
    %v978 = vunpack.c.l.b16 %v229
    %v979 = vunpack.c.h.b16 %v229
    %v980 = vunpack.c.l.b16 %v230
    %v981 = vunpack.c.h.b16 %v230
    %v982 = vunpack.c.l.b16 %v231
    %v983 = vunpack.c.l.b16 %v232
    %v984 = vunpack.c.h.b16 %v232
    %v985 = vunpack.c.l.b16 %v233
    %v986 = vunpack.c.h.b16 %v233
    %v987 = vunpack.c.l.b16 %v234
    %v988 = vunpack.c.l.b16 %v235
    %v989 = vunpack.c.h.b16 %v235
    %v990 = vunpack.c.l.b16 %v236
    %v991 = vunpack.c.h.b16 %v236
    %v992 = vunpack.c.l.b16 %v237
    %v993 = vunpack.c.l.b16 %v238
    %v994 = vunpack.c.h.b16 %v238
    %v995 = vunpack.c.l.b16 %v239
    %v996 = vunpack.c.h.b16 %v239
    %v997 = vunpack.c.l.b16 %v240
    %v998 = vunpack.c.l.b16 %v241
    %v999 = vunpack.c.h.b16 %v241
    %v1000 = vunpack.c.l.b16 %v242
    %v1001 = vunpack.c.h.b16 %v242
    %v1002 = vunpack.c.l.b16 %v243
    %v1003 = vunpack.c.l.b16 %v244
    %v1004 = vunpack.c.h.b16 %v244
    %v1005 = vunpack.c.l.b16 %v245
    %v1006 = vunpack.c.h.b16 %v245
    %v1007 = vunpack.c.l.b16 %v246
    %v1008 = vunpack.c.l.b16 %v247
    %v1009 = vunpack.c.h.b16 %v247
    %v1010 = vunpack.c.l.b16 %v248
    %v1011 = vunpack.c.h.b16 %v248
    %v1012 = vunpack.c.l.b16 %v249
    %v1013 = vunpack.c.l.b16 %v250
    %v1014 = vunpack.c.h.b16 %v250
    %v1015 = vunpack.c.l.b16 %v251
    %v1016 = vunpack.c.h.b16 %v251
    %v1017 = vunpack.c.l.b16 %v252
    %v1018 = vunpack.c.l.b16 %v253
    %v1019 = vunpack.c.h.b16 %v253
    %v1020 = vunpack.c.l.b16 %v254
    %v1021 = vunpack.c.h.b16 %v254
    %v1022 = vunpack.c.l.b16 %v255
    %v1023 = vunpack.c.l.b16 %v256
    %v1024 = vunpack.c.h.b16 %v256
    %v1025 = vunpack.c.l.b16 %v257
    %v1026 = vunpack.c.h.b16 %v257
    %v1027 = vunpack.c.l.b16 %v258
    %v1028 = vunpack.c.l.b16 %v259
    %v1029 = vunpack.c.h.b16 %v259
    %v1030 = vunpack.c.l.b16 %v260
    %v1031 = vunpack.c.h.b16 %v260
    %v1032 = vunpack.c.l.b16 %v261
    %v1033 = vunpack.c.l.b16 %v262
    %v1034 = vunpack.c.h.b16 %v262
    %v1035 = vunpack.c.l.b16 %v263
    %v1036 = vunpack.c.h.b16 %v263
    %v1037 = vunpack.c.l.b16 %v264
    %v1038 = vunpack.c.l.b16 %v265
    %v1039 = vunpack.c.h.b16 %v265
    %v1040 = vunpack.c.l.b16 %v266
    %v1041 = vunpack.c.h.b16 %v266
    %v1042 = vunpack.c.l.b16 %v267
    %v1043 = vunpack.c.l.b16 %v268
    %v1044 = vunpack.c.h.b16 %v268
    %v1045 = vunpack.c.l.b16 %v269
    %v1046 = vunpack.c.h.b16 %v269
    %v1047 = vunpack.c.l.b16 %v270
    %v1048 = vunpack.c.l.b16 %v271
    %v1049 = vunpack.c.h.b16 %v271
    %v1050 = vunpack.c.l.b16 %v272
    %v1051 = vunpack.c.h.b16 %v272
    %v1052 = vunpack.c.l.b16 %v273
    %v1053 = vunpack.c.l.b16 %v274
    %v1054 = vunpack.c.h.b16 %v274
    %v1055 = vunpack.c.l.b16 %v275
    %v1056 = vunpack.c.h.b16 %v275
    %v1057 = vunpack.c.l.b16 %v276
    %v1058 = vunpack.c.l.b16 %v277
    %v1059 = vunpack.c.h.b16 %v277
    %v1060 = vunpack.c.l.b16 %v278
    %v1061 = vunpack.c.h.b16 %v278
    %v1062 = vunpack.c.l.b16 %v279
    %v1063 = vunpack.c.l.b16 %v280
    %v1064 = vunpack.c.h.b16 %v280
    %v1065 = vunpack.c.l.b16 %v281
    %v1066 = vunpack.c.h.b16 %v281
    %v1067 = vunpack.c.l.b16 %v282
    %v1068 = vunpack.c.l.b16 %v283
    %v1069 = vunpack.c.h.b16 %v283
    %v1070 = vunpack.c.l.b16 %v284
    %v1071 = vunpack.c.h.b16 %v284
    %v1072 = vunpack.c.l.b16 %v285
    %v1073 = vunpack.c.l.b16 %v286
    %v1074 = vunpack.c.h.b16 %v286
    %v1075 = vunpack.c.l.b16 %v287
    %v1076 = vunpack.c.h.b16 %v287
    %v1077 = vunpack.c.l.b16 %v288
    %v1078 = vunpack.c.l.b16 %v289
    %v1079 = vunpack.c.h.b16 %v289
    %v1080 = vunpack.c.l.b16 %v290
    %v1081 = vunpack.c.h.b16 %v290
    %v1082 = vunpack.c.l.b16 %v291
    %v1083 = vunpack.c.l.b16 %v292
    %v1084 = vunpack.c.h.b16 %v292
    %v1085 = vunpack.c.l.b16 %v293
    %v1086 = vunpack.c.h.b16 %v293
    %v1087 = vunpack.c.l.b16 %v294
    %v1088 = vunpack.c.l.b16 %v295
    %v1089 = vunpack.c.h.b16 %v295
    %v1090 = vunpack.c.l.b16 %v296
    %v1091 = vunpack.c.h.b16 %v296
    %v1092 = vunpack.c.l.b16 %v297
    %v1093 = vunpack.c.l.b16 %v298
    %v1094 = vunpack.c.h.b16 %v298
    %v1095 = vunpack.c.l.b16 %v299
    %v1096 = vunpack.c.h.b16 %v299
    %v1097 = vunpack.c.l.b16 %v300
    %v1098 = vunpack.c.l.b16 %v301
    %v1099 = vunpack.c.h.b16 %v301
    %v1100 = vunpack.c.l.b16 %v302
    %v1101 = vunpack.c.h.b16 %v302
    %v1102 = vunpack.c.l.b16 %v303
    %v1103 = vunpack.c.l.b16 %v304
    %v1104 = vunpack.c.h.b16 %v304
    %v1105 = vunpack.c.l.b16 %v305
    %v1106 = vunpack.c.h.b16 %v305
    %v1107 = vunpack.c.l.b16 %v306
    %v1108 = vunpack.c.l.b16 %v307
    %v1109 = vunpack.c.h.b16 %v307
    %v1110 = vunpack.c.l.b16 %v308
    %v1111 = vunpack.c.h.b16 %v308
    %v1112 = vunpack.c.l.b16 %v309
    %v1113 = vunpack.c.l.b16 %v310
    %v1114 = vunpack.c.h.b16 %v310
    %v1115 = vunpack.c.l.b16 %v311
    %v1116 = vunpack.c.h.b16 %v311
    %v1117 = vunpack.c.l.b16 %v312
    %v1118 = vunpack.c.l.b16 %v313
    %v1119 = vunpack.c.h.b16 %v313
    %v1120 = vunpack.c.l.b16 %v314
    %v1121 = vunpack.c.h.b16 %v314
    %v1122 = vunpack.c.l.b16 %v315
    %v1123 = vunpack.c.l.b16 %v316
    %v1124 = vunpack.c.h.b16 %v316
    %v1125 = vunpack.c.l.b16 %v317
    %v1126 = vunpack.c.h.b16 %v317
    %v1127 = vunpack.c.l.b16 %v318
    %v1128 = vunpack.c.l.b16 %v319
    %v1129 = vunpack.c.h.b16 %v319
    %v1130 = vunpack.c.l.b16 %v320
    %v1131 = vunpack.c.h.b16 %v320
    %v1132 = vunpack.c.l.b16 %v321
    %v1133 = vunpack.c.l.b16 %v322
    %v1134 = vunpack.c.h.b16 %v322
    %v1135 = vunpack.c.l.b16 %v323
    %v1136 = vunpack.c.h.b16 %v323
    %v1137 = vunpack.c.l.b16 %v324
    %v1138 = vunpack.c.l.b16 %v325
    %v1139 = vunpack.c.h.b16 %v325
    %v1140 = vunpack.c.l.b16 %v326
    %v1141 = vunpack.c.h.b16 %v326
    %v1142 = vunpack.c.l.b16 %v327
    %v1143 = vunpack.c.l.b16 %v328
    %v1144 = vunpack.c.h.b16 %v328
    %v1145 = vunpack.c.l.b16 %v329
    %v1146 = vunpack.c.h.b16 %v329
    %v1147 = vunpack.c.l.b16 %v330
    %v1148 = vunpack.c.l.b16 %v331
    %v1149 = vunpack.c.h.b16 %v331
    %v1150 = vunpack.c.l.b16 %v332
    %v1151 = vunpack.c.h.b16 %v332
    %v1152 = vunpack.c.l.b16 %v333
    %v1153 = vunpack.c.l.b16 %v334
    %v1154 = vunpack.c.h.b16 %v334
    %v1155 = vunpack.c.l.b16 %v335
    %v1156 = vunpack.c.h.b16 %v335
    %v1157 = vunpack.c.l.b16 %v336
    %v1158 = vunpack.c.l.b16 %v337
    %v1159 = vunpack.c.h.b16 %v337
    %v1160 = vunpack.c.l.b16 %v338
    %v1161 = vunpack.c.h.b16 %v338
    %v1162 = vunpack.c.l.b16 %v339
    %v1163 = vunpack.c.l.b16 %v340
    %v1164 = vunpack.c.h.b16 %v340
    %v1165 = vunpack.c.l.b16 %v341
    %v1166 = vunpack.c.h.b16 %v341
    %v1167 = vunpack.c.l.b16 %v342
    %v1168 = vunpack.c.l.b16 %v343
    %v1169 = vunpack.c.h.b16 %v343
    %v1170 = vunpack.c.l.b16 %v344
    %v1171 = vunpack.c.h.b16 %v344
    %v1172 = vunpack.c.l.b16 %v345
    %v1173 = vunpack.c.l.b16 %v346
    %v1174 = vunpack.c.h.b16 %v346
    %v1175 = vunpack.c.l.b16 %v347
    %v1176 = vunpack.c.h.b16 %v347
    %v1177 = vunpack.c.l.b16 %v348
    %v1178 = vunpack.c.l.b16 %v349
    %v1179 = vunpack.c.h.b16 %v349
    %v1180 = vunpack.c.l.b16 %v350
    %v1181 = vunpack.c.h.b16 %v350
    %v1182 = vunpack.c.l.b16 %v351
    %v1183 = vunpack.c.l.b16 %v352
    %v1184 = vunpack.c.h.b16 %v352
    %v1185 = vunpack.c.l.b16 %v353
    %v1186 = vunpack.c.h.b16 %v353
    %v1187 = vunpack.c.l.b16 %v354
    %v1188 = vunpack.c.l.b16 %v355
    %v1189 = vunpack.c.h.b16 %v355
    %v1190 = vunpack.c.l.b16 %v356
    %v1191 = vunpack.c.h.b16 %v356
    %v1192 = vunpack.c.l.b16 %v357
    %v1193 = vunpack.c.l.b16 %v358
    %v1194 = vunpack.c.h.b16 %v358
    %v1195 = vunpack.c.l.b16 %v359
    %v1196 = vunpack.c.h.b16 %v359
    %v1197 = vunpack.c.l.b16 %v360
    %v1198 = vunpack.c.l.b16 %v361
    %v1199 = vunpack.c.h.b16 %v361
    %v1200 = vunpack.c.l.b16 %v362
    %v1201 = vunpack.c.h.b16 %v362
    %v1202 = vunpack.c.l.b16 %v363
    %v1203 = vunpack.c.l.b16 %v364
    %v1204 = vunpack.c.h.b16 %v364
    %v1205 = vunpack.c.l.b16 %v365
    %v1206 = vunpack.c.h.b16 %v365
    %v1207 = vunpack.c.l.b16 %v366
    %v1208 = vunpack.c.l.b16 %v367
    %v1209 = vunpack.c.h.b16 %v367
    %v1210 = vunpack.c.l.b16 %v368
    %v1211 = vunpack.c.h.b16 %v368
    %v1212 = vunpack.c.l.b16 %v369
    %v1213 = vunpack.c.l.b16 %v370
    %v1214 = vunpack.c.h.b16 %v370
    %v1215 = vunpack.c.l.b16 %v371
    %v1216 = vunpack.c.h.b16 %v371
    %v1217 = vunpack.c.l.b16 %v372
    %v1218 = vunpack.c.l.b16 %v373
    %v1219 = vunpack.c.h.b16 %v373
    %v1220 = vunpack.c.l.b16 %v374
    %v1221 = vunpack.c.h.b16 %v374
    %v1222 = vunpack.c.l.b16 %v375
    %v1223 = vunpack.c.l.b16 %v376
    %v1224 = vunpack.c.h.b16 %v376
    %v1225 = vunpack.c.l.b16 %v377
    %v1226 = vunpack.c.h.b16 %v377
    %v1227 = vunpack.c.l.b16 %v378
    %v1228 = vpack.c.b16 %v753, %v748
    %v1229 = vpack.c.b16 %v754, %v749
    %v1230 = vpack.c.b16 %v755, %v750
    %v1231 = vpack.c.b16 %v756, %v751
    %v1232 = vpack.c.b16 %v757, %v752
    %v1233 = vpack.c.b16 %v763, %v758
    %v1234 = vpack.c.b16 %v764, %v759
    %v1235 = vpack.c.b16 %v765, %v760
    %v1236 = vpack.c.b16 %v766, %v761
    %v1237 = vpack.c.b16 %v767, %v762
    %v1238 = vpack.c.b16 %v773, %v768
    %v1239 = vpack.c.b16 %v774, %v769
    %v1240 = vpack.c.b16 %v775, %v770
    %v1241 = vpack.c.b16 %v776, %v771
    %v1242 = vpack.c.b16 %v777, %v772
    %v1243 = vpack.c.b16 %v783, %v778
    %v1244 = vpack.c.b16 %v784, %v779
    %v1245 = vpack.c.b16 %v785, %v780
    %v1246 = vpack.c.b16 %v786, %v781
    %v1247 = vpack.c.b16 %v787, %v782
    %v1248 = vpack.c.b16 %v793, %v788
    %v1249 = vpack.c.b16 %v794, %v789
    %v1250 = vpack.c.b16 %v795, %v790
    %v1251 = vpack.c.b16 %v796, %v791
    %v1252 = vpack.c.b16 %v797, %v792
    %v1253 = vpack.c.b16 %v803, %v798
    %v1254 = vpack.c.b16 %v804, %v799
    %v1255 = vpack.c.b16 %v805, %v800
    %v1256 = vpack.c.b16 %v806, %v801
    %v1257 = vpack.c.b16 %v807, %v802
    %v1258 = vpack.c.b16 %v813, %v808
    %v1259 = vpack.c.b16 %v814, %v809
    %v1260 = vpack.c.b16 %v815, %v810
    %v1261 = vpack.c.b16 %v816, %v811
    %v1262 = vpack.c.b16 %v817, %v812
    %v1263 = vpack.c.b16 %v823, %v818
    %v1264 = vpack.c.b16 %v824, %v819
    %v1265 = vpack.c.b16 %v825, %v820
    %v1266 = vpack.c.b16 %v826, %v821
    %v1267 = vpack.c.b16 %v827, %v822
    %v1268 = vpack.c.b16 %v833, %v828
    %v1269 = vpack.c.b16 %v834, %v829
    %v1270 = vpack.c.b16 %v835, %v830
    %v1271 = vpack.c.b16 %v836, %v831
    %v1272 = vpack.c.b16 %v837, %v832
    %v1273 = vpack.c.b16 %v843, %v838
    %v1274 = vpack.c.b16 %v844, %v839
    %v1275 = vpack.c.b16 %v845, %v840
    %v1276 = vpack.c.b16 %v846, %v841
    %v1277 = vpack.c.b16 %v847, %v842
    %v1278 = vpack.c.b16 %v853, %v848
    %v1279 = vpack.c.b16 %v854, %v849
    %v1280 = vpack.c.b16 %v855, %v850
    %v1281 = vpack.c.b16 %v856, %v851
    %v1282 = vpack.c.b16 %v857, %v852
    %v1283 = vpack.c.b16 %v863, %v858
    %v1284 = vpack.c.b16 %v864, %v859
    %v1285 = vpack.c.b16 %v865, %v860
    %v1286 = vpack.c.b16 %v866, %v861
    %v1287 = vpack.c.b16 %v867, %v862
    %v1288 = vpack.c.b16 %v873, %v868
    %v1289 = vpack.c.b16 %v874, %v869
    %v1290 = vpack.c.b16 %v875, %v870
    %v1291 = vpack.c.b16 %v876, %v871
    %v1292 = vpack.c.b16 %v877, %v872
    %v1293 = vpack.c.b16 %v883, %v878
    %v1294 = vpack.c.b16 %v884, %v879
    %v1295 = vpack.c.b16 %v885, %v880
    %v1296 = vpack.c.b16 %v886, %v881
    %v1297 = vpack.c.b16 %v887, %v882
    %v1298 = vpack.c.b16 %v893, %v888
    %v1299 = vpack.c.b16 %v894, %v889
    %v1300 = vpack.c.b16 %v895, %v890
    %v1301 = vpack.c.b16 %v896, %v891
    %v1302 = vpack.c.b16 %v897, %v892
    %v1303 = vpack.c.b16 %v903, %v898
    %v1304 = vpack.c.b16 %v904, %v899
    %v1305 = vpack.c.b16 %v905, %v900
    %v1306 = vpack.c.b16 %v906, %v901
    %v1307 = vpack.c.b16 %v907, %v902
    %v1308 = vpack.c.b16 %v913, %v908
    %v1309 = vpack.c.b16 %v914, %v909
    %v1310 = vpack.c.b16 %v915, %v910
    %v1311 = vpack.c.b16 %v916, %v911
    %v1312 = vpack.c.b16 %v917, %v912
    %v1313 = vpack.c.b16 %v923, %v918
    %v1314 = vpack.c.b16 %v924, %v919
    %v1315 = vpack.c.b16 %v925, %v920
    %v1316 = vpack.c.b16 %v926, %v921
    %v1317 = vpack.c.b16 %v927, %v922
    %v1318 = vpack.c.b16 %v933, %v928
    %v1319 = vpack.c.b16 %v934, %v929
    %v1320 = vpack.c.b16 %v935, %v930
    %v1321 = vpack.c.b16 %v936, %v931
    %v1322 = vpack.c.b16 %v937, %v932
    %v1323 = vpack.c.b16 %v943, %v938
    %v1324 = vpack.c.b16 %v944, %v939
    %v1325 = vpack.c.b16 %v945, %v940
    %v1326 = vpack.c.b16 %v946, %v941
    %v1327 = vpack.c.b16 %v947, %v942
    %v1328 = vpack.c.b16 %v953, %v948
    %v1329 = vpack.c.b16 %v954, %v949
    %v1330 = vpack.c.b16 %v955, %v950
    %v1331 = vpack.c.b16 %v956, %v951
    %v1332 = vpack.c.b16 %v957, %v952
    %v1333 = vpack.c.b16 %v963, %v958
    %v1334 = vpack.c.b16 %v964, %v959
    %v1335 = vpack.c.b16 %v965, %v960
    %v1336 = vpack.c.b16 %v966, %v961
    %v1337 = vpack.c.b16 %v967, %v962
    %v1338 = vpack.c.b16 %v973, %v968
    %v1339 = vpack.c.b16 %v974, %v969
    %v1340 = vpack.c.b16 %v975, %v970
    %v1341 = vpack.c.b16 %v976, %v971
    %v1342 = vpack.c.b16 %v977, %v972
    %v1343 = vpack.c.b16 %v983, %v978
    %v1344 = vpack.c.b16 %v984, %v979
    %v1345 = vpack.c.b16 %v985, %v980
    %v1346 = vpack.c.b16 %v986, %v981
    %v1347 = vpack.c.b16 %v987, %v982
    %v1348 = vpack.c.b16 %v993, %v988
    %v1349 = vpack.c.b16 %v994, %v989
    %v1350 = vpack.c.b16 %v995, %v990
    %v1351 = vpack.c.b16 %v996, %v991
    %v1352 = vpack.c.b16 %v997, %v992
    %v1353 = vpack.c.b16 %v1003, %v998
    %v1354 = vpack.c.b16 %v1004, %v999
    %v1355 = vpack.c.b16 %v1005, %v1000
    %v1356 = vpack.c.b16 %v1006, %v1001
    %v1357 = vpack.c.b16 %v1007, %v1002
    %v1358 = vpack.c.b16 %v1013, %v1008
    %v1359 = vpack.c.b16 %v1014, %v1009
    %v1360 = vpack.c.b16 %v1015, %v1010
    %v1361 = vpack.c.b16 %v1016, %v1011
    %v1362 = vpack.c.b16 %v1017, %v1012
    %v1363 = vpack.c.b16 %v1023, %v1018
    %v1364 = vpack.c.b16 %v1024, %v1019
    %v1365 = vpack.c.b16 %v1025, %v1020
    %v1366 = vpack.c.b16 %v1026, %v1021
    %v1367 = vpack.c.b16 %v1027, %v1022
    %v1368 = vpack.c.b16 %v1033, %v1028
    %v1369 = vpack.c.b16 %v1034, %v1029
    %v1370 = vpack.c.b16 %v1035, %v1030
    %v1371 = vpack.c.b16 %v1036, %v1031
    %v1372 = vpack.c.b16 %v1037, %v1032
    %v1373 = vpack.c.b16 %v1043, %v1038
    %v1374 = vpack.c.b16 %v1044, %v1039
    %v1375 = vpack.c.b16 %v1045, %v1040
    %v1376 = vpack.c.b16 %v1046, %v1041
    %v1377 = vpack.c.b16 %v1047, %v1042
    %v1378 = vpack.c.b16 %v1053, %v1048
    %v1379 = vpack.c.b16 %v1054, %v1049
    %v1380 = vpack.c.b16 %v1055, %v1050
    %v1381 = vpack.c.b16 %v1056, %v1051
    %v1382 = vpack.c.b16 %v1057, %v1052
    %v1383 = vpack.c.b16 %v1063, %v1058
    %v1384 = vpack.c.b16 %v1064, %v1059
    %v1385 = vpack.c.b16 %v1065, %v1060
    %v1386 = vpack.c.b16 %v1066, %v1061
    %v1387 = vpack.c.b16 %v1067, %v1062
    %v1388 = vpack.c.b16 %v1073, %v1068
    %v1389 = vpack.c.b16 %v1074, %v1069
    %v1390 = vpack.c.b16 %v1075, %v1070
    %v1391 = vpack.c.b16 %v1076, %v1071
    %v1392 = vpack.c.b16 %v1077, %v1072
    %v1393 = vpack.c.b16 %v1083, %v1078
    %v1394 = vpack.c.b16 %v1084, %v1079
    %v1395 = vpack.c.b16 %v1085, %v1080
    %v1396 = vpack.c.b16 %v1086, %v1081
    %v1397 = vpack.c.b16 %v1087, %v1082
    %v1398 = vpack.c.b16 %v1093, %v1088
    %v1399 = vpack.c.b16 %v1094, %v1089
    %v1400 = vpack.c.b16 %v1095, %v1090
    %v1401 = vpack.c.b16 %v1096, %v1091
    %v1402 = vpack.c.b16 %v1097, %v1092
    %v1403 = vpack.c.b16 %v1103, %v1098
    %v1404 = vpack.c.b16 %v1104, %v1099
    %v1405 = vpack.c.b16 %v1105, %v1100
    %v1406 = vpack.c.b16 %v1106, %v1101
    %v1407 = vpack.c.b16 %v1107, %v1102
    %v1408 = vpack.c.b16 %v1113, %v1108
    %v1409 = vpack.c.b16 %v1114, %v1109
    %v1410 = vpack.c.b16 %v1115, %v1110
    %v1411 = vpack.c.b16 %v1116, %v1111
    %v1412 = vpack.c.b16 %v1117, %v1112
    %v1413 = vpack.c.b16 %v1123, %v1118
    %v1414 = vpack.c.b16 %v1124, %v1119
    %v1415 = vpack.c.b16 %v1125, %v1120
    %v1416 = vpack.c.b16 %v1126, %v1121
    %v1417 = vpack.c.b16 %v1127, %v1122
    %v1418 = vpack.c.b16 %v1133, %v1128
    %v1419 = vpack.c.b16 %v1134, %v1129
    %v1420 = vpack.c.b16 %v1135, %v1130
    %v1421 = vpack.c.b16 %v1136, %v1131
    %v1422 = vpack.c.b16 %v1137, %v1132
    %v1423 = vpack.c.b16 %v1143, %v1138
    %v1424 = vpack.c.b16 %v1144, %v1139
    %v1425 = vpack.c.b16 %v1145, %v1140
    %v1426 = vpack.c.b16 %v1146, %v1141
    %v1427 = vpack.c.b16 %v1147, %v1142
    %v1428 = vpack.c.b16 %v1153, %v1148
    %v1429 = vpack.c.b16 %v1154, %v1149
    %v1430 = vpack.c.b16 %v1155, %v1150
    %v1431 = vpack.c.b16 %v1156, %v1151
    %v1432 = vpack.c.b16 %v1157, %v1152
    %v1433 = vpack.c.b16 %v1163, %v1158
    %v1434 = vpack.c.b16 %v1164, %v1159
    %v1435 = vpack.c.b16 %v1165, %v1160
    %v1436 = vpack.c.b16 %v1166, %v1161
    %v1437 = vpack.c.b16 %v1167, %v1162
    %v1438 = vpack.c.b16 %v1173, %v1168
    %v1439 = vpack.c.b16 %v1174, %v1169
    %v1440 = vpack.c.b16 %v1175, %v1170
    %v1441 = vpack.c.b16 %v1176, %v1171
    %v1442 = vpack.c.b16 %v1177, %v1172
    %v1443 = vpack.c.b16 %v1183, %v1178
    %v1444 = vpack.c.b16 %v1184, %v1179
    %v1445 = vpack.c.b16 %v1185, %v1180
    %v1446 = vpack.c.b16 %v1186, %v1181
    %v1447 = vpack.c.b16 %v1187, %v1182
    %v1448 = vpack.c.b16 %v1193, %v1188
    %v1449 = vpack.c.b16 %v1194, %v1189
    %v1450 = vpack.c.b16 %v1195, %v1190
    %v1451 = vpack.c.b16 %v1196, %v1191
    %v1452 = vpack.c.b16 %v1197, %v1192
    %v1453 = vpack.c.b16 %v1203, %v1198
    %v1454 = vpack.c.b16 %v1204, %v1199
    %v1455 = vpack.c.b16 %v1205, %v1200
    %v1456 = vpack.c.b16 %v1206, %v1201
    %v1457 = vpack.c.b16 %v1207, %v1202
    %v1458 = vpack.c.b16 %v1213, %v1208
    %v1459 = vpack.c.b16 %v1214, %v1209
    %v1460 = vpack.c.b16 %v1215, %v1210
    %v1461 = vpack.c.b16 %v1216, %v1211
    %v1462 = vpack.c.b16 %v1217, %v1212
    %v1463 = vpack.c.b16 %v1223, %v1218
    %v1464 = vpack.c.b16 %v1224, %v1219
    %v1465 = vpack.c.b16 %v1225, %v1220
    %v1466 = vpack.c.b16 %v1226, %v1221
    %v1467 = vpack.c.b16 %v1227, %v1222
    %1708 = vmatprep.subr.bf16.mxu0 %v1264
    %1709 = vmatpush1.bf16.msra.mxu0 %v1263
    %1710 = vmatprep.subr.bf16.mxu0 %v1259
    %1711 = vmatpush1.bf16.msra.mxu0 %v1258
    %1712 = vmatprep.subr.bf16.mxu0 %v1254
    %1713 = vmatpush1.bf16.msra.mxu0 %v1253
    %1714 = vmatprep.subr.bf16.mxu0 %v1249
    %1715 = vmatpush1.bf16.msra.mxu0 %v1248
    %1716 = vmatprep.subr.bf16.mxu0 %v1244
    %1717 = vmatpush1.bf16.msra.mxu0 %v1243
    %1718 = vmatprep.subr.bf16.mxu0 %v1239
    %1719 = vmatpush1.bf16.msra.mxu0 %v1238
    %1720 = vmatprep.subr.bf16.mxu0 %v1234
    %1721 = vmatpush1.bf16.msra.mxu0 %v1233
    %1722 = vmatprep.subr.bf16.mxu0 %v1229
    %1723 = vmatpush1.bf16.msra.mxu0 %v1228
    %1724 = vmatprep.subr.bf16.mxu0 %v1304
    %1725 = vmatpush2.bf16.msra.mxu0 %v1303
    %1726 = vmatprep.subr.bf16.mxu0 %v1299
    %1727 = vmatpush2.bf16.msra.mxu0 %v1298
    %1728 = vmatprep.subr.bf16.mxu0 %v1294
    %1729 = vmatpush2.bf16.msra.mxu0 %v1293
    %1730 = vmatprep.subr.bf16.mxu0 %v1289
    %1731 = vmatpush2.bf16.msra.mxu0 %v1288
    %1732 = vmatprep.subr.bf16.mxu0 %v1284
    %1733 = vmatpush2.bf16.msra.mxu0 %v1283
    %1734 = vmatprep.subr.bf16.mxu0 %v1279
    %1735 = vmatpush2.bf16.msra.mxu0 %v1278
    %1736 = vmatprep.subr.bf16.mxu0 %v1274
    %1737 = vmatpush2.bf16.msra.mxu0 %v1273
    %1738 = vmatprep.subr.bf16.mxu0 %v1269
    %1739 = vmatpush2.bf16.msra.mxu0 %v1268
    %1740 = vmatprep.mubr.bf16.mxu0 %v444
    %1741 = vmatmul.mubr.bf16.gmra.mxu0 %v430
    %v1742 = vpop.f32.mrf.mxu0
    %v1743 = vadd.f32 %v384, %v1742
    %v1744 = vpop.f32.mrf.mxu0
    %v1745 = vadd.f32 %v388, %v1744
    %v1746 = vpop.f32.mrf.mxu0
    %v1747 = vpop.f32.mrf.mxu0
    %1748 = vdwg.mxu0
    %1749 = vmatprep.subr.bf16.mxu0 %v1344
    %1750 = vmatpush1.bf16.msra.mxu0 %v1343
    %1751 = vmatprep.subr.bf16.mxu0 %v1339
    %1752 = vmatpush1.bf16.msra.mxu0 %v1338
    %1753 = vmatprep.subr.bf16.mxu0 %v1334
    %1754 = vmatpush1.bf16.msra.mxu0 %v1333
    %1755 = vmatprep.subr.bf16.mxu0 %v1329
    %1756 = vmatpush1.bf16.msra.mxu0 %v1328
    %1757 = vmatprep.subr.bf16.mxu0 %v1324
    %1758 = vmatpush1.bf16.msra.mxu0 %v1323
    %1759 = vmatprep.subr.bf16.mxu0 %v1319
    %1760 = vmatpush1.bf16.msra.mxu0 %v1318
    %1761 = vmatprep.subr.bf16.mxu0 %v1314
    %1762 = vmatpush1.bf16.msra.mxu0 %v1313
    %1763 = vmatprep.subr.bf16.mxu0 %v1309
    %1764 = vmatpush1.bf16.msra.mxu0 %v1308
    %1765 = vmatprep.subr.bf16.mxu0 %v1384
    %1766 = vmatpush2.bf16.msra.mxu0 %v1383
    %1767 = vmatprep.subr.bf16.mxu0 %v1379
    %1768 = vmatpush2.bf16.msra.mxu0 %v1378
    %1769 = vmatprep.subr.bf16.mxu0 %v1374
    %1770 = vmatpush2.bf16.msra.mxu0 %v1373
    %1771 = vmatprep.subr.bf16.mxu0 %v1369
    %1772 = vmatpush2.bf16.msra.mxu0 %v1368
    %1773 = vmatprep.subr.bf16.mxu0 %v1364
    %1774 = vmatpush2.bf16.msra.mxu0 %v1363
    %1775 = vmatprep.subr.bf16.mxu0 %v1359
    %1776 = vmatpush2.bf16.msra.mxu0 %v1358
    %1777 = vmatprep.subr.bf16.mxu0 %v1354
    %1778 = vmatpush2.bf16.msra.mxu0 %v1353
    %1779 = vmatprep.subr.bf16.mxu0 %v1349
    %1780 = vmatpush2.bf16.msra.mxu0 %v1348
    %1781 = vmatprep.mubr.bf16.mxu0 %v453
    %1782 = vmatmul.mubr.bf16.gmra.mxu0 %v452
    %v1783 = vpop.f32.mrf.mxu0
    %v1784 = vadd.f32 %v1743, %v1783
    %v1785 = vpop.f32.mrf.mxu0
    %v1786 = vadd.f32 %v1745, %v1785
    %v1787 = vpop.f32.mrf.mxu0
    %v1788 = vpop.f32.mrf.mxu0
    %1789 = vdwg.mxu0
    %1790 = vmatprep.subr.bf16.mxu0 %v1424
    %1791 = vmatpush1.bf16.msra.mxu0 %v1423
    %1792 = vmatprep.subr.bf16.mxu0 %v1419
    %1793 = vmatpush1.bf16.msra.mxu0 %v1418
    %1794 = vmatprep.subr.bf16.mxu0 %v1414
    %1795 = vmatpush1.bf16.msra.mxu0 %v1413
    %1796 = vmatprep.subr.bf16.mxu0 %v1409
    %1797 = vmatpush1.bf16.msra.mxu0 %v1408
    %1798 = vmatprep.subr.bf16.mxu0 %v1404
    %1799 = vmatpush1.bf16.msra.mxu0 %v1403
    %1800 = vmatprep.subr.bf16.mxu0 %v1399
    %1801 = vmatpush1.bf16.msra.mxu0 %v1398
    %1802 = vmatprep.subr.bf16.mxu0 %v1394
    %1803 = vmatpush1.bf16.msra.mxu0 %v1393
    %1804 = vmatprep.subr.bf16.mxu0 %v1389
    %1805 = vmatpush1.bf16.msra.mxu0 %v1388
    %1806 = vmatprep.subr.bf16.mxu0 %v1464
    %1807 = vmatpush2.bf16.msra.mxu0 %v1463
    %1808 = vmatprep.subr.bf16.mxu0 %v1459
    %1809 = vmatpush2.bf16.msra.mxu0 %v1458
    %1810 = vmatprep.subr.bf16.mxu0 %v1454
    %1811 = vmatpush2.bf16.msra.mxu0 %v1453
    %1812 = vmatprep.subr.bf16.mxu0 %v1449
    %1813 = vmatpush2.bf16.msra.mxu0 %v1448
    %1814 = vmatprep.subr.bf16.mxu0 %v1444
    %1815 = vmatpush2.bf16.msra.mxu0 %v1443
    %1816 = vmatprep.subr.bf16.mxu0 %v1439
    %1817 = vmatpush2.bf16.msra.mxu0 %v1438
    %1818 = vmatprep.subr.bf16.mxu0 %v1434
    %1819 = vmatpush2.bf16.msra.mxu0 %v1433
    %1820 = vmatprep.subr.bf16.mxu0 %v1429
    %1821 = vmatpush2.bf16.msra.mxu0 %v1428
    %1822 = vmatprep.mubr.bf16.mxu0 %v451
    %1823 = vmatmul.mubr.bf16.gmra.mxu0 %v437
    %v1824 = vpop.f32.mrf.mxu0
    %v1825 = vadd.f32 %v1784, %v1824
    %v1826 = vpop.f32.mrf.mxu0
    %v1827 = vadd.f32 %v1786, %v1826
    %v1828 = vpop.f32.mrf.mxu0
    %v1829 = vpop.f32.mrf.mxu0
    %1830 = vdwg.mxu0
    %1831 = vmatprep.subr.bf16.mxu0 %v1266
    %1832 = vmatpush1.bf16.msra.mxu0 %v1265
    %1833 = vmatprep.subr.bf16.mxu0 %v1261
    %1834 = vmatpush1.bf16.msra.mxu0 %v1260
    %1835 = vmatprep.subr.bf16.mxu0 %v1256
    %1836 = vmatpush1.bf16.msra.mxu0 %v1255
    %1837 = vmatprep.subr.bf16.mxu0 %v1251
    %1838 = vmatpush1.bf16.msra.mxu0 %v1250
    %1839 = vmatprep.subr.bf16.mxu0 %v1246
    %1840 = vmatpush1.bf16.msra.mxu0 %v1245
    %1841 = vmatprep.subr.bf16.mxu0 %v1241
    %1842 = vmatpush1.bf16.msra.mxu0 %v1240
    %1843 = vmatprep.subr.bf16.mxu0 %v1236
    %1844 = vmatpush1.bf16.msra.mxu0 %v1235
    %1845 = vmatprep.subr.bf16.mxu0 %v1231
    %1846 = vmatpush1.bf16.msra.mxu0 %v1230
    %1847 = vmatprep.subr.bf16.mxu0 %v1306
    %1848 = vmatpush2.bf16.msra.mxu0 %v1305
    %1849 = vmatprep.subr.bf16.mxu0 %v1301
    %1850 = vmatpush2.bf16.msra.mxu0 %v1300
    %1851 = vmatprep.subr.bf16.mxu0 %v1296
    %1852 = vmatpush2.bf16.msra.mxu0 %v1295
    %1853 = vmatprep.subr.bf16.mxu0 %v1291
    %1854 = vmatpush2.bf16.msra.mxu0 %v1290
    %1855 = vmatprep.subr.bf16.mxu0 %v1286
    %1856 = vmatpush2.bf16.msra.mxu0 %v1285
    %1857 = vmatprep.subr.bf16.mxu0 %v1281
    %1858 = vmatpush2.bf16.msra.mxu0 %v1280
    %1859 = vmatprep.subr.bf16.mxu0 %v1276
    %1860 = vmatpush2.bf16.msra.mxu0 %v1275
    %1861 = vmatprep.subr.bf16.mxu0 %v1271
    %1862 = vmatpush2.bf16.msra.mxu0 %v1270
    %1863 = vmatprep.mubr.bf16.mxu0 %v444
    %1864 = vmatmul.mubr.bf16.gmra.mxu0 %v430
    %v1865 = vpop.f32.mrf.mxu0
    %v1866 = vadd.f32 %v392, %v1865
    %v1867 = vpop.f32.mrf.mxu0
    %v1868 = vadd.f32 %v396, %v1867
    %v1869 = vpop.f32.mrf.mxu0
    %v1870 = vpop.f32.mrf.mxu0
    %1871 = vdwg.mxu0
    %1872 = vmatprep.subr.bf16.mxu0 %v1346
    %1873 = vmatpush1.bf16.msra.mxu0 %v1345
    %1874 = vmatprep.subr.bf16.mxu0 %v1341
    %1875 = vmatpush1.bf16.msra.mxu0 %v1340
    %1876 = vmatprep.subr.bf16.mxu0 %v1336
    %1877 = vmatpush1.bf16.msra.mxu0 %v1335
    %1878 = vmatprep.subr.bf16.mxu0 %v1331
    %1879 = vmatpush1.bf16.msra.mxu0 %v1330
    %1880 = vmatprep.subr.bf16.mxu0 %v1326
    %1881 = vmatpush1.bf16.msra.mxu0 %v1325
    %1882 = vmatprep.subr.bf16.mxu0 %v1321
    %1883 = vmatpush1.bf16.msra.mxu0 %v1320
    %1884 = vmatprep.subr.bf16.mxu0 %v1316
    %1885 = vmatpush1.bf16.msra.mxu0 %v1315
    %1886 = vmatprep.subr.bf16.mxu0 %v1311
    %1887 = vmatpush1.bf16.msra.mxu0 %v1310
    %1888 = vmatprep.subr.bf16.mxu0 %v1386
    %1889 = vmatpush2.bf16.msra.mxu0 %v1385
    %1890 = vmatprep.subr.bf16.mxu0 %v1381
    %1891 = vmatpush2.bf16.msra.mxu0 %v1380
    %1892 = vmatprep.subr.bf16.mxu0 %v1376
    %1893 = vmatpush2.bf16.msra.mxu0 %v1375
    %1894 = vmatprep.subr.bf16.mxu0 %v1371
    %1895 = vmatpush2.bf16.msra.mxu0 %v1370
    %1896 = vmatprep.subr.bf16.mxu0 %v1366
    %1897 = vmatpush2.bf16.msra.mxu0 %v1365
    %1898 = vmatprep.subr.bf16.mxu0 %v1361
    %1899 = vmatpush2.bf16.msra.mxu0 %v1360
    %1900 = vmatprep.subr.bf16.mxu0 %v1356
    %1901 = vmatpush2.bf16.msra.mxu0 %v1355
    %1902 = vmatprep.subr.bf16.mxu0 %v1351
    %1903 = vmatpush2.bf16.msra.mxu0 %v1350
    %1904 = vmatprep.mubr.bf16.mxu0 %v453
    %1905 = vmatmul.mubr.bf16.gmra.mxu0 %v452
    %v1906 = vpop.f32.mrf.mxu0
    %v1907 = vadd.f32 %v1866, %v1906
    %v1908 = vpop.f32.mrf.mxu0
    %v1909 = vadd.f32 %v1868, %v1908
    %v1910 = vpop.f32.mrf.mxu0
    %v1911 = vpop.f32.mrf.mxu0
    %1912 = vdwg.mxu0
    %1913 = vmatprep.subr.bf16.mxu0 %v1426
    %1914 = vmatpush1.bf16.msra.mxu0 %v1425
    %1915 = vmatprep.subr.bf16.mxu0 %v1421
    %1916 = vmatpush1.bf16.msra.mxu0 %v1420
    %1917 = vmatprep.subr.bf16.mxu0 %v1416
    %1918 = vmatpush1.bf16.msra.mxu0 %v1415
    %1919 = vmatprep.subr.bf16.mxu0 %v1411
    %1920 = vmatpush1.bf16.msra.mxu0 %v1410
    %1921 = vmatprep.subr.bf16.mxu0 %v1406
    %1922 = vmatpush1.bf16.msra.mxu0 %v1405
    %1923 = vmatprep.subr.bf16.mxu0 %v1401
    %1924 = vmatpush1.bf16.msra.mxu0 %v1400
    %1925 = vmatprep.subr.bf16.mxu0 %v1396
    %1926 = vmatpush1.bf16.msra.mxu0 %v1395
    %1927 = vmatprep.subr.bf16.mxu0 %v1391
    %1928 = vmatpush1.bf16.msra.mxu0 %v1390
    %1929 = vmatprep.subr.bf16.mxu0 %v1466
    %1930 = vmatpush2.bf16.msra.mxu0 %v1465
    %1931 = vmatprep.subr.bf16.mxu0 %v1461
    %1932 = vmatpush2.bf16.msra.mxu0 %v1460
    %1933 = vmatprep.subr.bf16.mxu0 %v1456
    %1934 = vmatpush2.bf16.msra.mxu0 %v1455
    %1935 = vmatprep.subr.bf16.mxu0 %v1451
    %1936 = vmatpush2.bf16.msra.mxu0 %v1450
    %1937 = vmatprep.subr.bf16.mxu0 %v1446
    %1938 = vmatpush2.bf16.msra.mxu0 %v1445
    %1939 = vmatprep.subr.bf16.mxu0 %v1441
    %1940 = vmatpush2.bf16.msra.mxu0 %v1440
    %1941 = vmatprep.subr.bf16.mxu0 %v1436
    %1942 = vmatpush2.bf16.msra.mxu0 %v1435
    %1943 = vmatprep.subr.bf16.mxu0 %v1431
    %1944 = vmatpush2.bf16.msra.mxu0 %v1430
    %1945 = vmatprep.mubr.bf16.mxu0 %v451
    %1946 = vmatmul.mubr.bf16.gmra.mxu0 %v437
    %v1947 = vpop.f32.mrf.mxu0
    %v1948 = vadd.f32 %v1907, %v1947
    %v1949 = vpop.f32.mrf.mxu0
    %v1950 = vadd.f32 %v1909, %v1949
    %v1951 = vpop.f32.mrf.mxu0
    %v1952 = vpop.f32.mrf.mxu0
    %1953 = vdwg.mxu0
    %1954 = vmatprep.subr.bf16.mxu0 0
    %1955 = vmatpush1.bf16.msra.mxu0 %v1267
    %1956 = vmatprep.subr.bf16.mxu0 0
    %1957 = vmatpush1.bf16.msra.mxu0 %v1262
    %1958 = vmatprep.subr.bf16.mxu0 0
    %1959 = vmatpush1.bf16.msra.mxu0 %v1257
    %1960 = vmatprep.subr.bf16.mxu0 0
    %1961 = vmatpush1.bf16.msra.mxu0 %v1252
    %1962 = vmatprep.subr.bf16.mxu0 0
    %1963 = vmatpush1.bf16.msra.mxu0 %v1247
    %1964 = vmatprep.subr.bf16.mxu0 0
    %1965 = vmatpush1.bf16.msra.mxu0 %v1242
    %1966 = vmatprep.subr.bf16.mxu0 0
    %1967 = vmatpush1.bf16.msra.mxu0 %v1237
    %1968 = vmatprep.subr.bf16.mxu0 0
    %1969 = vmatpush1.bf16.msra.mxu0 %v1232
    %1970 = vmatprep.subr.bf16.mxu0 0
    %1971 = vmatpush2.bf16.msra.mxu0 %v1307
    %1972 = vmatprep.subr.bf16.mxu0 0
    %1973 = vmatpush2.bf16.msra.mxu0 %v1302
    %1974 = vmatprep.subr.bf16.mxu0 0
    %1975 = vmatpush2.bf16.msra.mxu0 %v1297
    %1976 = vmatprep.subr.bf16.mxu0 0
    %1977 = vmatpush2.bf16.msra.mxu0 %v1292
    %1978 = vmatprep.subr.bf16.mxu0 0
    %1979 = vmatpush2.bf16.msra.mxu0 %v1287
    %1980 = vmatprep.subr.bf16.mxu0 0
    %1981 = vmatpush2.bf16.msra.mxu0 %v1282
    %1982 = vmatprep.subr.bf16.mxu0 0
    %1983 = vmatpush2.bf16.msra.mxu0 %v1277
    %1984 = vmatprep.subr.bf16.mxu0 0
    %1985 = vmatpush2.bf16.msra.mxu0 %v1272
    %1986 = vmatprep.mubr.bf16.mxu0 %v444
    %1987 = vmatmul.mubr.bf16.gmra.mxu0 %v430
    %v1988 = vpop.f32.mrf.mxu0
    %v1989 = vadd.f32 %v400, %v1988
    %v1990 = vpop.f32.mrf.mxu0
    %v1991 = vpop.f32.mrf.mxu0
    %v1992 = vpop.f32.mrf.mxu0
    %1993 = vdwg.mxu0
    %1994 = vmatprep.subr.bf16.mxu0 0
    %1995 = vmatpush1.bf16.msra.mxu0 %v1347
    %1996 = vmatprep.subr.bf16.mxu0 0
    %1997 = vmatpush1.bf16.msra.mxu0 %v1342
    %1998 = vmatprep.subr.bf16.mxu0 0
    %1999 = vmatpush1.bf16.msra.mxu0 %v1337
    %2000 = vmatprep.subr.bf16.mxu0 0
    %2001 = vmatpush1.bf16.msra.mxu0 %v1332
    %2002 = vmatprep.subr.bf16.mxu0 0
    %2003 = vmatpush1.bf16.msra.mxu0 %v1327
    %2004 = vmatprep.subr.bf16.mxu0 0
    %2005 = vmatpush1.bf16.msra.mxu0 %v1322
    %2006 = vmatprep.subr.bf16.mxu0 0
    %2007 = vmatpush1.bf16.msra.mxu0 %v1317
    %2008 = vmatprep.subr.bf16.mxu0 0
    %2009 = vmatpush1.bf16.msra.mxu0 %v1312
    %2010 = vmatprep.subr.bf16.mxu0 0
    %2011 = vmatpush2.bf16.msra.mxu0 %v1387
    %2012 = vmatprep.subr.bf16.mxu0 0
    %2013 = vmatpush2.bf16.msra.mxu0 %v1382
    %2014 = vmatprep.subr.bf16.mxu0 0
    %2015 = vmatpush2.bf16.msra.mxu0 %v1377
    %2016 = vmatprep.subr.bf16.mxu0 0
    %2017 = vmatpush2.bf16.msra.mxu0 %v1372
    %2018 = vmatprep.subr.bf16.mxu0 0
    %2019 = vmatpush2.bf16.msra.mxu0 %v1367
    %2020 = vmatprep.subr.bf16.mxu0 0
    %2021 = vmatpush2.bf16.msra.mxu0 %v1362
    %2022 = vmatprep.subr.bf16.mxu0 0
    %2023 = vmatpush2.bf16.msra.mxu0 %v1357
    %2024 = vmatprep.subr.bf16.mxu0 0
    %2025 = vmatpush2.bf16.msra.mxu0 %v1352
    %2026 = vmatprep.mubr.bf16.mxu0 %v453
    %2027 = vmatmul.mubr.bf16.gmra.mxu0 %v452
    %v2028 = vpop.f32.mrf.mxu0
    %v2029 = vadd.f32 %v1989, %v2028
    %v2030 = vpop.f32.mrf.mxu0
    %v2031 = vpop.f32.mrf.mxu0
    %v2032 = vpop.f32.mrf.mxu0
    %2033 = vdwg.mxu0
    %2034 = vmatprep.subr.bf16.mxu0 0
    %2035 = vmatpush1.bf16.msra.mxu0 %v1427
    %2036 = vmatprep.subr.bf16.mxu0 0
    %2037 = vmatpush1.bf16.msra.mxu0 %v1422
    %2038 = vmatprep.subr.bf16.mxu0 0
    %2039 = vmatpush1.bf16.msra.mxu0 %v1417
    %2040 = vmatprep.subr.bf16.mxu0 0
    %2041 = vmatpush1.bf16.msra.mxu0 %v1412
    %2042 = vmatprep.subr.bf16.mxu0 0
    %2043 = vmatpush1.bf16.msra.mxu0 %v1407
    %2044 = vmatprep.subr.bf16.mxu0 0
    %2045 = vmatpush1.bf16.msra.mxu0 %v1402
    %2046 = vmatprep.subr.bf16.mxu0 0
    %2047 = vmatpush1.bf16.msra.mxu0 %v1397
    %2048 = vmatprep.subr.bf16.mxu0 0
    %2049 = vmatpush1.bf16.msra.mxu0 %v1392
    %2050 = vmatprep.subr.bf16.mxu0 0
    %2051 = vmatpush2.bf16.msra.mxu0 %v1467
    %2052 = vmatprep.subr.bf16.mxu0 0
    %2053 = vmatpush2.bf16.msra.mxu0 %v1462
    %2054 = vmatprep.subr.bf16.mxu0 0
    %2055 = vmatpush2.bf16.msra.mxu0 %v1457
    %2056 = vmatprep.subr.bf16.mxu0 0
    %2057 = vmatpush2.bf16.msra.mxu0 %v1452
    %2058 = vmatprep.subr.bf16.mxu0 0
    %2059 = vmatpush2.bf16.msra.mxu0 %v1447
    %2060 = vmatprep.subr.bf16.mxu0 0
    %2061 = vmatpush2.bf16.msra.mxu0 %v1442
    %2062 = vmatprep.subr.bf16.mxu0 0
    %2063 = vmatpush2.bf16.msra.mxu0 %v1437
    %2064 = vmatprep.subr.bf16.mxu0 0
    %2065 = vmatpush2.bf16.msra.mxu0 %v1432
    %2066 = vmatprep.mubr.bf16.mxu0 %v451
    %2067 = vmatmul.mubr.bf16.gmra.mxu0 %v437
    %v2068 = vpop.f32.mrf.mxu0
    %v2069 = vadd.f32 %v2029, %v2068
    %v2070 = vpop.f32.mrf.mxu0
    %v2071 = vpop.f32.mrf.mxu0
    %v2072 = vpop.f32.mrf.mxu0
    %2073 = vdwg.mxu0
    %v2074 = vmax.f32 %v1825, 0.0
    %v2075 = vmax.f32 %v1827, 0.0
    %v2076 = vmax.f32 %v1948, 0.0
    %v2077 = vmax.f32 %v1950, 0.0
    %v2078 = vpack.c.bf16 %v2074, %v2074
    %v2079 = vpack.c.bf16 %v2075, %v2075
    %v2080 = vpack.c.bf16 %v2076, %v2076
    %v2081 = vpack.c.bf16 %v2077, %v2077
    %v2082 = vld [vmem:[#allocation8] sm:$0xf]
    %v2083 = vld [vmem:[#allocation8 + $0x4] sm:$0xf]
    %v2084 = vld [vmem:[#allocation8 + $0x8] sm:$0xf]
    %v2085 = vld [vmem:[#allocation8 + $0xc] sm:$0xf]
    %v2086 = vld [vmem:[#allocation8 + $0x10] sm:$0xf]
    %v2087 = vld [vmem:[#allocation8 + $0x14] sm:$0xf]
    %v2088 = vld [vmem:[#allocation8 + $0x18] sm:$0xf]
    %v2089 = vld [vmem:[#allocation8 + $0x1c] sm:$0xf]
    %v2090 = vld [vmem:[#allocation8 + $0x20] sm:$0xf]
    %v2091 = vld [vmem:[#allocation8 + $0x24] sm:$0xf]
    %v2092 = vld [vmem:[#allocation8 + $0x28] sm:$0xf]
    %v2093 = vld [vmem:[#allocation8 + $0x2c] sm:$0xf]
    %v2094 = vld [vmem:[#allocation8 + $0x30] sm:$0xf]
    %v2095 = vld [vmem:[#allocation8 + $0x34] sm:$0xf]
    %v2096 = vld [vmem:[#allocation8 + $0x38] sm:$0xf]
    %v2097 = vld [vmem:[#allocation8 + $0x3c] sm:$0xf]
    %v2098 = vld [vmem:[#allocation8 + $0x40] sm:$0xf]
    %v2099 = vld [vmem:[#allocation8 + $0x44] sm:$0xf]
    %v2100 = vld [vmem:[#allocation8 + $0x48] sm:$0xf]
    %v2101 = vld [vmem:[#allocation8 + $0x4c] sm:$0xf]
    %v2102 = vld [vmem:[#allocation8 + $0x50] sm:$0xf]
    %v2103 = vld [vmem:[#allocation8 + $0x54] sm:$0xf]
    %v2104 = vld [vmem:[#allocation8 + $0x58] sm:$0xf]
    %v2105 = vld [vmem:[#allocation8 + $0x5c] sm:$0xf]
    %v2106 = vld [vmem:[#allocation8 + $0x60] sm:$0xf]
    %v2107 = vld [vmem:[#allocation8 + $0x64] sm:$0xf]
    %v2108 = vld [vmem:[#allocation8 + $0x68] sm:$0xf]
    %v2109 = vld [vmem:[#allocation8 + $0x6c] sm:$0xf]
    %v2110 = vld [vmem:[#allocation8 + $0x70] sm:$0xf]
    %v2111 = vld [vmem:[#allocation8 + $0x74] sm:$0xf]
    %v2112 = vld [vmem:[#allocation8 + $0x78] sm:$0xf]
    %v2113 = vld [vmem:[#allocation8 + $0x7c] sm:$0xf]
    %v2114 = vld [vmem:[#allocation8 + $0x80] sm:$0xf]
    %v2115 = vld [vmem:[#allocation8 + $0x84] sm:$0xf]
    %v2116 = vld [vmem:[#allocation8 + $0x88] sm:$0xf]
    %v2117 = vld [vmem:[#allocation8 + $0x8c] sm:$0xf]
    %v2118 = vld [vmem:[#allocation8 + $0x90] sm:$0xf]
    %v2119 = vld [vmem:[#allocation8 + $0x94] sm:$0xf]
    %v2120 = vld [vmem:[#allocation8 + $0x98] sm:$0xf]
    %v2121 = vld [vmem:[#allocation8 + $0x9c] sm:$0xf]
    %v2122 = vld [vmem:[#allocation8 + $0xa0] sm:$0xf]
    %v2123 = vld [vmem:[#allocation8 + $0xa4] sm:$0xf]
    %v2124 = vld [vmem:[#allocation8 + $0xa8] sm:$0xf]
    %v2125 = vld [vmem:[#allocation8 + $0xac] sm:$0xf]
    %v2126 = vld [vmem:[#allocation8 + $0xb0] sm:$0xf]
    %v2127 = vld [vmem:[#allocation8 + $0xb4] sm:$0xf]
    %v2128 = vld [vmem:[#allocation8 + $0xb8] sm:$0xf]
    %v2129 = vld [vmem:[#allocation8 + $0xbc] sm:$0xf]
    %v2130 = vld [vmem:[#allocation8 + $0xc0] sm:$0xf]
    %v2131 = vld [vmem:[#allocation8 + $0xc4] sm:$0xf]
    %v2132 = vld [vmem:[#allocation8 + $0xc8] sm:$0xf]
    %v2133 = vld [vmem:[#allocation8 + $0xcc] sm:$0xf]
    %v2134 = vld [vmem:[#allocation8 + $0xd0] sm:$0xf]
    %v2135 = vld [vmem:[#allocation8 + $0xd4] sm:$0xf]
    %v2136 = vld [vmem:[#allocation8 + $0xd8] sm:$0xf]
    %v2137 = vld [vmem:[#allocation8 + $0xdc] sm:$0xf]
    %v2138 = vld [vmem:[#allocation8 + $0xe0] sm:$0xf]
    %v2139 = vld [vmem:[#allocation8 + $0xe4] sm:$0xf]
    %v2140 = vld [vmem:[#allocation8 + $0xe8] sm:$0xf]
    %v2141 = vld [vmem:[#allocation8 + $0xec] sm:$0xf]
    %v2142 = vld [vmem:[#allocation8 + $0xf0] sm:$0xf]
    %v2143 = vld [vmem:[#allocation8 + $0xf4] sm:$0xf]
    %v2144 = vld [vmem:[#allocation8 + $0xf8] sm:$0xf]
    %v2145 = vld [vmem:[#allocation8 + $0xfc] sm:$0xf]
    %v2146 = vld [vmem:[#allocation10] sm:$0x1]
    %v2148 = vlaneseq
    %v2149 = vshrl.u32 %v2148, 7
    %v2150 = vsub.s32 0, %v2149
    %v2151 = vrot.slane %v2146, %v2150
    %v2217 = vunpack.c.l.b16 %v2082
    %v2218 = vunpack.c.l.b16 %v2083
    %v2219 = vunpack.c.l.b16 %v2084
    %v2220 = vunpack.c.l.b16 %v2085
    %v2221 = vunpack.c.l.b16 %v2086
    %v2222 = vunpack.c.l.b16 %v2087
    %v2223 = vunpack.c.l.b16 %v2088
    %v2224 = vunpack.c.l.b16 %v2089
    %v2225 = vunpack.c.l.b16 %v2090
    %v2226 = vunpack.c.l.b16 %v2091
    %v2227 = vunpack.c.l.b16 %v2092
    %v2228 = vunpack.c.l.b16 %v2093
    %v2229 = vunpack.c.l.b16 %v2094
    %v2230 = vunpack.c.l.b16 %v2095
    %v2231 = vunpack.c.l.b16 %v2096
    %v2232 = vunpack.c.l.b16 %v2097
    %v2233 = vunpack.c.l.b16 %v2098
    %v2234 = vunpack.c.l.b16 %v2099
    %v2235 = vunpack.c.l.b16 %v2100
    %v2236 = vunpack.c.l.b16 %v2101
    %v2237 = vunpack.c.l.b16 %v2102
    %v2238 = vunpack.c.l.b16 %v2103
    %v2239 = vunpack.c.l.b16 %v2104
    %v2240 = vunpack.c.l.b16 %v2105
    %v2241 = vunpack.c.l.b16 %v2106
    %v2242 = vunpack.c.l.b16 %v2107
    %v2243 = vunpack.c.l.b16 %v2108
    %v2244 = vunpack.c.l.b16 %v2109
    %v2245 = vunpack.c.l.b16 %v2110
    %v2246 = vunpack.c.l.b16 %v2111
    %v2247 = vunpack.c.l.b16 %v2112
    %v2248 = vunpack.c.l.b16 %v2113
    %v2249 = vunpack.c.l.b16 %v2114
    %v2250 = vunpack.c.l.b16 %v2115
    %v2251 = vunpack.c.l.b16 %v2116
    %v2252 = vunpack.c.l.b16 %v2117
    %v2253 = vunpack.c.l.b16 %v2118
    %v2254 = vunpack.c.l.b16 %v2119
    %v2255 = vunpack.c.l.b16 %v2120
    %v2256 = vunpack.c.l.b16 %v2121
    %v2257 = vunpack.c.l.b16 %v2122
    %v2258 = vunpack.c.l.b16 %v2123
    %v2259 = vunpack.c.l.b16 %v2124
    %v2260 = vunpack.c.l.b16 %v2125
    %v2261 = vunpack.c.l.b16 %v2126
    %v2262 = vunpack.c.l.b16 %v2127
    %v2263 = vunpack.c.l.b16 %v2128
    %v2264 = vunpack.c.l.b16 %v2129
    %v2265 = vunpack.c.l.b16 %v2130
    %v2266 = vunpack.c.l.b16 %v2131
    %v2267 = vunpack.c.l.b16 %v2132
    %v2268 = vunpack.c.l.b16 %v2133
    %v2269 = vunpack.c.l.b16 %v2134
    %v2270 = vunpack.c.l.b16 %v2135
    %v2271 = vunpack.c.l.b16 %v2136
    %v2272 = vunpack.c.l.b16 %v2137
    %v2273 = vunpack.c.l.b16 %v2138
    %v2274 = vunpack.c.l.b16 %v2139
    %v2275 = vunpack.c.l.b16 %v2140
    %v2276 = vunpack.c.l.b16 %v2141
    %v2277 = vunpack.c.l.b16 %v2142
    %v2278 = vunpack.c.l.b16 %v2143
    %v2279 = vunpack.c.l.b16 %v2144
    %v2280 = vunpack.c.l.b16 %v2145
    %v2281 = vpack.c.b16 %v2218, %v2217
    %v2282 = vpack.c.b16 %v2220, %v2219
    %v2283 = vpack.c.b16 %v2222, %v2221
    %v2284 = vpack.c.b16 %v2224, %v2223
    %v2285 = vpack.c.b16 %v2226, %v2225
    %v2286 = vpack.c.b16 %v2228, %v2227
    %v2287 = vpack.c.b16 %v2230, %v2229
    %v2288 = vpack.c.b16 %v2232, %v2231
    %v2289 = vpack.c.b16 %v2234, %v2233
    %v2290 = vpack.c.b16 %v2236, %v2235
    %v2291 = vpack.c.b16 %v2238, %v2237
    %v2292 = vpack.c.b16 %v2240, %v2239
    %v2293 = vpack.c.b16 %v2242, %v2241
    %v2294 = vpack.c.b16 %v2244, %v2243
    %v2295 = vpack.c.b16 %v2246, %v2245
    %v2296 = vpack.c.b16 %v2248, %v2247
    %v2297 = vpack.c.b16 %v2250, %v2249
    %v2298 = vpack.c.b16 %v2252, %v2251
    %v2299 = vpack.c.b16 %v2254, %v2253
    %v2300 = vpack.c.b16 %v2256, %v2255
    %v2301 = vpack.c.b16 %v2258, %v2257
    %v2302 = vpack.c.b16 %v2260, %v2259
    %v2303 = vpack.c.b16 %v2262, %v2261
    %v2304 = vpack.c.b16 %v2264, %v2263
    %v2305 = vpack.c.b16 %v2266, %v2265
    %v2306 = vpack.c.b16 %v2268, %v2267
    %v2307 = vpack.c.b16 %v2270, %v2269
    %v2308 = vpack.c.b16 %v2272, %v2271
    %v2309 = vpack.c.b16 %v2274, %v2273
    %v2310 = vpack.c.b16 %v2276, %v2275
    %v2311 = vpack.c.b16 %v2278, %v2277
    %v2312 = vpack.c.b16 %v2280, %v2279
    %2345 = vmatprep.subr.bf16.mxu0 0
    %2346 = vmatpush1.bf16.msra.mxu0 %v2288
    %2347 = vmatprep.subr.bf16.mxu0 0
    %2348 = vmatpush1.bf16.msra.mxu0 %v2287
    %2349 = vmatprep.subr.bf16.mxu0 0
    %2350 = vmatpush1.bf16.msra.mxu0 %v2286
    %2351 = vmatprep.subr.bf16.mxu0 0
    %2352 = vmatpush1.bf16.msra.mxu0 %v2285
    %2353 = vmatprep.subr.bf16.mxu0 0
    %2354 = vmatpush1.bf16.msra.mxu0 %v2284
    %2355 = vmatprep.subr.bf16.mxu0 0
    %2356 = vmatpush1.bf16.msra.mxu0 %v2283
    %2357 = vmatprep.subr.bf16.mxu0 0
    %2358 = vmatpush1.bf16.msra.mxu0 %v2282
    %2359 = vmatprep.subr.bf16.mxu0 0
    %2360 = vmatpush1.bf16.msra.mxu0 %v2281
    %2361 = vmatprep.subr.bf16.mxu0 0
    %2362 = vmatpush2.bf16.msra.mxu0 %v2296
    %2363 = vmatprep.subr.bf16.mxu0 0
    %2364 = vmatpush2.bf16.msra.mxu0 %v2295
    %2365 = vmatprep.subr.bf16.mxu0 0
    %2366 = vmatpush2.bf16.msra.mxu0 %v2294
    %2367 = vmatprep.subr.bf16.mxu0 0
    %2368 = vmatpush2.bf16.msra.mxu0 %v2293
    %2369 = vmatprep.subr.bf16.mxu0 0
    %2370 = vmatpush2.bf16.msra.mxu0 %v2292
    %2371 = vmatprep.subr.bf16.mxu0 0
    %2372 = vmatpush2.bf16.msra.mxu0 %v2291
    %2373 = vmatprep.subr.bf16.mxu0 0
    %2374 = vmatpush2.bf16.msra.mxu0 %v2290
    %2375 = vmatprep.subr.bf16.mxu0 0
    %2376 = vmatpush2.bf16.msra.mxu0 %v2289
    %2377 = vmatprep.mubr.bf16.mxu0 %v2079
    %2378 = vmatmul.mubr.bf16.gmra.mxu0 %v2078
    %v2379 = vpop.f32.mrf.mxu0
    %v2380 = vadd.f32 %v2151, %v2379
    %v2381 = vpop.f32.mrf.mxu0
    %v2382 = vpop.f32.mrf.mxu0
    %v2383 = vpop.f32.mrf.mxu0
    %2384 = vdwg.mxu0
    %2385 = vmatprep.subr.bf16.mxu0 0
    %2386 = vmatpush1.bf16.msra.mxu0 %v2304
    %2387 = vmatprep.subr.bf16.mxu0 0
    %2388 = vmatpush1.bf16.msra.mxu0 %v2303
    %2389 = vmatprep.subr.bf16.mxu0 0
    %2390 = vmatpush1.bf16.msra.mxu0 %v2302
    %2391 = vmatprep.subr.bf16.mxu0 0
    %2392 = vmatpush1.bf16.msra.mxu0 %v2301
    %2393 = vmatprep.subr.bf16.mxu0 0
    %2394 = vmatpush1.bf16.msra.mxu0 %v2300
    %2395 = vmatprep.subr.bf16.mxu0 0
    %2396 = vmatpush1.bf16.msra.mxu0 %v2299
    %2397 = vmatprep.subr.bf16.mxu0 0
    %2398 = vmatpush1.bf16.msra.mxu0 %v2298
    %2399 = vmatprep.subr.bf16.mxu0 0
    %2400 = vmatpush1.bf16.msra.mxu0 %v2297
    %2401 = vmatprep.subr.bf16.mxu0 0
    %2402 = vmatpush2.bf16.msra.mxu0 %v2312
    %2403 = vmatprep.subr.bf16.mxu0 0
    %2404 = vmatpush2.bf16.msra.mxu0 %v2311
    %2405 = vmatprep.subr.bf16.mxu0 0
    %2406 = vmatpush2.bf16.msra.mxu0 %v2310
    %2407 = vmatprep.subr.bf16.mxu0 0
    %2408 = vmatpush2.bf16.msra.mxu0 %v2309
    %2409 = vmatprep.subr.bf16.mxu0 0
    %2410 = vmatpush2.bf16.msra.mxu0 %v2308
    %2411 = vmatprep.subr.bf16.mxu0 0
    %2412 = vmatpush2.bf16.msra.mxu0 %v2307
    %2413 = vmatprep.subr.bf16.mxu0 0
    %2414 = vmatpush2.bf16.msra.mxu0 %v2306
    %2415 = vmatprep.subr.bf16.mxu0 0
    %2416 = vmatpush2.bf16.msra.mxu0 %v2305
    %2417 = vmatprep.mubr.bf16.mxu0 %v2081
    %2418 = vmatmul.mubr.bf16.gmra.mxu0 %v2080
    %v2419 = vpop.f32.mrf.mxu0
    %v2420 = vadd.f32 %v2380, %v2419
    %v2421 = vpop.f32.mrf.mxu0
    %v2422 = vpop.f32.mrf.mxu0
    %v2423 = vpop.f32.mrf.mxu0
    %2424 = vdwg.mxu0
    %2425 = vst [vmem:[#allocation11] sm:$0x3] %v2069
    %2426 = vst [vmem:[#allocation11 + $0x2] sm:$0x3] %v2420
    %s2427 = scalar_lea.vmem [#allocation2], 6
    %v2428 = vld [vmem:[%s2427] sm:$0x3f]
    %s2429 = scalar_lea.vmem [#allocation5], 1920
    %v2430 = vld [vmem:[%s2429] sm:$0xff]
    %v2431 = vld [vmem:[%s2429 + $0x8] sm:$0xff]
    %v2432 = vld [vmem:[%s2429 + $0x10] sm:$0xf]
    %v2433 = vld [vmem:[%s2429 + $0x14] sm:$0xff]
    %v2434 = vld [vmem:[%s2429 + $0x1c] sm:$0xff]
    %v2435 = vld [vmem:[%s2429 + $0x24] sm:$0xf]
    %v2436 = vld [vmem:[%s2429 + $0x28] sm:$0xff]
    %v2437 = vld [vmem:[%s2429 + $0x30] sm:$0xff]
    %v2438 = vld [vmem:[%s2429 + $0x38] sm:$0xf]
    %v2439 = vld [vmem:[%s2429 + $0x3c] sm:$0xff]
    %v2440 = vld [vmem:[%s2429 + $0x44] sm:$0xff]
    %v2441 = vld [vmem:[%s2429 + $0x4c] sm:$0xf]
    %v2442 = vld [vmem:[%s2429 + $0x50] sm:$0xff]
    %v2443 = vld [vmem:[%s2429 + $0x58] sm:$0xff]
    %v2444 = vld [vmem:[%s2429 + $0x60] sm:$0xf]
    %v2445 = vld [vmem:[%s2429 + $0x64] sm:$0xff]
    %v2446 = vld [vmem:[%s2429 + $0x6c] sm:$0xff]
    %v2447 = vld [vmem:[%s2429 + $0x74] sm:$0xf]
    %v2448 = vld [vmem:[%s2429 + $0x78] sm:$0xff]
    %v2449 = vld [vmem:[%s2429 + $0x80] sm:$0xff]
    %v2450 = vld [vmem:[%s2429 + $0x88] sm:$0xf]
    %v2451 = vld [vmem:[%s2429 + $0x8c] sm:$0xff]
    %v2452 = vld [vmem:[%s2429 + $0x94] sm:$0xff]
    %v2453 = vld [vmem:[%s2429 + $0x9c] sm:$0xf]
    %v2454 = vld [vmem:[%s2429 + $0xa0] sm:$0xff]
    %v2455 = vld [vmem:[%s2429 + $0xa8] sm:$0xff]
    %v2456 = vld [vmem:[%s2429 + $0xb0] sm:$0xf]
    %v2457 = vld [vmem:[%s2429 + $0xb4] sm:$0xff]
    %v2458 = vld [vmem:[%s2429 + $0xbc] sm:$0xff]
    %v2459 = vld [vmem:[%s2429 + $0xc4] sm:$0xf]
    %v2460 = vld [vmem:[%s2429 + $0xc8] sm:$0xff]
    %v2461 = vld [vmem:[%s2429 + $0xd0] sm:$0xff]
    %v2462 = vld [vmem:[%s2429 + $0xd8] sm:$0xf]
    %v2463 = vld [vmem:[%s2429 + $0xdc] sm:$0xff]
    %v2464 = vld [vmem:[%s2429 + $0xe4] sm:$0xff]
    %v2465 = vld [vmem:[%s2429 + $0xec] sm:$0xf]
    %v2466 = vld [vmem:[%s2429 + $0xf0] sm:$0xff]
    %v2467 = vld [vmem:[%s2429 + $0xf8] sm:$0xff]
    %v2468 = vld [vmem:[%s2429 + $0x100] sm:$0xf]
    %v2469 = vld [vmem:[%s2429 + $0x104] sm:$0xff]
    %v2470 = vld [vmem:[%s2429 + $0x10c] sm:$0xff]
    %v2471 = vld [vmem:[%s2429 + $0x114] sm:$0xf]
    %v2472 = vld [vmem:[%s2429 + $0x118] sm:$0xff]
    %v2473 = vld [vmem:[%s2429 + $0x120] sm:$0xff]
    %v2474 = vld [vmem:[%s2429 + $0x128] sm:$0xf]
    %v2475 = vld [vmem:[%s2429 + $0x12c] sm:$0xff]
    %v2476 = vld [vmem:[%s2429 + $0x134] sm:$0xff]
    %v2477 = vld [vmem:[%s2429 + $0x13c] sm:$0xf]
    %v2478 = vld [vmem:[%s2429 + $0x140] sm:$0xff]
    %v2479 = vld [vmem:[%s2429 + $0x148] sm:$0xff]
    %v2480 = vld [vmem:[%s2429 + $0x150] sm:$0xf]
    %v2481 = vld [vmem:[%s2429 + $0x154] sm:$0xff]
    %v2482 = vld [vmem:[%s2429 + $0x15c] sm:$0xff]
    %v2483 = vld [vmem:[%s2429 + $0x164] sm:$0xf]
    %v2484 = vld [vmem:[%s2429 + $0x168] sm:$0xff]
    %v2485 = vld [vmem:[%s2429 + $0x170] sm:$0xff]
    %v2486 = vld [vmem:[%s2429 + $0x178] sm:$0xf]
    %v2487 = vld [vmem:[%s2429 + $0x17c] sm:$0xff]
    %v2488 = vld [vmem:[%s2429 + $0x184] sm:$0xff]
    %v2489 = vld [vmem:[%s2429 + $0x18c] sm:$0xf]
    %v2490 = vld [vmem:[%s2429 + $0x190] sm:$0xff]
    %v2491 = vld [vmem:[%s2429 + $0x198] sm:$0xff]
    %v2492 = vld [vmem:[%s2429 + $0x1a0] sm:$0xf]
    %v2493 = vld [vmem:[%s2429 + $0x1a4] sm:$0xff]
    %v2494 = vld [vmem:[%s2429 + $0x1ac] sm:$0xff]
    %v2495 = vld [vmem:[%s2429 + $0x1b4] sm:$0xf]
    %v2496 = vld [vmem:[%s2429 + $0x1b8] sm:$0xff]
    %v2497 = vld [vmem:[%s2429 + $0x1c0] sm:$0xff]
    %v2498 = vld [vmem:[%s2429 + $0x1c8] sm:$0xf]
    %v2499 = vld [vmem:[%s2429 + $0x1cc] sm:$0xff]
    %v2500 = vld [vmem:[%s2429 + $0x1d4] sm:$0xff]
    %v2501 = vld [vmem:[%s2429 + $0x1dc] sm:$0xf]
    %v2502 = vld [vmem:[%s2429 + $0x1e0] sm:$0xff]
    %v2503 = vld [vmem:[%s2429 + $0x1e8] sm:$0xff]
    %v2504 = vld [vmem:[%s2429 + $0x1f0] sm:$0xf]
    %v2505 = vld [vmem:[%s2429 + $0x1f4] sm:$0xff]
    %v2506 = vld [vmem:[%s2429 + $0x1fc] sm:$0xff]
    %v2507 = vld [vmem:[%s2429 + $0x204] sm:$0xf]
    %v2508 = vld [vmem:[%s2429 + $0x208] sm:$0xff]
    %v2509 = vld [vmem:[%s2429 + $0x210] sm:$0xff]
    %v2510 = vld [vmem:[%s2429 + $0x218] sm:$0xf]
    %v2511 = vld [vmem:[%s2429 + $0x21c] sm:$0xff]
    %v2512 = vld [vmem:[%s2429 + $0x224] sm:$0xff]
    %v2513 = vld [vmem:[%s2429 + $0x22c] sm:$0xf]
    %v2514 = vld [vmem:[%s2429 + $0x230] sm:$0xff]
    %v2515 = vld [vmem:[%s2429 + $0x238] sm:$0xff]
    %v2516 = vld [vmem:[%s2429 + $0x240] sm:$0xf]
    %v2517 = vld [vmem:[%s2429 + $0x244] sm:$0xff]
    %v2518 = vld [vmem:[%s2429 + $0x24c] sm:$0xff]
    %v2519 = vld [vmem:[%s2429 + $0x254] sm:$0xf]
    %v2520 = vld [vmem:[%s2429 + $0x258] sm:$0xff]
    %v2521 = vld [vmem:[%s2429 + $0x260] sm:$0xff]
    %v2522 = vld [vmem:[%s2429 + $0x268] sm:$0xf]
    %v2523 = vld [vmem:[%s2429 + $0x26c] sm:$0xff]
    %v2524 = vld [vmem:[%s2429 + $0x274] sm:$0xff]
    %v2525 = vld [vmem:[%s2429 + $0x27c] sm:$0xf]
    %v2526 = vld [vmem:[%s2429 + $0x280] sm:$0xff]
    %v2527 = vld [vmem:[%s2429 + $0x288] sm:$0xff]
    %v2528 = vld [vmem:[%s2429 + $0x290] sm:$0xf]
    %v2529 = vld [vmem:[%s2429 + $0x294] sm:$0xff]
    %v2530 = vld [vmem:[%s2429 + $0x29c] sm:$0xff]
    %v2531 = vld [vmem:[%s2429 + $0x2a4] sm:$0xf]
    %v2532 = vld [vmem:[%s2429 + $0x2a8] sm:$0xff]
    %v2533 = vld [vmem:[%s2429 + $0x2b0] sm:$0xff]
    %v2534 = vld [vmem:[%s2429 + $0x2b8] sm:$0xf]
    %v2535 = vld [vmem:[%s2429 + $0x2bc] sm:$0xff]
    %v2536 = vld [vmem:[%s2429 + $0x2c4] sm:$0xff]
    %v2537 = vld [vmem:[%s2429 + $0x2cc] sm:$0xf]
    %v2538 = vld [vmem:[%s2429 + $0x2d0] sm:$0xff]
    %v2539 = vld [vmem:[%s2429 + $0x2d8] sm:$0xff]
    %v2540 = vld [vmem:[%s2429 + $0x2e0] sm:$0xf]
    %v2541 = vld [vmem:[%s2429 + $0x2e4] sm:$0xff]
    %v2542 = vld [vmem:[%s2429 + $0x2ec] sm:$0xff]
    %v2543 = vld [vmem:[%s2429 + $0x2f4] sm:$0xf]
    %v2544 = vld [vmem:[%s2429 + $0x2f8] sm:$0xff]
    %v2545 = vld [vmem:[%s2429 + $0x300] sm:$0xff]
    %v2546 = vld [vmem:[%s2429 + $0x308] sm:$0xf]
    %v2547 = vld [vmem:[%s2429 + $0x30c] sm:$0xff]
    %v2548 = vld [vmem:[%s2429 + $0x314] sm:$0xff]
    %v2549 = vld [vmem:[%s2429 + $0x31c] sm:$0xf]
    %v2550 = vld [vmem:[%s2429 + $0x320] sm:$0xff]
    %v2551 = vld [vmem:[%s2429 + $0x328] sm:$0xff]
    %v2552 = vld [vmem:[%s2429 + $0x330] sm:$0xf]
    %v2553 = vld [vmem:[%s2429 + $0x334] sm:$0xff]
    %v2554 = vld [vmem:[%s2429 + $0x33c] sm:$0xff]
    %v2555 = vld [vmem:[%s2429 + $0x344] sm:$0xf]
    %v2556 = vld [vmem:[%s2429 + $0x348] sm:$0xff]
    %v2557 = vld [vmem:[%s2429 + $0x350] sm:$0xff]
    %v2558 = vld [vmem:[%s2429 + $0x358] sm:$0xf]
    %v2559 = vld [vmem:[%s2429 + $0x35c] sm:$0xff]
    %v2560 = vld [vmem:[%s2429 + $0x364] sm:$0xff]
    %v2561 = vld [vmem:[%s2429 + $0x36c] sm:$0xf]
    %v2562 = vld [vmem:[%s2429 + $0x370] sm:$0xff]
    %v2563 = vld [vmem:[%s2429 + $0x378] sm:$0xff]
    %v2564 = vld [vmem:[%s2429 + $0x380] sm:$0xf]
    %v2565 = vld [vmem:[%s2429 + $0x384] sm:$0xff]
    %v2566 = vld [vmem:[%s2429 + $0x38c] sm:$0xff]
    %v2567 = vld [vmem:[%s2429 + $0x394] sm:$0xf]
    %v2568 = vld [vmem:[%s2429 + $0x398] sm:$0xff]
    %v2569 = vld [vmem:[%s2429 + $0x3a0] sm:$0xff]
    %v2570 = vld [vmem:[%s2429 + $0x3a8] sm:$0xf]
    %v2571 = vld [vmem:[%s2429 + $0x3ac] sm:$0xff]
    %v2572 = vld [vmem:[%s2429 + $0x3b4] sm:$0xff]
    %v2573 = vld [vmem:[%s2429 + $0x3bc] sm:$0xf]
    %v2574 = vld [vmem:[%s2429 + $0x3c0] sm:$0xff]
    %v2575 = vld [vmem:[%s2429 + $0x3c8] sm:$0xff]
    %v2576 = vld [vmem:[%s2429 + $0x3d0] sm:$0xf]
    %v2577 = vld [vmem:[%s2429 + $0x3d4] sm:$0xff]
    %v2578 = vld [vmem:[%s2429 + $0x3dc] sm:$0xff]
    %v2579 = vld [vmem:[%s2429 + $0x3e4] sm:$0xf]
    %v2580 = vld [vmem:[%s2429 + $0x3e8] sm:$0xff]
    %v2581 = vld [vmem:[%s2429 + $0x3f0] sm:$0xff]
    %v2582 = vld [vmem:[%s2429 + $0x3f8] sm:$0xf]
    %v2583 = vld [vmem:[%s2429 + $0x3fc] sm:$0xff]
    %v2584 = vld [vmem:[%s2429 + $0x404] sm:$0xff]
    %v2585 = vld [vmem:[%s2429 + $0x40c] sm:$0xf]
    %v2586 = vld [vmem:[%s2429 + $0x410] sm:$0xff]
    %v2587 = vld [vmem:[%s2429 + $0x418] sm:$0xff]
    %v2588 = vld [vmem:[%s2429 + $0x420] sm:$0xf]
    %v2589 = vld [vmem:[%s2429 + $0x424] sm:$0xff]
    %v2590 = vld [vmem:[%s2429 + $0x42c] sm:$0xff]
    %v2591 = vld [vmem:[%s2429 + $0x434] sm:$0xf]
    %v2592 = vld [vmem:[%s2429 + $0x438] sm:$0xff]
    %v2593 = vld [vmem:[%s2429 + $0x440] sm:$0xff]
    %v2594 = vld [vmem:[%s2429 + $0x448] sm:$0xf]
    %v2595 = vld [vmem:[%s2429 + $0x44c] sm:$0xff]
    %v2596 = vld [vmem:[%s2429 + $0x454] sm:$0xff]
    %v2597 = vld [vmem:[%s2429 + $0x45c] sm:$0xf]
    %v2598 = vld [vmem:[%s2429 + $0x460] sm:$0xff]
    %v2599 = vld [vmem:[%s2429 + $0x468] sm:$0xff]
    %v2600 = vld [vmem:[%s2429 + $0x470] sm:$0xf]
    %v2601 = vld [vmem:[%s2429 + $0x474] sm:$0xff]
    %v2602 = vld [vmem:[%s2429 + $0x47c] sm:$0xff]
    %v2603 = vld [vmem:[%s2429 + $0x484] sm:$0xf]
    %v2604 = vld [vmem:[%s2429 + $0x488] sm:$0xff]
    %v2605 = vld [vmem:[%s2429 + $0x490] sm:$0xff]
    %v2606 = vld [vmem:[%s2429 + $0x498] sm:$0xf]
    %v2607 = vld [vmem:[%s2429 + $0x49c] sm:$0xff]
    %v2608 = vld [vmem:[%s2429 + $0x4a4] sm:$0xff]
    %v2609 = vld [vmem:[%s2429 + $0x4ac] sm:$0xf]
    %v2610 = vld [vmem:[%s2429 + $0x4b0] sm:$0xff]
    %v2611 = vld [vmem:[%s2429 + $0x4b8] sm:$0xff]
    %v2612 = vld [vmem:[%s2429 + $0x4c0] sm:$0xf]
    %v2613 = vld [vmem:[%s2429 + $0x4c4] sm:$0xff]
    %v2614 = vld [vmem:[%s2429 + $0x4cc] sm:$0xff]
    %v2615 = vld [vmem:[%s2429 + $0x4d4] sm:$0xf]
    %v2616 = vld [vmem:[%s2429 + $0x4d8] sm:$0xff]
    %v2617 = vld [vmem:[%s2429 + $0x4e0] sm:$0xff]
    %v2618 = vld [vmem:[%s2429 + $0x4e8] sm:$0xf]
    %v2619 = vld [vmem:[%s2429 + $0x4ec] sm:$0xff]
    %v2620 = vld [vmem:[%s2429 + $0x4f4] sm:$0xff]
    %v2621 = vld [vmem:[%s2429 + $0x4fc] sm:$0xf]
    %v2622 = vld [vmem:[%s2429 + $0x500] sm:$0xff]
    %v2623 = vld [vmem:[%s2429 + $0x508] sm:$0xff]
    %v2624 = vld [vmem:[%s2429 + $0x510] sm:$0xf]
    %v2625 = vld [vmem:[%s2429 + $0x514] sm:$0xff]
    %v2626 = vld [vmem:[%s2429 + $0x51c] sm:$0xff]
    %v2627 = vld [vmem:[%s2429 + $0x524] sm:$0xf]
    %v2628 = vld [vmem:[%s2429 + $0x528] sm:$0xff]
    %v2629 = vld [vmem:[%s2429 + $0x530] sm:$0xff]
    %v2630 = vld [vmem:[%s2429 + $0x538] sm:$0xf]
    %v2631 = vld [vmem:[%s2429 + $0x53c] sm:$0xff]
    %v2632 = vld [vmem:[%s2429 + $0x544] sm:$0xff]
    %v2633 = vld [vmem:[%s2429 + $0x54c] sm:$0xf]
    %v2634 = vld [vmem:[%s2429 + $0x550] sm:$0xff]
    %v2635 = vld [vmem:[%s2429 + $0x558] sm:$0xff]
    %v2636 = vld [vmem:[%s2429 + $0x560] sm:$0xf]
    %v2637 = vld [vmem:[%s2429 + $0x564] sm:$0xff]
    %v2638 = vld [vmem:[%s2429 + $0x56c] sm:$0xff]
    %v2639 = vld [vmem:[%s2429 + $0x574] sm:$0xf]
    %v2640 = vld [vmem:[%s2429 + $0x578] sm:$0xff]
    %v2641 = vld [vmem:[%s2429 + $0x580] sm:$0xff]
    %v2642 = vld [vmem:[%s2429 + $0x588] sm:$0xf]
    %v2643 = vld [vmem:[%s2429 + $0x58c] sm:$0xff]
    %v2644 = vld [vmem:[%s2429 + $0x594] sm:$0xff]
    %v2645 = vld [vmem:[%s2429 + $0x59c] sm:$0xf]
    %v2646 = vld [vmem:[%s2429 + $0x5a0] sm:$0xff]
    %v2647 = vld [vmem:[%s2429 + $0x5a8] sm:$0xff]
    %v2648 = vld [vmem:[%s2429 + $0x5b0] sm:$0xf]
    %v2649 = vld [vmem:[%s2429 + $0x5b4] sm:$0xff]
    %v2650 = vld [vmem:[%s2429 + $0x5bc] sm:$0xff]
    %v2651 = vld [vmem:[%s2429 + $0x5c4] sm:$0xf]
    %v2652 = vld [vmem:[%s2429 + $0x5c8] sm:$0xff]
    %v2653 = vld [vmem:[%s2429 + $0x5d0] sm:$0xff]
    %v2654 = vld [vmem:[%s2429 + $0x5d8] sm:$0xf]
    %v2655 = vld [vmem:[%s2429 + $0x5dc] sm:$0xff]
    %v2656 = vld [vmem:[%s2429 + $0x5e4] sm:$0xff]
    %v2657 = vld [vmem:[%s2429 + $0x5ec] sm:$0xf]
    %v2658 = vld [vmem:[%s2429 + $0x5f0] sm:$0xff]
    %v2659 = vld [vmem:[%s2429 + $0x5f8] sm:$0xff]
    %v2660 = vld [vmem:[%s2429 + $0x600] sm:$0xf]
    %v2661 = vld [vmem:[%s2429 + $0x604] sm:$0xff]
    %v2662 = vld [vmem:[%s2429 + $0x60c] sm:$0xff]
    %v2663 = vld [vmem:[%s2429 + $0x614] sm:$0xf]
    %v2664 = vld [vmem:[%s2429 + $0x618] sm:$0xff]
    %v2665 = vld [vmem:[%s2429 + $0x620] sm:$0xff]
    %v2666 = vld [vmem:[%s2429 + $0x628] sm:$0xf]
    %v2667 = vld [vmem:[%s2429 + $0x62c] sm:$0xff]
    %v2668 = vld [vmem:[%s2429 + $0x634] sm:$0xff]
    %v2669 = vld [vmem:[%s2429 + $0x63c] sm:$0xf]
    %v2670 = vld [vmem:[%s2429 + $0x640] sm:$0xff]
    %v2671 = vld [vmem:[%s2429 + $0x648] sm:$0xff]
    %v2672 = vld [vmem:[%s2429 + $0x650] sm:$0xf]
    %v2673 = vld [vmem:[%s2429 + $0x654] sm:$0xff]
    %v2674 = vld [vmem:[%s2429 + $0x65c] sm:$0xff]
    %v2675 = vld [vmem:[%s2429 + $0x664] sm:$0xf]
    %v2676 = vld [vmem:[%s2429 + $0x668] sm:$0xff]
    %v2677 = vld [vmem:[%s2429 + $0x670] sm:$0xff]
    %v2678 = vld [vmem:[%s2429 + $0x678] sm:$0xf]
    %v2679 = vld [vmem:[%s2429 + $0x67c] sm:$0xff]
    %v2680 = vld [vmem:[%s2429 + $0x684] sm:$0xff]
    %v2681 = vld [vmem:[%s2429 + $0x68c] sm:$0xf]
    %v2682 = vld [vmem:[%s2429 + $0x690] sm:$0xff]
    %v2683 = vld [vmem:[%s2429 + $0x698] sm:$0xff]
    %v2684 = vld [vmem:[%s2429 + $0x6a0] sm:$0xf]
    %v2685 = vld [vmem:[%s2429 + $0x6a4] sm:$0xff]
    %v2686 = vld [vmem:[%s2429 + $0x6ac] sm:$0xff]
    %v2687 = vld [vmem:[%s2429 + $0x6b4] sm:$0xf]
    %v2688 = vld [vmem:[%s2429 + $0x6b8] sm:$0xff]
    %v2689 = vld [vmem:[%s2429 + $0x6c0] sm:$0xff]
    %v2690 = vld [vmem:[%s2429 + $0x6c8] sm:$0xf]
    %v2691 = vld [vmem:[%s2429 + $0x6cc] sm:$0xff]
    %v2692 = vld [vmem:[%s2429 + $0x6d4] sm:$0xff]
    %v2693 = vld [vmem:[%s2429 + $0x6dc] sm:$0xf]
    %v2694 = vld [vmem:[%s2429 + $0x6e0] sm:$0xff]
    %v2695 = vld [vmem:[%s2429 + $0x6e8] sm:$0xff]
    %v2696 = vld [vmem:[%s2429 + $0x6f0] sm:$0xf]
    %v2697 = vld [vmem:[%s2429 + $0x6f4] sm:$0xff]
    %v2698 = vld [vmem:[%s2429 + $0x6fc] sm:$0xff]
    %v2699 = vld [vmem:[%s2429 + $0x704] sm:$0xf]
    %v2700 = vld [vmem:[%s2429 + $0x708] sm:$0xff]
    %v2701 = vld [vmem:[%s2429 + $0x710] sm:$0xff]
    %v2702 = vld [vmem:[%s2429 + $0x718] sm:$0xf]
    %v2703 = vld [vmem:[%s2429 + $0x71c] sm:$0xff]
    %v2704 = vld [vmem:[%s2429 + $0x724] sm:$0xff]
    %v2705 = vld [vmem:[%s2429 + $0x72c] sm:$0xf]
    %v2706 = vld [vmem:[%s2429 + $0x730] sm:$0xff]
    %v2707 = vld [vmem:[%s2429 + $0x738] sm:$0xff]
    %v2708 = vld [vmem:[%s2429 + $0x740] sm:$0xf]
    %v2709 = vld [vmem:[%s2429 + $0x744] sm:$0xff]
    %v2710 = vld [vmem:[%s2429 + $0x74c] sm:$0xff]
    %v2711 = vld [vmem:[%s2429 + $0x754] sm:$0xf]
    %v2712 = vld [vmem:[%s2429 + $0x758] sm:$0xff]
    %v2713 = vld [vmem:[%s2429 + $0x760] sm:$0xff]
    %v2714 = vld [vmem:[%s2429 + $0x768] sm:$0xf]
    %v2715 = vld [vmem:[%s2429 + $0x76c] sm:$0xff]
    %v2716 = vld [vmem:[%s2429 + $0x774] sm:$0xff]
    %v2717 = vld [vmem:[%s2429 + $0x77c] sm:$0xf]
    %s2718 = scalar_lea.vmem [#allocation7], 5
    %v2719 = vld [vmem:[%s2718] sm:$0x1f]
    %v2721 = vlaneseq
    %v2722 = vshrl.u32 %v2721, 7
    %v2723 = vsub.s32 0, %v2722
    %v2724 = vrot.slane %v2719, %v2723
    %v2725 = vlaneseq
    %v2726 = vshrl.u32 %v2725, 7
    %v2727 = vsub.s32 1, %v2726
    %v2728 = vrot.slane %v2719, %v2727
    %v2729 = vlaneseq
    %v2730 = vshrl.u32 %v2729, 7
    %v2731 = vsub.s32 2, %v2730
    %v2732 = vrot.slane %v2719, %v2731
    %v2733 = vlaneseq
    %v2734 = vshrl.u32 %v2733, 7
    %v2735 = vsub.s32 3, %v2734
    %v2736 = vrot.slane %v2719, %v2735
    %v2737 = vlaneseq
    %v2738 = vshrl.u32 %v2737, 7
    %v2739 = vsub.s32 4, %v2738
    %v2740 = vrot.slane %v2719, %v2739
    %v2747 = vcombine.high %v2428, %v2428
    %v2749 = vunpack.c.l.s4 1966171168
    %v2750 = vunpack.c.0.s8 %v2749
    %v2751 = vlaneseq
    %v2752 = vshrl.u32 %v2751, 7
    %v2753 = vsub.s32 %v2750, %v2752
    %v2754 = vrot.slane %v2428, %v2753
    %v2756 = vunpack.c.l.s4 1966171168
    %v2757 = vunpack.c.0.s8 %v2756
    %v2758 = vlaneseq
    %v2759 = vshrl.u32 %v2758, 7
    %v2760 = vsub.s32 %v2757, %v2759
    %v2761 = vrot.slane %v2747, %v2760
    %v2762 = vcombine.high %v2754, %v2754
    %v2763 = vcombine.high %v2761, %v2761
    %v2765 = vunpack.c.l.s4 1966171168
    %v2766 = vunpack.c.0.s8 %v2765
    %v2767 = vlaneseq
    %v2768 = vshrl.u32 %v2767, 7
    %v2769 = vsub.s32 %v2766, %v2768
    %v2770 = vrot.slane %v2754, %v2769
    %v2772 = vunpack.c.l.s4 1966171168
    %v2773 = vunpack.c.0.s8 %v2772
    %v2774 = vlaneseq
    %v2775 = vshrl.u32 %v2774, 7
    %v2776 = vsub.s32 %v2773, %v2775
    %v2777 = vrot.slane %v2761, %v2776
    %v2779 = vunpack.c.l.s4 1966171168
    %v2780 = vunpack.c.0.s8 %v2779
    %v2781 = vlaneseq
    %v2782 = vshrl.u32 %v2781, 7
    %v2783 = vsub.s32 %v2780, %v2782
    %v2784 = vrot.slane %v2762, %v2783
    %v2786 = vunpack.c.l.s4 1966171168
    %v2787 = vunpack.c.0.s8 %v2786
    %v2788 = vlaneseq
    %v2789 = vshrl.u32 %v2788, 7
    %v2790 = vsub.s32 %v2787, %v2789
    %v2791 = vrot.slane %v2763, %v2790
    %v2792 = vcombine.high %v2770, %v2770
    %v2793 = vcombine.high %v2784, %v2784
    %v3088 = vunpack.c.l.b16 %v2430
    %v3089 = vunpack.c.h.b16 %v2430
    %v3090 = vunpack.c.l.b16 %v2431
    %v3091 = vunpack.c.h.b16 %v2431
    %v3092 = vunpack.c.l.b16 %v2432
    %v3093 = vunpack.c.l.b16 %v2433
    %v3094 = vunpack.c.h.b16 %v2433
    %v3095 = vunpack.c.l.b16 %v2434
    %v3096 = vunpack.c.h.b16 %v2434
    %v3097 = vunpack.c.l.b16 %v2435
    %v3098 = vunpack.c.l.b16 %v2436
    %v3099 = vunpack.c.h.b16 %v2436
    %v3100 = vunpack.c.l.b16 %v2437
    %v3101 = vunpack.c.h.b16 %v2437
    %v3102 = vunpack.c.l.b16 %v2438
    %v3103 = vunpack.c.l.b16 %v2439
    %v3104 = vunpack.c.h.b16 %v2439
    %v3105 = vunpack.c.l.b16 %v2440
    %v3106 = vunpack.c.h.b16 %v2440
    %v3107 = vunpack.c.l.b16 %v2441
    %v3108 = vunpack.c.l.b16 %v2442
    %v3109 = vunpack.c.h.b16 %v2442
    %v3110 = vunpack.c.l.b16 %v2443
    %v3111 = vunpack.c.h.b16 %v2443
    %v3112 = vunpack.c.l.b16 %v2444
    %v3113 = vunpack.c.l.b16 %v2445
    %v3114 = vunpack.c.h.b16 %v2445
    %v3115 = vunpack.c.l.b16 %v2446
    %v3116 = vunpack.c.h.b16 %v2446
    %v3117 = vunpack.c.l.b16 %v2447
    %v3118 = vunpack.c.l.b16 %v2448
    %v3119 = vunpack.c.h.b16 %v2448
    %v3120 = vunpack.c.l.b16 %v2449
    %v3121 = vunpack.c.h.b16 %v2449
    %v3122 = vunpack.c.l.b16 %v2450
    %v3123 = vunpack.c.l.b16 %v2451
    %v3124 = vunpack.c.h.b16 %v2451
    %v3125 = vunpack.c.l.b16 %v2452
    %v3126 = vunpack.c.h.b16 %v2452
    %v3127 = vunpack.c.l.b16 %v2453
    %v3128 = vunpack.c.l.b16 %v2454
    %v3129 = vunpack.c.h.b16 %v2454
    %v3130 = vunpack.c.l.b16 %v2455
    %v3131 = vunpack.c.h.b16 %v2455
    %v3132 = vunpack.c.l.b16 %v2456
    %v3133 = vunpack.c.l.b16 %v2457
    %v3134 = vunpack.c.h.b16 %v2457
    %v3135 = vunpack.c.l.b16 %v2458
    %v3136 = vunpack.c.h.b16 %v2458
    %v3137 = vunpack.c.l.b16 %v2459
    %v3138 = vunpack.c.l.b16 %v2460
    %v3139 = vunpack.c.h.b16 %v2460
    %v3140 = vunpack.c.l.b16 %v2461
    %v3141 = vunpack.c.h.b16 %v2461
    %v3142 = vunpack.c.l.b16 %v2462
    %v3143 = vunpack.c.l.b16 %v2463
    %v3144 = vunpack.c.h.b16 %v2463
    %v3145 = vunpack.c.l.b16 %v2464
    %v3146 = vunpack.c.h.b16 %v2464
    %v3147 = vunpack.c.l.b16 %v2465
    %v3148 = vunpack.c.l.b16 %v2466
    %v3149 = vunpack.c.h.b16 %v2466
    %v3150 = vunpack.c.l.b16 %v2467
    %v3151 = vunpack.c.h.b16 %v2467
    %v3152 = vunpack.c.l.b16 %v2468
    %v3153 = vunpack.c.l.b16 %v2469
    %v3154 = vunpack.c.h.b16 %v2469
    %v3155 = vunpack.c.l.b16 %v2470
    %v3156 = vunpack.c.h.b16 %v2470
    %v3157 = vunpack.c.l.b16 %v2471
    %v3158 = vunpack.c.l.b16 %v2472
    %v3159 = vunpack.c.h.b16 %v2472
    %v3160 = vunpack.c.l.b16 %v2473
    %v3161 = vunpack.c.h.b16 %v2473
    %v3162 = vunpack.c.l.b16 %v2474
    %v3163 = vunpack.c.l.b16 %v2475
    %v3164 = vunpack.c.h.b16 %v2475
    %v3165 = vunpack.c.l.b16 %v2476
    %v3166 = vunpack.c.h.b16 %v2476
    %v3167 = vunpack.c.l.b16 %v2477
    %v3168 = vunpack.c.l.b16 %v2478
    %v3169 = vunpack.c.h.b16 %v2478
    %v3170 = vunpack.c.l.b16 %v2479
    %v3171 = vunpack.c.h.b16 %v2479
    %v3172 = vunpack.c.l.b16 %v2480
    %v3173 = vunpack.c.l.b16 %v2481
    %v3174 = vunpack.c.h.b16 %v2481
    %v3175 = vunpack.c.l.b16 %v2482
    %v3176 = vunpack.c.h.b16 %v2482
    %v3177 = vunpack.c.l.b16 %v2483
    %v3178 = vunpack.c.l.b16 %v2484
    %v3179 = vunpack.c.h.b16 %v2484
    %v3180 = vunpack.c.l.b16 %v2485
    %v3181 = vunpack.c.h.b16 %v2485
    %v3182 = vunpack.c.l.b16 %v2486
    %v3183 = vunpack.c.l.b16 %v2487
    %v3184 = vunpack.c.h.b16 %v2487
    %v3185 = vunpack.c.l.b16 %v2488
    %v3186 = vunpack.c.h.b16 %v2488
    %v3187 = vunpack.c.l.b16 %v2489
    %v3188 = vunpack.c.l.b16 %v2490
    %v3189 = vunpack.c.h.b16 %v2490
    %v3190 = vunpack.c.l.b16 %v2491
    %v3191 = vunpack.c.h.b16 %v2491
    %v3192 = vunpack.c.l.b16 %v2492
    %v3193 = vunpack.c.l.b16 %v2493
    %v3194 = vunpack.c.h.b16 %v2493
    %v3195 = vunpack.c.l.b16 %v2494
    %v3196 = vunpack.c.h.b16 %v2494
    %v3197 = vunpack.c.l.b16 %v2495
    %v3198 = vunpack.c.l.b16 %v2496
    %v3199 = vunpack.c.h.b16 %v2496
    %v3200 = vunpack.c.l.b16 %v2497
    %v3201 = vunpack.c.h.b16 %v2497
    %v3202 = vunpack.c.l.b16 %v2498
    %v3203 = vunpack.c.l.b16 %v2499
    %v3204 = vunpack.c.h.b16 %v2499
    %v3205 = vunpack.c.l.b16 %v2500
    %v3206 = vunpack.c.h.b16 %v2500
    %v3207 = vunpack.c.l.b16 %v2501
    %v3208 = vunpack.c.l.b16 %v2502
    %v3209 = vunpack.c.h.b16 %v2502
    %v3210 = vunpack.c.l.b16 %v2503
    %v3211 = vunpack.c.h.b16 %v2503
    %v3212 = vunpack.c.l.b16 %v2504
    %v3213 = vunpack.c.l.b16 %v2505
    %v3214 = vunpack.c.h.b16 %v2505
    %v3215 = vunpack.c.l.b16 %v2506
    %v3216 = vunpack.c.h.b16 %v2506
    %v3217 = vunpack.c.l.b16 %v2507
    %v3218 = vunpack.c.l.b16 %v2508
    %v3219 = vunpack.c.h.b16 %v2508
    %v3220 = vunpack.c.l.b16 %v2509
    %v3221 = vunpack.c.h.b16 %v2509
    %v3222 = vunpack.c.l.b16 %v2510
    %v3223 = vunpack.c.l.b16 %v2511
    %v3224 = vunpack.c.h.b16 %v2511
    %v3225 = vunpack.c.l.b16 %v2512
    %v3226 = vunpack.c.h.b16 %v2512
    %v3227 = vunpack.c.l.b16 %v2513
    %v3228 = vunpack.c.l.b16 %v2514
    %v3229 = vunpack.c.h.b16 %v2514
    %v3230 = vunpack.c.l.b16 %v2515
    %v3231 = vunpack.c.h.b16 %v2515
    %v3232 = vunpack.c.l.b16 %v2516
    %v3233 = vunpack.c.l.b16 %v2517
    %v3234 = vunpack.c.h.b16 %v2517
    %v3235 = vunpack.c.l.b16 %v2518
    %v3236 = vunpack.c.h.b16 %v2518
    %v3237 = vunpack.c.l.b16 %v2519
    %v3238 = vunpack.c.l.b16 %v2520
    %v3239 = vunpack.c.h.b16 %v2520
    %v3240 = vunpack.c.l.b16 %v2521
    %v3241 = vunpack.c.h.b16 %v2521
    %v3242 = vunpack.c.l.b16 %v2522
    %v3243 = vunpack.c.l.b16 %v2523
    %v3244 = vunpack.c.h.b16 %v2523
    %v3245 = vunpack.c.l.b16 %v2524
    %v3246 = vunpack.c.h.b16 %v2524
    %v3247 = vunpack.c.l.b16 %v2525
    %v3248 = vunpack.c.l.b16 %v2526
    %v3249 = vunpack.c.h.b16 %v2526
    %v3250 = vunpack.c.l.b16 %v2527
    %v3251 = vunpack.c.h.b16 %v2527
    %v3252 = vunpack.c.l.b16 %v2528
    %v3253 = vunpack.c.l.b16 %v2529
    %v3254 = vunpack.c.h.b16 %v2529
    %v3255 = vunpack.c.l.b16 %v2530
    %v3256 = vunpack.c.h.b16 %v2530
    %v3257 = vunpack.c.l.b16 %v2531
    %v3258 = vunpack.c.l.b16 %v2532
    %v3259 = vunpack.c.h.b16 %v2532
    %v3260 = vunpack.c.l.b16 %v2533
    %v3261 = vunpack.c.h.b16 %v2533
    %v3262 = vunpack.c.l.b16 %v2534
    %v3263 = vunpack.c.l.b16 %v2535
    %v3264 = vunpack.c.h.b16 %v2535
    %v3265 = vunpack.c.l.b16 %v2536
    %v3266 = vunpack.c.h.b16 %v2536
    %v3267 = vunpack.c.l.b16 %v2537
    %v3268 = vunpack.c.l.b16 %v2538
    %v3269 = vunpack.c.h.b16 %v2538
    %v3270 = vunpack.c.l.b16 %v2539
    %v3271 = vunpack.c.h.b16 %v2539
    %v3272 = vunpack.c.l.b16 %v2540
    %v3273 = vunpack.c.l.b16 %v2541
    %v3274 = vunpack.c.h.b16 %v2541
    %v3275 = vunpack.c.l.b16 %v2542
    %v3276 = vunpack.c.h.b16 %v2542
    %v3277 = vunpack.c.l.b16 %v2543
    %v3278 = vunpack.c.l.b16 %v2544
    %v3279 = vunpack.c.h.b16 %v2544
    %v3280 = vunpack.c.l.b16 %v2545
    %v3281 = vunpack.c.h.b16 %v2545
    %v3282 = vunpack.c.l.b16 %v2546
    %v3283 = vunpack.c.l.b16 %v2547
    %v3284 = vunpack.c.h.b16 %v2547
    %v3285 = vunpack.c.l.b16 %v2548
    %v3286 = vunpack.c.h.b16 %v2548
    %v3287 = vunpack.c.l.b16 %v2549
    %v3288 = vunpack.c.l.b16 %v2550
    %v3289 = vunpack.c.h.b16 %v2550
    %v3290 = vunpack.c.l.b16 %v2551
    %v3291 = vunpack.c.h.b16 %v2551
    %v3292 = vunpack.c.l.b16 %v2552
    %v3293 = vunpack.c.l.b16 %v2553
    %v3294 = vunpack.c.h.b16 %v2553
    %v3295 = vunpack.c.l.b16 %v2554
    %v3296 = vunpack.c.h.b16 %v2554
    %v3297 = vunpack.c.l.b16 %v2555
    %v3298 = vunpack.c.l.b16 %v2556
    %v3299 = vunpack.c.h.b16 %v2556
    %v3300 = vunpack.c.l.b16 %v2557
    %v3301 = vunpack.c.h.b16 %v2557
    %v3302 = vunpack.c.l.b16 %v2558
    %v3303 = vunpack.c.l.b16 %v2559
    %v3304 = vunpack.c.h.b16 %v2559
    %v3305 = vunpack.c.l.b16 %v2560
    %v3306 = vunpack.c.h.b16 %v2560
    %v3307 = vunpack.c.l.b16 %v2561
    %v3308 = vunpack.c.l.b16 %v2562
    %v3309 = vunpack.c.h.b16 %v2562
    %v3310 = vunpack.c.l.b16 %v2563
    %v3311 = vunpack.c.h.b16 %v2563
    %v3312 = vunpack.c.l.b16 %v2564
    %v3313 = vunpack.c.l.b16 %v2565
    %v3314 = vunpack.c.h.b16 %v2565
    %v3315 = vunpack.c.l.b16 %v2566
    %v3316 = vunpack.c.h.b16 %v2566
    %v3317 = vunpack.c.l.b16 %v2567
    %v3318 = vunpack.c.l.b16 %v2568
    %v3319 = vunpack.c.h.b16 %v2568
    %v3320 = vunpack.c.l.b16 %v2569
    %v3321 = vunpack.c.h.b16 %v2569
    %v3322 = vunpack.c.l.b16 %v2570
    %v3323 = vunpack.c.l.b16 %v2571
    %v3324 = vunpack.c.h.b16 %v2571
    %v3325 = vunpack.c.l.b16 %v2572
    %v3326 = vunpack.c.h.b16 %v2572
    %v3327 = vunpack.c.l.b16 %v2573
    %v3328 = vunpack.c.l.b16 %v2574
    %v3329 = vunpack.c.h.b16 %v2574
    %v3330 = vunpack.c.l.b16 %v2575
    %v3331 = vunpack.c.h.b16 %v2575
    %v3332 = vunpack.c.l.b16 %v2576
    %v3333 = vunpack.c.l.b16 %v2577
    %v3334 = vunpack.c.h.b16 %v2577
    %v3335 = vunpack.c.l.b16 %v2578
    %v3336 = vunpack.c.h.b16 %v2578
    %v3337 = vunpack.c.l.b16 %v2579
    %v3338 = vunpack.c.l.b16 %v2580
    %v3339 = vunpack.c.h.b16 %v2580
    %v3340 = vunpack.c.l.b16 %v2581
    %v3341 = vunpack.c.h.b16 %v2581
    %v3342 = vunpack.c.l.b16 %v2582
    %v3343 = vunpack.c.l.b16 %v2583
    %v3344 = vunpack.c.h.b16 %v2583
    %v3345 = vunpack.c.l.b16 %v2584
    %v3346 = vunpack.c.h.b16 %v2584
    %v3347 = vunpack.c.l.b16 %v2585
    %v3348 = vunpack.c.l.b16 %v2586
    %v3349 = vunpack.c.h.b16 %v2586
    %v3350 = vunpack.c.l.b16 %v2587
    %v3351 = vunpack.c.h.b16 %v2587
    %v3352 = vunpack.c.l.b16 %v2588
    %v3353 = vunpack.c.l.b16 %v2589
    %v3354 = vunpack.c.h.b16 %v2589
    %v3355 = vunpack.c.l.b16 %v2590
    %v3356 = vunpack.c.h.b16 %v2590
    %v3357 = vunpack.c.l.b16 %v2591
    %v3358 = vunpack.c.l.b16 %v2592
    %v3359 = vunpack.c.h.b16 %v2592
    %v3360 = vunpack.c.l.b16 %v2593
    %v3361 = vunpack.c.h.b16 %v2593
    %v3362 = vunpack.c.l.b16 %v2594
    %v3363 = vunpack.c.l.b16 %v2595
    %v3364 = vunpack.c.h.b16 %v2595
    %v3365 = vunpack.c.l.b16 %v2596
    %v3366 = vunpack.c.h.b16 %v2596
    %v3367 = vunpack.c.l.b16 %v2597
    %v3368 = vunpack.c.l.b16 %v2598
    %v3369 = vunpack.c.h.b16 %v2598
    %v3370 = vunpack.c.l.b16 %v2599
    %v3371 = vunpack.c.h.b16 %v2599
    %v3372 = vunpack.c.l.b16 %v2600
    %v3373 = vunpack.c.l.b16 %v2601
    %v3374 = vunpack.c.h.b16 %v2601
    %v3375 = vunpack.c.l.b16 %v2602
    %v3376 = vunpack.c.h.b16 %v2602
    %v3377 = vunpack.c.l.b16 %v2603
    %v3378 = vunpack.c.l.b16 %v2604
    %v3379 = vunpack.c.h.b16 %v2604
    %v3380 = vunpack.c.l.b16 %v2605
    %v3381 = vunpack.c.h.b16 %v2605
    %v3382 = vunpack.c.l.b16 %v2606
    %v3383 = vunpack.c.l.b16 %v2607
    %v3384 = vunpack.c.h.b16 %v2607
    %v3385 = vunpack.c.l.b16 %v2608
    %v3386 = vunpack.c.h.b16 %v2608
    %v3387 = vunpack.c.l.b16 %v2609
    %v3388 = vunpack.c.l.b16 %v2610
    %v3389 = vunpack.c.h.b16 %v2610
    %v3390 = vunpack.c.l.b16 %v2611
    %v3391 = vunpack.c.h.b16 %v2611
    %v3392 = vunpack.c.l.b16 %v2612
    %v3393 = vunpack.c.l.b16 %v2613
    %v3394 = vunpack.c.h.b16 %v2613
    %v3395 = vunpack.c.l.b16 %v2614
    %v3396 = vunpack.c.h.b16 %v2614
    %v3397 = vunpack.c.l.b16 %v2615
    %v3398 = vunpack.c.l.b16 %v2616
    %v3399 = vunpack.c.h.b16 %v2616
    %v3400 = vunpack.c.l.b16 %v2617
    %v3401 = vunpack.c.h.b16 %v2617
    %v3402 = vunpack.c.l.b16 %v2618
    %v3403 = vunpack.c.l.b16 %v2619
    %v3404 = vunpack.c.h.b16 %v2619
    %v3405 = vunpack.c.l.b16 %v2620
    %v3406 = vunpack.c.h.b16 %v2620
    %v3407 = vunpack.c.l.b16 %v2621
    %v3408 = vunpack.c.l.b16 %v2622
    %v3409 = vunpack.c.h.b16 %v2622
    %v3410 = vunpack.c.l.b16 %v2623
    %v3411 = vunpack.c.h.b16 %v2623
    %v3412 = vunpack.c.l.b16 %v2624
    %v3413 = vunpack.c.l.b16 %v2625
    %v3414 = vunpack.c.h.b16 %v2625
    %v3415 = vunpack.c.l.b16 %v2626
    %v3416 = vunpack.c.h.b16 %v2626
    %v3417 = vunpack.c.l.b16 %v2627
    %v3418 = vunpack.c.l.b16 %v2628
    %v3419 = vunpack.c.h.b16 %v2628
    %v3420 = vunpack.c.l.b16 %v2629
    %v3421 = vunpack.c.h.b16 %v2629
    %v3422 = vunpack.c.l.b16 %v2630
    %v3423 = vunpack.c.l.b16 %v2631
    %v3424 = vunpack.c.h.b16 %v2631
    %v3425 = vunpack.c.l.b16 %v2632
    %v3426 = vunpack.c.h.b16 %v2632
    %v3427 = vunpack.c.l.b16 %v2633
    %v3428 = vunpack.c.l.b16 %v2634
    %v3429 = vunpack.c.h.b16 %v2634
    %v3430 = vunpack.c.l.b16 %v2635
    %v3431 = vunpack.c.h.b16 %v2635
    %v3432 = vunpack.c.l.b16 %v2636
    %v3433 = vunpack.c.l.b16 %v2637
    %v3434 = vunpack.c.h.b16 %v2637
    %v3435 = vunpack.c.l.b16 %v2638
    %v3436 = vunpack.c.h.b16 %v2638
    %v3437 = vunpack.c.l.b16 %v2639
    %v3438 = vunpack.c.l.b16 %v2640
    %v3439 = vunpack.c.h.b16 %v2640
    %v3440 = vunpack.c.l.b16 %v2641
    %v3441 = vunpack.c.h.b16 %v2641
    %v3442 = vunpack.c.l.b16 %v2642
    %v3443 = vunpack.c.l.b16 %v2643
    %v3444 = vunpack.c.h.b16 %v2643
    %v3445 = vunpack.c.l.b16 %v2644
    %v3446 = vunpack.c.h.b16 %v2644
    %v3447 = vunpack.c.l.b16 %v2645
    %v3448 = vunpack.c.l.b16 %v2646
    %v3449 = vunpack.c.h.b16 %v2646
    %v3450 = vunpack.c.l.b16 %v2647
    %v3451 = vunpack.c.h.b16 %v2647
    %v3452 = vunpack.c.l.b16 %v2648
    %v3453 = vunpack.c.l.b16 %v2649
    %v3454 = vunpack.c.h.b16 %v2649
    %v3455 = vunpack.c.l.b16 %v2650
    %v3456 = vunpack.c.h.b16 %v2650
    %v3457 = vunpack.c.l.b16 %v2651
    %v3458 = vunpack.c.l.b16 %v2652
    %v3459 = vunpack.c.h.b16 %v2652
    %v3460 = vunpack.c.l.b16 %v2653
    %v3461 = vunpack.c.h.b16 %v2653
    %v3462 = vunpack.c.l.b16 %v2654
    %v3463 = vunpack.c.l.b16 %v2655
    %v3464 = vunpack.c.h.b16 %v2655
    %v3465 = vunpack.c.l.b16 %v2656
    %v3466 = vunpack.c.h.b16 %v2656
    %v3467 = vunpack.c.l.b16 %v2657
    %v3468 = vunpack.c.l.b16 %v2658
    %v3469 = vunpack.c.h.b16 %v2658
    %v3470 = vunpack.c.l.b16 %v2659
    %v3471 = vunpack.c.h.b16 %v2659
    %v3472 = vunpack.c.l.b16 %v2660
    %v3473 = vunpack.c.l.b16 %v2661
    %v3474 = vunpack.c.h.b16 %v2661
    %v3475 = vunpack.c.l.b16 %v2662
    %v3476 = vunpack.c.h.b16 %v2662
    %v3477 = vunpack.c.l.b16 %v2663
    %v3478 = vunpack.c.l.b16 %v2664
    %v3479 = vunpack.c.h.b16 %v2664
    %v3480 = vunpack.c.l.b16 %v2665
    %v3481 = vunpack.c.h.b16 %v2665
    %v3482 = vunpack.c.l.b16 %v2666
    %v3483 = vunpack.c.l.b16 %v2667
    %v3484 = vunpack.c.h.b16 %v2667
    %v3485 = vunpack.c.l.b16 %v2668
    %v3486 = vunpack.c.h.b16 %v2668
    %v3487 = vunpack.c.l.b16 %v2669
    %v3488 = vunpack.c.l.b16 %v2670
    %v3489 = vunpack.c.h.b16 %v2670
    %v3490 = vunpack.c.l.b16 %v2671
    %v3491 = vunpack.c.h.b16 %v2671
    %v3492 = vunpack.c.l.b16 %v2672
    %v3493 = vunpack.c.l.b16 %v2673
    %v3494 = vunpack.c.h.b16 %v2673
    %v3495 = vunpack.c.l.b16 %v2674
    %v3496 = vunpack.c.h.b16 %v2674
    %v3497 = vunpack.c.l.b16 %v2675
    %v3498 = vunpack.c.l.b16 %v2676
    %v3499 = vunpack.c.h.b16 %v2676
    %v3500 = vunpack.c.l.b16 %v2677
    %v3501 = vunpack.c.h.b16 %v2677
    %v3502 = vunpack.c.l.b16 %v2678
    %v3503 = vunpack.c.l.b16 %v2679
    %v3504 = vunpack.c.h.b16 %v2679
    %v3505 = vunpack.c.l.b16 %v2680
    %v3506 = vunpack.c.h.b16 %v2680
    %v3507 = vunpack.c.l.b16 %v2681
    %v3508 = vunpack.c.l.b16 %v2682
    %v3509 = vunpack.c.h.b16 %v2682
    %v3510 = vunpack.c.l.b16 %v2683
    %v3511 = vunpack.c.h.b16 %v2683
    %v3512 = vunpack.c.l.b16 %v2684
    %v3513 = vunpack.c.l.b16 %v2685
    %v3514 = vunpack.c.h.b16 %v2685
    %v3515 = vunpack.c.l.b16 %v2686
    %v3516 = vunpack.c.h.b16 %v2686
    %v3517 = vunpack.c.l.b16 %v2687
    %v3518 = vunpack.c.l.b16 %v2688
    %v3519 = vunpack.c.h.b16 %v2688
    %v3520 = vunpack.c.l.b16 %v2689
    %v3521 = vunpack.c.h.b16 %v2689
    %v3522 = vunpack.c.l.b16 %v2690
    %v3523 = vunpack.c.l.b16 %v2691
    %v3524 = vunpack.c.h.b16 %v2691
    %v3525 = vunpack.c.l.b16 %v2692
    %v3526 = vunpack.c.h.b16 %v2692
    %v3527 = vunpack.c.l.b16 %v2693
    %v3528 = vunpack.c.l.b16 %v2694
    %v3529 = vunpack.c.h.b16 %v2694
    %v3530 = vunpack.c.l.b16 %v2695
    %v3531 = vunpack.c.h.b16 %v2695
    %v3532 = vunpack.c.l.b16 %v2696
    %v3533 = vunpack.c.l.b16 %v2697
    %v3534 = vunpack.c.h.b16 %v2697
    %v3535 = vunpack.c.l.b16 %v2698
    %v3536 = vunpack.c.h.b16 %v2698
    %v3537 = vunpack.c.l.b16 %v2699
    %v3538 = vunpack.c.l.b16 %v2700
    %v3539 = vunpack.c.h.b16 %v2700
    %v3540 = vunpack.c.l.b16 %v2701
    %v3541 = vunpack.c.h.b16 %v2701
    %v3542 = vunpack.c.l.b16 %v2702
    %v3543 = vunpack.c.l.b16 %v2703
    %v3544 = vunpack.c.h.b16 %v2703
    %v3545 = vunpack.c.l.b16 %v2704
    %v3546 = vunpack.c.h.b16 %v2704
    %v3547 = vunpack.c.l.b16 %v2705
    %v3548 = vunpack.c.l.b16 %v2706
    %v3549 = vunpack.c.h.b16 %v2706
    %v3550 = vunpack.c.l.b16 %v2707
    %v3551 = vunpack.c.h.b16 %v2707
    %v3552 = vunpack.c.l.b16 %v2708
    %v3553 = vunpack.c.l.b16 %v2709
    %v3554 = vunpack.c.h.b16 %v2709
    %v3555 = vunpack.c.l.b16 %v2710
    %v3556 = vunpack.c.h.b16 %v2710
    %v3557 = vunpack.c.l.b16 %v2711
    %v3558 = vunpack.c.l.b16 %v2712
    %v3559 = vunpack.c.h.b16 %v2712
    %v3560 = vunpack.c.l.b16 %v2713
    %v3561 = vunpack.c.h.b16 %v2713
    %v3562 = vunpack.c.l.b16 %v2714
    %v3563 = vunpack.c.l.b16 %v2715
    %v3564 = vunpack.c.h.b16 %v2715
    %v3565 = vunpack.c.l.b16 %v2716
    %v3566 = vunpack.c.h.b16 %v2716
    %v3567 = vunpack.c.l.b16 %v2717
    %v3568 = vpack.c.b16 %v3093, %v3088
    %v3569 = vpack.c.b16 %v3094, %v3089
    %v3570 = vpack.c.b16 %v3095, %v3090
    %v3571 = vpack.c.b16 %v3096, %v3091
    %v3572 = vpack.c.b16 %v3097, %v3092
    %v3573 = vpack.c.b16 %v3103, %v3098
    %v3574 = vpack.c.b16 %v3104, %v3099
    %v3575 = vpack.c.b16 %v3105, %v3100
    %v3576 = vpack.c.b16 %v3106, %v3101
    %v3577 = vpack.c.b16 %v3107, %v3102
    %v3578 = vpack.c.b16 %v3113, %v3108
    %v3579 = vpack.c.b16 %v3114, %v3109
    %v3580 = vpack.c.b16 %v3115, %v3110
    %v3581 = vpack.c.b16 %v3116, %v3111
    %v3582 = vpack.c.b16 %v3117, %v3112
    %v3583 = vpack.c.b16 %v3123, %v3118
    %v3584 = vpack.c.b16 %v3124, %v3119
    %v3585 = vpack.c.b16 %v3125, %v3120
    %v3586 = vpack.c.b16 %v3126, %v3121
    %v3587 = vpack.c.b16 %v3127, %v3122
    %v3588 = vpack.c.b16 %v3133, %v3128
    %v3589 = vpack.c.b16 %v3134, %v3129
    %v3590 = vpack.c.b16 %v3135, %v3130
    %v3591 = vpack.c.b16 %v3136, %v3131
    %v3592 = vpack.c.b16 %v3137, %v3132
    %v3593 = vpack.c.b16 %v3143, %v3138
    %v3594 = vpack.c.b16 %v3144, %v3139
    %v3595 = vpack.c.b16 %v3145, %v3140
    %v3596 = vpack.c.b16 %v3146, %v3141
    %v3597 = vpack.c.b16 %v3147, %v3142
    %v3598 = vpack.c.b16 %v3153, %v3148
    %v3599 = vpack.c.b16 %v3154, %v3149
    %v3600 = vpack.c.b16 %v3155, %v3150
    %v3601 = vpack.c.b16 %v3156, %v3151
    %v3602 = vpack.c.b16 %v3157, %v3152
    %v3603 = vpack.c.b16 %v3163, %v3158
    %v3604 = vpack.c.b16 %v3164, %v3159
    %v3605 = vpack.c.b16 %v3165, %v3160
    %v3606 = vpack.c.b16 %v3166, %v3161
    %v3607 = vpack.c.b16 %v3167, %v3162
    %v3608 = vpack.c.b16 %v3173, %v3168
    %v3609 = vpack.c.b16 %v3174, %v3169
    %v3610 = vpack.c.b16 %v3175, %v3170
    %v3611 = vpack.c.b16 %v3176, %v3171
    %v3612 = vpack.c.b16 %v3177, %v3172
    %v3613 = vpack.c.b16 %v3183, %v3178
    %v3614 = vpack.c.b16 %v3184, %v3179
    %v3615 = vpack.c.b16 %v3185, %v3180
    %v3616 = vpack.c.b16 %v3186, %v3181
    %v3617 = vpack.c.b16 %v3187, %v3182
    %v3618 = vpack.c.b16 %v3193, %v3188
    %v3619 = vpack.c.b16 %v3194, %v3189
    %v3620 = vpack.c.b16 %v3195, %v3190
    %v3621 = vpack.c.b16 %v3196, %v3191
    %v3622 = vpack.c.b16 %v3197, %v3192
    %v3623 = vpack.c.b16 %v3203, %v3198
    %v3624 = vpack.c.b16 %v3204, %v3199
    %v3625 = vpack.c.b16 %v3205, %v3200
    %v3626 = vpack.c.b16 %v3206, %v3201
    %v3627 = vpack.c.b16 %v3207, %v3202
    %v3628 = vpack.c.b16 %v3213, %v3208
    %v3629 = vpack.c.b16 %v3214, %v3209
    %v3630 = vpack.c.b16 %v3215, %v3210
    %v3631 = vpack.c.b16 %v3216, %v3211
    %v3632 = vpack.c.b16 %v3217, %v3212
    %v3633 = vpack.c.b16 %v3223, %v3218
    %v3634 = vpack.c.b16 %v3224, %v3219
    %v3635 = vpack.c.b16 %v3225, %v3220
    %v3636 = vpack.c.b16 %v3226, %v3221
    %v3637 = vpack.c.b16 %v3227, %v3222
    %v3638 = vpack.c.b16 %v3233, %v3228
    %v3639 = vpack.c.b16 %v3234, %v3229
    %v3640 = vpack.c.b16 %v3235, %v3230
    %v3641 = vpack.c.b16 %v3236, %v3231
    %v3642 = vpack.c.b16 %v3237, %v3232
    %v3643 = vpack.c.b16 %v3243, %v3238
    %v3644 = vpack.c.b16 %v3244, %v3239
    %v3645 = vpack.c.b16 %v3245, %v3240
    %v3646 = vpack.c.b16 %v3246, %v3241
    %v3647 = vpack.c.b16 %v3247, %v3242
    %v3648 = vpack.c.b16 %v3253, %v3248
    %v3649 = vpack.c.b16 %v3254, %v3249
    %v3650 = vpack.c.b16 %v3255, %v3250
    %v3651 = vpack.c.b16 %v3256, %v3251
    %v3652 = vpack.c.b16 %v3257, %v3252
    %v3653 = vpack.c.b16 %v3263, %v3258
    %v3654 = vpack.c.b16 %v3264, %v3259
    %v3655 = vpack.c.b16 %v3265, %v3260
    %v3656 = vpack.c.b16 %v3266, %v3261
    %v3657 = vpack.c.b16 %v3267, %v3262
    %v3658 = vpack.c.b16 %v3273, %v3268
    %v3659 = vpack.c.b16 %v3274, %v3269
    %v3660 = vpack.c.b16 %v3275, %v3270
    %v3661 = vpack.c.b16 %v3276, %v3271
    %v3662 = vpack.c.b16 %v3277, %v3272
    %v3663 = vpack.c.b16 %v3283, %v3278
    %v3664 = vpack.c.b16 %v3284, %v3279
    %v3665 = vpack.c.b16 %v3285, %v3280
    %v3666 = vpack.c.b16 %v3286, %v3281
    %v3667 = vpack.c.b16 %v3287, %v3282
    %v3668 = vpack.c.b16 %v3293, %v3288
    %v3669 = vpack.c.b16 %v3294, %v3289
    %v3670 = vpack.c.b16 %v3295, %v3290
    %v3671 = vpack.c.b16 %v3296, %v3291
    %v3672 = vpack.c.b16 %v3297, %v3292
    %v3673 = vpack.c.b16 %v3303, %v3298
    %v3674 = vpack.c.b16 %v3304, %v3299
    %v3675 = vpack.c.b16 %v3305, %v3300
    %v3676 = vpack.c.b16 %v3306, %v3301
    %v3677 = vpack.c.b16 %v3307, %v3302
    %v3678 = vpack.c.b16 %v3313, %v3308
    %v3679 = vpack.c.b16 %v3314, %v3309
    %v3680 = vpack.c.b16 %v3315, %v3310
    %v3681 = vpack.c.b16 %v3316, %v3311
    %v3682 = vpack.c.b16 %v3317, %v3312
    %v3683 = vpack.c.b16 %v3323, %v3318
    %v3684 = vpack.c.b16 %v3324, %v3319
    %v3685 = vpack.c.b16 %v3325, %v3320
    %v3686 = vpack.c.b16 %v3326, %v3321
    %v3687 = vpack.c.b16 %v3327, %v3322
    %v3688 = vpack.c.b16 %v3333, %v3328
    %v3689 = vpack.c.b16 %v3334, %v3329
    %v3690 = vpack.c.b16 %v3335, %v3330
    %v3691 = vpack.c.b16 %v3336, %v3331
    %v3692 = vpack.c.b16 %v3337, %v3332
    %v3693 = vpack.c.b16 %v3343, %v3338
    %v3694 = vpack.c.b16 %v3344, %v3339
    %v3695 = vpack.c.b16 %v3345, %v3340
    %v3696 = vpack.c.b16 %v3346, %v3341
    %v3697 = vpack.c.b16 %v3347, %v3342
    %v3698 = vpack.c.b16 %v3353, %v3348
    %v3699 = vpack.c.b16 %v3354, %v3349
    %v3700 = vpack.c.b16 %v3355, %v3350
    %v3701 = vpack.c.b16 %v3356, %v3351
    %v3702 = vpack.c.b16 %v3357, %v3352
    %v3703 = vpack.c.b16 %v3363, %v3358
    %v3704 = vpack.c.b16 %v3364, %v3359
    %v3705 = vpack.c.b16 %v3365, %v3360
    %v3706 = vpack.c.b16 %v3366, %v3361
    %v3707 = vpack.c.b16 %v3367, %v3362
    %v3708 = vpack.c.b16 %v3373, %v3368
    %v3709 = vpack.c.b16 %v3374, %v3369
    %v3710 = vpack.c.b16 %v3375, %v3370
    %v3711 = vpack.c.b16 %v3376, %v3371
    %v3712 = vpack.c.b16 %v3377, %v3372
    %v3713 = vpack.c.b16 %v3383, %v3378
    %v3714 = vpack.c.b16 %v3384, %v3379
    %v3715 = vpack.c.b16 %v3385, %v3380
    %v3716 = vpack.c.b16 %v3386, %v3381
    %v3717 = vpack.c.b16 %v3387, %v3382
    %v3718 = vpack.c.b16 %v3393, %v3388
    %v3719 = vpack.c.b16 %v3394, %v3389
    %v3720 = vpack.c.b16 %v3395, %v3390
    %v3721 = vpack.c.b16 %v3396, %v3391
    %v3722 = vpack.c.b16 %v3397, %v3392
    %v3723 = vpack.c.b16 %v3403, %v3398
    %v3724 = vpack.c.b16 %v3404, %v3399
    %v3725 = vpack.c.b16 %v3405, %v3400
    %v3726 = vpack.c.b16 %v3406, %v3401
    %v3727 = vpack.c.b16 %v3407, %v3402
    %v3728 = vpack.c.b16 %v3413, %v3408
    %v3729 = vpack.c.b16 %v3414, %v3409
    %v3730 = vpack.c.b16 %v3415, %v3410
    %v3731 = vpack.c.b16 %v3416, %v3411
    %v3732 = vpack.c.b16 %v3417, %v3412
    %v3733 = vpack.c.b16 %v3423, %v3418
    %v3734 = vpack.c.b16 %v3424, %v3419
    %v3735 = vpack.c.b16 %v3425, %v3420
    %v3736 = vpack.c.b16 %v3426, %v3421
    %v3737 = vpack.c.b16 %v3427, %v3422
    %v3738 = vpack.c.b16 %v3433, %v3428
    %v3739 = vpack.c.b16 %v3434, %v3429
    %v3740 = vpack.c.b16 %v3435, %v3430
    %v3741 = vpack.c.b16 %v3436, %v3431
    %v3742 = vpack.c.b16 %v3437, %v3432
    %v3743 = vpack.c.b16 %v3443, %v3438
    %v3744 = vpack.c.b16 %v3444, %v3439
    %v3745 = vpack.c.b16 %v3445, %v3440
    %v3746 = vpack.c.b16 %v3446, %v3441
    %v3747 = vpack.c.b16 %v3447, %v3442
    %v3748 = vpack.c.b16 %v3453, %v3448
    %v3749 = vpack.c.b16 %v3454, %v3449
    %v3750 = vpack.c.b16 %v3455, %v3450
    %v3751 = vpack.c.b16 %v3456, %v3451
    %v3752 = vpack.c.b16 %v3457, %v3452
    %v3753 = vpack.c.b16 %v3463, %v3458
    %v3754 = vpack.c.b16 %v3464, %v3459
    %v3755 = vpack.c.b16 %v3465, %v3460
    %v3756 = vpack.c.b16 %v3466, %v3461
    %v3757 = vpack.c.b16 %v3467, %v3462
    %v3758 = vpack.c.b16 %v3473, %v3468
    %v3759 = vpack.c.b16 %v3474, %v3469
    %v3760 = vpack.c.b16 %v3475, %v3470
    %v3761 = vpack.c.b16 %v3476, %v3471
    %v3762 = vpack.c.b16 %v3477, %v3472
    %v3763 = vpack.c.b16 %v3483, %v3478
    %v3764 = vpack.c.b16 %v3484, %v3479
    %v3765 = vpack.c.b16 %v3485, %v3480
    %v3766 = vpack.c.b16 %v3486, %v3481
    %v3767 = vpack.c.b16 %v3487, %v3482
    %v3768 = vpack.c.b16 %v3493, %v3488
    %v3769 = vpack.c.b16 %v3494, %v3489
    %v3770 = vpack.c.b16 %v3495, %v3490
    %v3771 = vpack.c.b16 %v3496, %v3491
    %v3772 = vpack.c.b16 %v3497, %v3492
    %v3773 = vpack.c.b16 %v3503, %v3498
    %v3774 = vpack.c.b16 %v3504, %v3499
    %v3775 = vpack.c.b16 %v3505, %v3500
    %v3776 = vpack.c.b16 %v3506, %v3501
    %v3777 = vpack.c.b16 %v3507, %v3502
    %v3778 = vpack.c.b16 %v3513, %v3508
    %v3779 = vpack.c.b16 %v3514, %v3509
    %v3780 = vpack.c.b16 %v3515, %v3510
    %v3781 = vpack.c.b16 %v3516, %v3511
    %v3782 = vpack.c.b16 %v3517, %v3512
    %v3783 = vpack.c.b16 %v3523, %v3518
    %v3784 = vpack.c.b16 %v3524, %v3519
    %v3785 = vpack.c.b16 %v3525, %v3520
    %v3786 = vpack.c.b16 %v3526, %v3521
    %v3787 = vpack.c.b16 %v3527, %v3522
    %v3788 = vpack.c.b16 %v3533, %v3528
    %v3789 = vpack.c.b16 %v3534, %v3529
    %v3790 = vpack.c.b16 %v3535, %v3530
    %v3791 = vpack.c.b16 %v3536, %v3531
    %v3792 = vpack.c.b16 %v3537, %v3532
    %v3793 = vpack.c.b16 %v3543, %v3538
    %v3794 = vpack.c.b16 %v3544, %v3539
    %v3795 = vpack.c.b16 %v3545, %v3540
    %v3796 = vpack.c.b16 %v3546, %v3541
    %v3797 = vpack.c.b16 %v3547, %v3542
    %v3798 = vpack.c.b16 %v3553, %v3548
    %v3799 = vpack.c.b16 %v3554, %v3549
    %v3800 = vpack.c.b16 %v3555, %v3550
    %v3801 = vpack.c.b16 %v3556, %v3551
    %v3802 = vpack.c.b16 %v3557, %v3552
    %v3803 = vpack.c.b16 %v3563, %v3558
    %v3804 = vpack.c.b16 %v3564, %v3559
    %v3805 = vpack.c.b16 %v3565, %v3560
    %v3806 = vpack.c.b16 %v3566, %v3561
    %v3807 = vpack.c.b16 %v3567, %v3562
    %4048 = vmatprep.subr.bf16.mxu0 %v3604
    %4049 = vmatpush1.bf16.msra.mxu0 %v3603
    %4050 = vmatprep.subr.bf16.mxu0 %v3599
    %4051 = vmatpush1.bf16.msra.mxu0 %v3598
    %4052 = vmatprep.subr.bf16.mxu0 %v3594
    %4053 = vmatpush1.bf16.msra.mxu0 %v3593
    %4054 = vmatprep.subr.bf16.mxu0 %v3589
    %4055 = vmatpush1.bf16.msra.mxu0 %v3588
    %4056 = vmatprep.subr.bf16.mxu0 %v3584
    %4057 = vmatpush1.bf16.msra.mxu0 %v3583
    %4058 = vmatprep.subr.bf16.mxu0 %v3579
    %4059 = vmatpush1.bf16.msra.mxu0 %v3578
    %4060 = vmatprep.subr.bf16.mxu0 %v3574
    %4061 = vmatpush1.bf16.msra.mxu0 %v3573
    %4062 = vmatprep.subr.bf16.mxu0 %v3569
    %4063 = vmatpush1.bf16.msra.mxu0 %v3568
    %4064 = vmatprep.subr.bf16.mxu0 %v3644
    %4065 = vmatpush2.bf16.msra.mxu0 %v3643
    %4066 = vmatprep.subr.bf16.mxu0 %v3639
    %4067 = vmatpush2.bf16.msra.mxu0 %v3638
    %4068 = vmatprep.subr.bf16.mxu0 %v3634
    %4069 = vmatpush2.bf16.msra.mxu0 %v3633
    %4070 = vmatprep.subr.bf16.mxu0 %v3629
    %4071 = vmatpush2.bf16.msra.mxu0 %v3628
    %4072 = vmatprep.subr.bf16.mxu0 %v3624
    %4073 = vmatpush2.bf16.msra.mxu0 %v3623
    %4074 = vmatprep.subr.bf16.mxu0 %v3619
    %4075 = vmatpush2.bf16.msra.mxu0 %v3618
    %4076 = vmatprep.subr.bf16.mxu0 %v3614
    %4077 = vmatpush2.bf16.msra.mxu0 %v3613
    %4078 = vmatprep.subr.bf16.mxu0 %v3609
    %4079 = vmatpush2.bf16.msra.mxu0 %v3608
    %4080 = vmatprep.mubr.bf16.mxu0 %v2784
    %4081 = vmatmul.mubr.bf16.gmra.mxu0 %v2770
    %v4082 = vpop.f32.mrf.mxu0
    %v4083 = vadd.f32 %v2724, %v4082
    %v4084 = vpop.f32.mrf.mxu0
    %v4085 = vadd.f32 %v2728, %v4084
    %v4086 = vpop.f32.mrf.mxu0
    %v4087 = vpop.f32.mrf.mxu0
    %4088 = vdwg.mxu0
    %4089 = vmatprep.subr.bf16.mxu0 %v3684
    %4090 = vmatpush1.bf16.msra.mxu0 %v3683
    %4091 = vmatprep.subr.bf16.mxu0 %v3679
    %4092 = vmatpush1.bf16.msra.mxu0 %v3678
    %4093 = vmatprep.subr.bf16.mxu0 %v3674
    %4094 = vmatpush1.bf16.msra.mxu0 %v3673
    %4095 = vmatprep.subr.bf16.mxu0 %v3669
    %4096 = vmatpush1.bf16.msra.mxu0 %v3668
    %4097 = vmatprep.subr.bf16.mxu0 %v3664
    %4098 = vmatpush1.bf16.msra.mxu0 %v3663
    %4099 = vmatprep.subr.bf16.mxu0 %v3659
    %4100 = vmatpush1.bf16.msra.mxu0 %v3658
    %4101 = vmatprep.subr.bf16.mxu0 %v3654
    %4102 = vmatpush1.bf16.msra.mxu0 %v3653
    %4103 = vmatprep.subr.bf16.mxu0 %v3649
    %4104 = vmatpush1.bf16.msra.mxu0 %v3648
    %4105 = vmatprep.subr.bf16.mxu0 %v3724
    %4106 = vmatpush2.bf16.msra.mxu0 %v3723
    %4107 = vmatprep.subr.bf16.mxu0 %v3719
    %4108 = vmatpush2.bf16.msra.mxu0 %v3718
    %4109 = vmatprep.subr.bf16.mxu0 %v3714
    %4110 = vmatpush2.bf16.msra.mxu0 %v3713
    %4111 = vmatprep.subr.bf16.mxu0 %v3709
    %4112 = vmatpush2.bf16.msra.mxu0 %v3708
    %4113 = vmatprep.subr.bf16.mxu0 %v3704
    %4114 = vmatpush2.bf16.msra.mxu0 %v3703
    %4115 = vmatprep.subr.bf16.mxu0 %v3699
    %4116 = vmatpush2.bf16.msra.mxu0 %v3698
    %4117 = vmatprep.subr.bf16.mxu0 %v3694
    %4118 = vmatpush2.bf16.msra.mxu0 %v3693
    %4119 = vmatprep.subr.bf16.mxu0 %v3689
    %4120 = vmatpush2.bf16.msra.mxu0 %v3688
    %4121 = vmatprep.mubr.bf16.mxu0 %v2793
    %4122 = vmatmul.mubr.bf16.gmra.mxu0 %v2792
    %v4123 = vpop.f32.mrf.mxu0
    %v4124 = vadd.f32 %v4083, %v4123
    %v4125 = vpop.f32.mrf.mxu0
    %v4126 = vadd.f32 %v4085, %v4125
    %v4127 = vpop.f32.mrf.mxu0
    %v4128 = vpop.f32.mrf.mxu0
    %4129 = vdwg.mxu0
    %4130 = vmatprep.subr.bf16.mxu0 %v3764
    %4131 = vmatpush1.bf16.msra.mxu0 %v3763
    %4132 = vmatprep.subr.bf16.mxu0 %v3759
    %4133 = vmatpush1.bf16.msra.mxu0 %v3758
    %4134 = vmatprep.subr.bf16.mxu0 %v3754
    %4135 = vmatpush1.bf16.msra.mxu0 %v3753
    %4136 = vmatprep.subr.bf16.mxu0 %v3749
    %4137 = vmatpush1.bf16.msra.mxu0 %v3748
    %4138 = vmatprep.subr.bf16.mxu0 %v3744
    %4139 = vmatpush1.bf16.msra.mxu0 %v3743
    %4140 = vmatprep.subr.bf16.mxu0 %v3739
    %4141 = vmatpush1.bf16.msra.mxu0 %v3738
    %4142 = vmatprep.subr.bf16.mxu0 %v3734
    %4143 = vmatpush1.bf16.msra.mxu0 %v3733
    %4144 = vmatprep.subr.bf16.mxu0 %v3729
    %4145 = vmatpush1.bf16.msra.mxu0 %v3728
    %4146 = vmatprep.subr.bf16.mxu0 %v3804
    %4147 = vmatpush2.bf16.msra.mxu0 %v3803
    %4148 = vmatprep.subr.bf16.mxu0 %v3799
    %4149 = vmatpush2.bf16.msra.mxu0 %v3798
    %4150 = vmatprep.subr.bf16.mxu0 %v3794
    %4151 = vmatpush2.bf16.msra.mxu0 %v3793
    %4152 = vmatprep.subr.bf16.mxu0 %v3789
    %4153 = vmatpush2.bf16.msra.mxu0 %v3788
    %4154 = vmatprep.subr.bf16.mxu0 %v3784
    %4155 = vmatpush2.bf16.msra.mxu0 %v3783
    %4156 = vmatprep.subr.bf16.mxu0 %v3779
    %4157 = vmatpush2.bf16.msra.mxu0 %v3778
    %4158 = vmatprep.subr.bf16.mxu0 %v3774
    %4159 = vmatpush2.bf16.msra.mxu0 %v3773
    %4160 = vmatprep.subr.bf16.mxu0 %v3769
    %4161 = vmatpush2.bf16.msra.mxu0 %v3768
    %4162 = vmatprep.mubr.bf16.mxu0 %v2791
    %4163 = vmatmul.mubr.bf16.gmra.mxu0 %v2777
    %v4164 = vpop.f32.mrf.mxu0
    %v4165 = vadd.f32 %v4124, %v4164
    %v4166 = vpop.f32.mrf.mxu0
    %v4167 = vadd.f32 %v4126, %v4166
    %v4168 = vpop.f32.mrf.mxu0
    %v4169 = vpop.f32.mrf.mxu0
    %4170 = vdwg.mxu0
    %4171 = vmatprep.subr.bf16.mxu0 %v3606
    %4172 = vmatpush1.bf16.msra.mxu0 %v3605
    %4173 = vmatprep.subr.bf16.mxu0 %v3601
    %4174 = vmatpush1.bf16.msra.mxu0 %v3600
    %4175 = vmatprep.subr.bf16.mxu0 %v3596
    %4176 = vmatpush1.bf16.msra.mxu0 %v3595
    %4177 = vmatprep.subr.bf16.mxu0 %v3591
    %4178 = vmatpush1.bf16.msra.mxu0 %v3590
    %4179 = vmatprep.subr.bf16.mxu0 %v3586
    %4180 = vmatpush1.bf16.msra.mxu0 %v3585
    %4181 = vmatprep.subr.bf16.mxu0 %v3581
    %4182 = vmatpush1.bf16.msra.mxu0 %v3580
    %4183 = vmatprep.subr.bf16.mxu0 %v3576
    %4184 = vmatpush1.bf16.msra.mxu0 %v3575
    %4185 = vmatprep.subr.bf16.mxu0 %v3571
    %4186 = vmatpush1.bf16.msra.mxu0 %v3570
    %4187 = vmatprep.subr.bf16.mxu0 %v3646
    %4188 = vmatpush2.bf16.msra.mxu0 %v3645
    %4189 = vmatprep.subr.bf16.mxu0 %v3641
    %4190 = vmatpush2.bf16.msra.mxu0 %v3640
    %4191 = vmatprep.subr.bf16.mxu0 %v3636
    %4192 = vmatpush2.bf16.msra.mxu0 %v3635
    %4193 = vmatprep.subr.bf16.mxu0 %v3631
    %4194 = vmatpush2.bf16.msra.mxu0 %v3630
    %4195 = vmatprep.subr.bf16.mxu0 %v3626
    %4196 = vmatpush2.bf16.msra.mxu0 %v3625
    %4197 = vmatprep.subr.bf16.mxu0 %v3621
    %4198 = vmatpush2.bf16.msra.mxu0 %v3620
    %4199 = vmatprep.subr.bf16.mxu0 %v3616
    %4200 = vmatpush2.bf16.msra.mxu0 %v3615
    %4201 = vmatprep.subr.bf16.mxu0 %v3611
    %4202 = vmatpush2.bf16.msra.mxu0 %v3610
    %4203 = vmatprep.mubr.bf16.mxu0 %v2784
    %4204 = vmatmul.mubr.bf16.gmra.mxu0 %v2770
    %v4205 = vpop.f32.mrf.mxu0
    %v4206 = vadd.f32 %v2732, %v4205
    %v4207 = vpop.f32.mrf.mxu0
    %v4208 = vadd.f32 %v2736, %v4207
    %v4209 = vpop.f32.mrf.mxu0
    %v4210 = vpop.f32.mrf.mxu0
    %4211 = vdwg.mxu0
    %4212 = vmatprep.subr.bf16.mxu0 %v3686
    %4213 = vmatpush1.bf16.msra.mxu0 %v3685
    %4214 = vmatprep.subr.bf16.mxu0 %v3681
    %4215 = vmatpush1.bf16.msra.mxu0 %v3680
    %4216 = vmatprep.subr.bf16.mxu0 %v3676
    %4217 = vmatpush1.bf16.msra.mxu0 %v3675
    %4218 = vmatprep.subr.bf16.mxu0 %v3671
    %4219 = vmatpush1.bf16.msra.mxu0 %v3670
    %4220 = vmatprep.subr.bf16.mxu0 %v3666
    %4221 = vmatpush1.bf16.msra.mxu0 %v3665
    %4222 = vmatprep.subr.bf16.mxu0 %v3661
    %4223 = vmatpush1.bf16.msra.mxu0 %v3660
    %4224 = vmatprep.subr.bf16.mxu0 %v3656
    %4225 = vmatpush1.bf16.msra.mxu0 %v3655
    %4226 = vmatprep.subr.bf16.mxu0 %v3651
    %4227 = vmatpush1.bf16.msra.mxu0 %v3650
    %4228 = vmatprep.subr.bf16.mxu0 %v3726
    %4229 = vmatpush2.bf16.msra.mxu0 %v3725
    %4230 = vmatprep.subr.bf16.mxu0 %v3721
    %4231 = vmatpush2.bf16.msra.mxu0 %v3720
    %4232 = vmatprep.subr.bf16.mxu0 %v3716
    %4233 = vmatpush2.bf16.msra.mxu0 %v3715
    %4234 = vmatprep.subr.bf16.mxu0 %v3711
    %4235 = vmatpush2.bf16.msra.mxu0 %v3710
    %4236 = vmatprep.subr.bf16.mxu0 %v3706
    %4237 = vmatpush2.bf16.msra.mxu0 %v3705
    %4238 = vmatprep.subr.bf16.mxu0 %v3701
    %4239 = vmatpush2.bf16.msra.mxu0 %v3700
    %4240 = vmatprep.subr.bf16.mxu0 %v3696
    %4241 = vmatpush2.bf16.msra.mxu0 %v3695
    %4242 = vmatprep.subr.bf16.mxu0 %v3691
    %4243 = vmatpush2.bf16.msra.mxu0 %v3690
    %4244 = vmatprep.mubr.bf16.mxu0 %v2793
    %4245 = vmatmul.mubr.bf16.gmra.mxu0 %v2792
    %v4246 = vpop.f32.mrf.mxu0
    %v4247 = vadd.f32 %v4206, %v4246
    %v4248 = vpop.f32.mrf.mxu0
    %v4249 = vadd.f32 %v4208, %v4248
    %v4250 = vpop.f32.mrf.mxu0
    %v4251 = vpop.f32.mrf.mxu0
    %4252 = vdwg.mxu0
    %4253 = vmatprep.subr.bf16.mxu0 %v3766
    %4254 = vmatpush1.bf16.msra.mxu0 %v3765
    %4255 = vmatprep.subr.bf16.mxu0 %v3761
    %4256 = vmatpush1.bf16.msra.mxu0 %v3760
    %4257 = vmatprep.subr.bf16.mxu0 %v3756
    %4258 = vmatpush1.bf16.msra.mxu0 %v3755
    %4259 = vmatprep.subr.bf16.mxu0 %v3751
    %4260 = vmatpush1.bf16.msra.mxu0 %v3750
    %4261 = vmatprep.subr.bf16.mxu0 %v3746
    %4262 = vmatpush1.bf16.msra.mxu0 %v3745
    %4263 = vmatprep.subr.bf16.mxu0 %v3741
    %4264 = vmatpush1.bf16.msra.mxu0 %v3740
    %4265 = vmatprep.subr.bf16.mxu0 %v3736
    %4266 = vmatpush1.bf16.msra.mxu0 %v3735
    %4267 = vmatprep.subr.bf16.mxu0 %v3731
    %4268 = vmatpush1.bf16.msra.mxu0 %v3730
    %4269 = vmatprep.subr.bf16.mxu0 %v3806
    %4270 = vmatpush2.bf16.msra.mxu0 %v3805
    %4271 = vmatprep.subr.bf16.mxu0 %v3801
    %4272 = vmatpush2.bf16.msra.mxu0 %v3800
    %4273 = vmatprep.subr.bf16.mxu0 %v3796
    %4274 = vmatpush2.bf16.msra.mxu0 %v3795
    %4275 = vmatprep.subr.bf16.mxu0 %v3791
    %4276 = vmatpush2.bf16.msra.mxu0 %v3790
    %4277 = vmatprep.subr.bf16.mxu0 %v3786
    %4278 = vmatpush2.bf16.msra.mxu0 %v3785
    %4279 = vmatprep.subr.bf16.mxu0 %v3781
    %4280 = vmatpush2.bf16.msra.mxu0 %v3780
    %4281 = vmatprep.subr.bf16.mxu0 %v3776
    %4282 = vmatpush2.bf16.msra.mxu0 %v3775
    %4283 = vmatprep.subr.bf16.mxu0 %v3771
    %4284 = vmatpush2.bf16.msra.mxu0 %v3770
    %4285 = vmatprep.mubr.bf16.mxu0 %v2791
    %4286 = vmatmul.mubr.bf16.gmra.mxu0 %v2777
    %v4287 = vpop.f32.mrf.mxu0
    %v4288 = vadd.f32 %v4247, %v4287
    %v4289 = vpop.f32.mrf.mxu0
    %v4290 = vadd.f32 %v4249, %v4289
    %v4291 = vpop.f32.mrf.mxu0
    %v4292 = vpop.f32.mrf.mxu0
    %4293 = vdwg.mxu0
    %4294 = vmatprep.subr.bf16.mxu0 0
    %4295 = vmatpush1.bf16.msra.mxu0 %v3607
    %4296 = vmatprep.subr.bf16.mxu0 0
    %4297 = vmatpush1.bf16.msra.mxu0 %v3602
    %4298 = vmatprep.subr.bf16.mxu0 0
    %4299 = vmatpush1.bf16.msra.mxu0 %v3597
    %4300 = vmatprep.subr.bf16.mxu0 0
    %4301 = vmatpush1.bf16.msra.mxu0 %v3592
    %4302 = vmatprep.subr.bf16.mxu0 0
    %4303 = vmatpush1.bf16.msra.mxu0 %v3587
    %4304 = vmatprep.subr.bf16.mxu0 0
    %4305 = vmatpush1.bf16.msra.mxu0 %v3582
    %4306 = vmatprep.subr.bf16.mxu0 0
    %4307 = vmatpush1.bf16.msra.mxu0 %v3577
    %4308 = vmatprep.subr.bf16.mxu0 0
    %4309 = vmatpush1.bf16.msra.mxu0 %v3572
    %4310 = vmatprep.subr.bf16.mxu0 0
    %4311 = vmatpush2.bf16.msra.mxu0 %v3647
    %4312 = vmatprep.subr.bf16.mxu0 0
    %4313 = vmatpush2.bf16.msra.mxu0 %v3642
    %4314 = vmatprep.subr.bf16.mxu0 0
    %4315 = vmatpush2.bf16.msra.mxu0 %v3637
    %4316 = vmatprep.subr.bf16.mxu0 0
    %4317 = vmatpush2.bf16.msra.mxu0 %v3632
    %4318 = vmatprep.subr.bf16.mxu0 0
    %4319 = vmatpush2.bf16.msra.mxu0 %v3627
    %4320 = vmatprep.subr.bf16.mxu0 0
    %4321 = vmatpush2.bf16.msra.mxu0 %v3622
    %4322 = vmatprep.subr.bf16.mxu0 0
    %4323 = vmatpush2.bf16.msra.mxu0 %v3617
    %4324 = vmatprep.subr.bf16.mxu0 0
    %4325 = vmatpush2.bf16.msra.mxu0 %v3612
    %4326 = vmatprep.mubr.bf16.mxu0 %v2784
    %4327 = vmatmul.mubr.bf16.gmra.mxu0 %v2770
    %v4328 = vpop.f32.mrf.mxu0
    %v4329 = vadd.f32 %v2740, %v4328
    %v4330 = vpop.f32.mrf.mxu0
    %v4331 = vpop.f32.mrf.mxu0
    %v4332 = vpop.f32.mrf.mxu0
    %4333 = vdwg.mxu0
    %4334 = vmatprep.subr.bf16.mxu0 0
    %4335 = vmatpush1.bf16.msra.mxu0 %v3687
    %4336 = vmatprep.subr.bf16.mxu0 0
    %4337 = vmatpush1.bf16.msra.mxu0 %v3682
    %4338 = vmatprep.subr.bf16.mxu0 0
    %4339 = vmatpush1.bf16.msra.mxu0 %v3677
    %4340 = vmatprep.subr.bf16.mxu0 0
    %4341 = vmatpush1.bf16.msra.mxu0 %v3672
    %4342 = vmatprep.subr.bf16.mxu0 0
    %4343 = vmatpush1.bf16.msra.mxu0 %v3667
    %4344 = vmatprep.subr.bf16.mxu0 0
    %4345 = vmatpush1.bf16.msra.mxu0 %v3662
    %4346 = vmatprep.subr.bf16.mxu0 0
    %4347 = vmatpush1.bf16.msra.mxu0 %v3657
    %4348 = vmatprep.subr.bf16.mxu0 0
    %4349 = vmatpush1.bf16.msra.mxu0 %v3652
    %4350 = vmatprep.subr.bf16.mxu0 0
    %4351 = vmatpush2.bf16.msra.mxu0 %v3727
    %4352 = vmatprep.subr.bf16.mxu0 0
    %4353 = vmatpush2.bf16.msra.mxu0 %v3722
    %4354 = vmatprep.subr.bf16.mxu0 0
    %4355 = vmatpush2.bf16.msra.mxu0 %v3717
    %4356 = vmatprep.subr.bf16.mxu0 0
    %4357 = vmatpush2.bf16.msra.mxu0 %v3712
    %4358 = vmatprep.subr.bf16.mxu0 0
    %4359 = vmatpush2.bf16.msra.mxu0 %v3707
    %4360 = vmatprep.subr.bf16.mxu0 0
    %4361 = vmatpush2.bf16.msra.mxu0 %v3702
    %4362 = vmatprep.subr.bf16.mxu0 0
    %4363 = vmatpush2.bf16.msra.mxu0 %v3697
    %4364 = vmatprep.subr.bf16.mxu0 0
    %4365 = vmatpush2.bf16.msra.mxu0 %v3692
    %4366 = vmatprep.mubr.bf16.mxu0 %v2793
    %4367 = vmatmul.mubr.bf16.gmra.mxu0 %v2792
    %v4368 = vpop.f32.mrf.mxu0
    %v4369 = vadd.f32 %v4329, %v4368
    %v4370 = vpop.f32.mrf.mxu0
    %v4371 = vpop.f32.mrf.mxu0
    %v4372 = vpop.f32.mrf.mxu0
    %4373 = vdwg.mxu0
    %4374 = vmatprep.subr.bf16.mxu0 0
    %4375 = vmatpush1.bf16.msra.mxu0 %v3767
    %4376 = vmatprep.subr.bf16.mxu0 0
    %4377 = vmatpush1.bf16.msra.mxu0 %v3762
    %4378 = vmatprep.subr.bf16.mxu0 0
    %4379 = vmatpush1.bf16.msra.mxu0 %v3757
    %4380 = vmatprep.subr.bf16.mxu0 0
    %4381 = vmatpush1.bf16.msra.mxu0 %v3752
    %4382 = vmatprep.subr.bf16.mxu0 0
    %4383 = vmatpush1.bf16.msra.mxu0 %v3747
    %4384 = vmatprep.subr.bf16.mxu0 0
    %4385 = vmatpush1.bf16.msra.mxu0 %v3742
    %4386 = vmatprep.subr.bf16.mxu0 0
    %4387 = vmatpush1.bf16.msra.mxu0 %v3737
    %4388 = vmatprep.subr.bf16.mxu0 0
    %4389 = vmatpush1.bf16.msra.mxu0 %v3732
    %4390 = vmatprep.subr.bf16.mxu0 0
    %4391 = vmatpush2.bf16.msra.mxu0 %v3807
    %4392 = vmatprep.subr.bf16.mxu0 0
    %4393 = vmatpush2.bf16.msra.mxu0 %v3802
    %4394 = vmatprep.subr.bf16.mxu0 0
    %4395 = vmatpush2.bf16.msra.mxu0 %v3797
    %4396 = vmatprep.subr.bf16.mxu0 0
    %4397 = vmatpush2.bf16.msra.mxu0 %v3792
    %4398 = vmatprep.subr.bf16.mxu0 0
    %4399 = vmatpush2.bf16.msra.mxu0 %v3787
    %4400 = vmatprep.subr.bf16.mxu0 0
    %4401 = vmatpush2.bf16.msra.mxu0 %v3782
    %4402 = vmatprep.subr.bf16.mxu0 0
    %4403 = vmatpush2.bf16.msra.mxu0 %v3777
    %4404 = vmatprep.subr.bf16.mxu0 0
    %4405 = vmatpush2.bf16.msra.mxu0 %v3772
    %4406 = vmatprep.mubr.bf16.mxu0 %v2791
    %4407 = vmatmul.mubr.bf16.gmra.mxu0 %v2777
    %v4408 = vpop.f32.mrf.mxu0
    %v4409 = vadd.f32 %v4369, %v4408
    %v4410 = vpop.f32.mrf.mxu0
    %v4411 = vpop.f32.mrf.mxu0
    %v4412 = vpop.f32.mrf.mxu0
    %4413 = vdwg.mxu0
    %v4414 = vmax.f32 %v4165, 0.0
    %v4415 = vmax.f32 %v4167, 0.0
    %v4416 = vmax.f32 %v4288, 0.0
    %v4417 = vmax.f32 %v4290, 0.0
    %v4418 = vpack.c.bf16 %v4414, %v4414
    %v4419 = vpack.c.bf16 %v4415, %v4415
    %v4420 = vpack.c.bf16 %v4416, %v4416
    %v4421 = vpack.c.bf16 %v4417, %v4417
    %s4422 = scalar_lea.vmem [#allocation8], 256
    %v4423 = vld [vmem:[%s4422] sm:$0xf]
    %v4424 = vld [vmem:[%s4422 + $0x4] sm:$0xf]
    %v4425 = vld [vmem:[%s4422 + $0x8] sm:$0xf]
    %v4426 = vld [vmem:[%s4422 + $0xc] sm:$0xf]
    %v4427 = vld [vmem:[%s4422 + $0x10] sm:$0xf]
    %v4428 = vld [vmem:[%s4422 + $0x14] sm:$0xf]
    %v4429 = vld [vmem:[%s4422 + $0x18] sm:$0xf]
    %v4430 = vld [vmem:[%s4422 + $0x1c] sm:$0xf]
    %v4431 = vld [vmem:[%s4422 + $0x20] sm:$0xf]
    %v4432 = vld [vmem:[%s4422 + $0x24] sm:$0xf]
    %v4433 = vld [vmem:[%s4422 + $0x28] sm:$0xf]
    %v4434 = vld [vmem:[%s4422 + $0x2c] sm:$0xf]
    %v4435 = vld [vmem:[%s4422 + $0x30] sm:$0xf]
    %v4436 = vld [vmem:[%s4422 + $0x34] sm:$0xf]
    %v4437 = vld [vmem:[%s4422 + $0x38] sm:$0xf]
    %v4438 = vld [vmem:[%s4422 + $0x3c] sm:$0xf]
    %v4439 = vld [vmem:[%s4422 + $0x40] sm:$0xf]
    %v4440 = vld [vmem:[%s4422 + $0x44] sm:$0xf]
    %v4441 = vld [vmem:[%s4422 + $0x48] sm:$0xf]
    %v4442 = vld [vmem:[%s4422 + $0x4c] sm:$0xf]
    %v4443 = vld [vmem:[%s4422 + $0x50] sm:$0xf]
    %v4444 = vld [vmem:[%s4422 + $0x54] sm:$0xf]
    %v4445 = vld [vmem:[%s4422 + $0x58] sm:$0xf]
    %v4446 = vld [vmem:[%s4422 + $0x5c] sm:$0xf]
    %v4447 = vld [vmem:[%s4422 + $0x60] sm:$0xf]
    %v4448 = vld [vmem:[%s4422 + $0x64] sm:$0xf]
    %v4449 = vld [vmem:[%s4422 + $0x68] sm:$0xf]
    %v4450 = vld [vmem:[%s4422 + $0x6c] sm:$0xf]
    %v4451 = vld [vmem:[%s4422 + $0x70] sm:$0xf]
    %v4452 = vld [vmem:[%s4422 + $0x74] sm:$0xf]
    %v4453 = vld [vmem:[%s4422 + $0x78] sm:$0xf]
    %v4454 = vld [vmem:[%s4422 + $0x7c] sm:$0xf]
    %v4455 = vld [vmem:[%s4422 + $0x80] sm:$0xf]
    %v4456 = vld [vmem:[%s4422 + $0x84] sm:$0xf]
    %v4457 = vld [vmem:[%s4422 + $0x88] sm:$0xf]
    %v4458 = vld [vmem:[%s4422 + $0x8c] sm:$0xf]
    %v4459 = vld [vmem:[%s4422 + $0x90] sm:$0xf]
    %v4460 = vld [vmem:[%s4422 + $0x94] sm:$0xf]
    %v4461 = vld [vmem:[%s4422 + $0x98] sm:$0xf]
    %v4462 = vld [vmem:[%s4422 + $0x9c] sm:$0xf]
    %v4463 = vld [vmem:[%s4422 + $0xa0] sm:$0xf]
    %v4464 = vld [vmem:[%s4422 + $0xa4] sm:$0xf]
    %v4465 = vld [vmem:[%s4422 + $0xa8] sm:$0xf]
    %v4466 = vld [vmem:[%s4422 + $0xac] sm:$0xf]
    %v4467 = vld [vmem:[%s4422 + $0xb0] sm:$0xf]
    %v4468 = vld [vmem:[%s4422 + $0xb4] sm:$0xf]
    %v4469 = vld [vmem:[%s4422 + $0xb8] sm:$0xf]
    %v4470 = vld [vmem:[%s4422 + $0xbc] sm:$0xf]
    %v4471 = vld [vmem:[%s4422 + $0xc0] sm:$0xf]
    %v4472 = vld [vmem:[%s4422 + $0xc4] sm:$0xf]
    %v4473 = vld [vmem:[%s4422 + $0xc8] sm:$0xf]
    %v4474 = vld [vmem:[%s4422 + $0xcc] sm:$0xf]
    %v4475 = vld [vmem:[%s4422 + $0xd0] sm:$0xf]
    %v4476 = vld [vmem:[%s4422 + $0xd4] sm:$0xf]
    %v4477 = vld [vmem:[%s4422 + $0xd8] sm:$0xf]
    %v4478 = vld [vmem:[%s4422 + $0xdc] sm:$0xf]
    %v4479 = vld [vmem:[%s4422 + $0xe0] sm:$0xf]
    %v4480 = vld [vmem:[%s4422 + $0xe4] sm:$0xf]
    %v4481 = vld [vmem:[%s4422 + $0xe8] sm:$0xf]
    %v4482 = vld [vmem:[%s4422 + $0xec] sm:$0xf]
    %v4483 = vld [vmem:[%s4422 + $0xf0] sm:$0xf]
    %v4484 = vld [vmem:[%s4422 + $0xf4] sm:$0xf]
    %v4485 = vld [vmem:[%s4422 + $0xf8] sm:$0xf]
    %v4486 = vld [vmem:[%s4422 + $0xfc] sm:$0xf]
    %s4487 = scalar_lea.vmem [#allocation10], 1
    %v4488 = vld [vmem:[%s4487] sm:$0x1]
    %v4490 = vlaneseq
    %v4491 = vshrl.u32 %v4490, 7
    %v4492 = vsub.s32 0, %v4491
    %v4493 = vrot.slane %v4488, %v4492
    %v4559 = vunpack.c.l.b16 %v4423
    %v4560 = vunpack.c.l.b16 %v4424
    %v4561 = vunpack.c.l.b16 %v4425
    %v4562 = vunpack.c.l.b16 %v4426
    %v4563 = vunpack.c.l.b16 %v4427
    %v4564 = vunpack.c.l.b16 %v4428
    %v4565 = vunpack.c.l.b16 %v4429
    %v4566 = vunpack.c.l.b16 %v4430
    %v4567 = vunpack.c.l.b16 %v4431
    %v4568 = vunpack.c.l.b16 %v4432
    %v4569 = vunpack.c.l.b16 %v4433
    %v4570 = vunpack.c.l.b16 %v4434
    %v4571 = vunpack.c.l.b16 %v4435
    %v4572 = vunpack.c.l.b16 %v4436
    %v4573 = vunpack.c.l.b16 %v4437
    %v4574 = vunpack.c.l.b16 %v4438
    %v4575 = vunpack.c.l.b16 %v4439
    %v4576 = vunpack.c.l.b16 %v4440
    %v4577 = vunpack.c.l.b16 %v4441
    %v4578 = vunpack.c.l.b16 %v4442
    %v4579 = vunpack.c.l.b16 %v4443
    %v4580 = vunpack.c.l.b16 %v4444
    %v4581 = vunpack.c.l.b16 %v4445
    %v4582 = vunpack.c.l.b16 %v4446
    %v4583 = vunpack.c.l.b16 %v4447
    %v4584 = vunpack.c.l.b16 %v4448
    %v4585 = vunpack.c.l.b16 %v4449
    %v4586 = vunpack.c.l.b16 %v4450
    %v4587 = vunpack.c.l.b16 %v4451
    %v4588 = vunpack.c.l.b16 %v4452
    %v4589 = vunpack.c.l.b16 %v4453
    %v4590 = vunpack.c.l.b16 %v4454
    %v4591 = vunpack.c.l.b16 %v4455
    %v4592 = vunpack.c.l.b16 %v4456
    %v4593 = vunpack.c.l.b16 %v4457
    %v4594 = vunpack.c.l.b16 %v4458
    %v4595 = vunpack.c.l.b16 %v4459
    %v4596 = vunpack.c.l.b16 %v4460
    %v4597 = vunpack.c.l.b16 %v4461
    %v4598 = vunpack.c.l.b16 %v4462
    %v4599 = vunpack.c.l.b16 %v4463
    %v4600 = vunpack.c.l.b16 %v4464
    %v4601 = vunpack.c.l.b16 %v4465
    %v4602 = vunpack.c.l.b16 %v4466
    %v4603 = vunpack.c.l.b16 %v4467
    %v4604 = vunpack.c.l.b16 %v4468
    %v4605 = vunpack.c.l.b16 %v4469
    %v4606 = vunpack.c.l.b16 %v4470
    %v4607 = vunpack.c.l.b16 %v4471
    %v4608 = vunpack.c.l.b16 %v4472
    %v4609 = vunpack.c.l.b16 %v4473
    %v4610 = vunpack.c.l.b16 %v4474
    %v4611 = vunpack.c.l.b16 %v4475
    %v4612 = vunpack.c.l.b16 %v4476
    %v4613 = vunpack.c.l.b16 %v4477
    %v4614 = vunpack.c.l.b16 %v4478
    %v4615 = vunpack.c.l.b16 %v4479
    %v4616 = vunpack.c.l.b16 %v4480
    %v4617 = vunpack.c.l.b16 %v4481
    %v4618 = vunpack.c.l.b16 %v4482
    %v4619 = vunpack.c.l.b16 %v4483
    %v4620 = vunpack.c.l.b16 %v4484
    %v4621 = vunpack.c.l.b16 %v4485
    %v4622 = vunpack.c.l.b16 %v4486
    %v4623 = vpack.c.b16 %v4560, %v4559
    %v4624 = vpack.c.b16 %v4562, %v4561
    %v4625 = vpack.c.b16 %v4564, %v4563
    %v4626 = vpack.c.b16 %v4566, %v4565
    %v4627 = vpack.c.b16 %v4568, %v4567
    %v4628 = vpack.c.b16 %v4570, %v4569
    %v4629 = vpack.c.b16 %v4572, %v4571
    %v4630 = vpack.c.b16 %v4574, %v4573
    %v4631 = vpack.c.b16 %v4576, %v4575
    %v4632 = vpack.c.b16 %v4578, %v4577
    %v4633 = vpack.c.b16 %v4580, %v4579
    %v4634 = vpack.c.b16 %v4582, %v4581
    %v4635 = vpack.c.b16 %v4584, %v4583
    %v4636 = vpack.c.b16 %v4586, %v4585
    %v4637 = vpack.c.b16 %v4588, %v4587
    %v4638 = vpack.c.b16 %v4590, %v4589
    %v4639 = vpack.c.b16 %v4592, %v4591
    %v4640 = vpack.c.b16 %v4594, %v4593
    %v4641 = vpack.c.b16 %v4596, %v4595
    %v4642 = vpack.c.b16 %v4598, %v4597
    %v4643 = vpack.c.b16 %v4600, %v4599
    %v4644 = vpack.c.b16 %v4602, %v4601
    %v4645 = vpack.c.b16 %v4604, %v4603
    %v4646 = vpack.c.b16 %v4606, %v4605
    %v4647 = vpack.c.b16 %v4608, %v4607
    %v4648 = vpack.c.b16 %v4610, %v4609
    %v4649 = vpack.c.b16 %v4612, %v4611
    %v4650 = vpack.c.b16 %v4614, %v4613
    %v4651 = vpack.c.b16 %v4616, %v4615
    %v4652 = vpack.c.b16 %v4618, %v4617
    %v4653 = vpack.c.b16 %v4620, %v4619
    %v4654 = vpack.c.b16 %v4622, %v4621
    %4687 = vmatprep.subr.bf16.mxu0 0
    %4688 = vmatpush1.bf16.msra.mxu0 %v4630
    %4689 = vmatprep.subr.bf16.mxu0 0
    %4690 = vmatpush1.bf16.msra.mxu0 %v4629
    %4691 = vmatprep.subr.bf16.mxu0 0
    %4692 = vmatpush1.bf16.msra.mxu0 %v4628
    %4693 = vmatprep.subr.bf16.mxu0 0
    %4694 = vmatpush1.bf16.msra.mxu0 %v4627
    %4695 = vmatprep.subr.bf16.mxu0 0
    %4696 = vmatpush1.bf16.msra.mxu0 %v4626
    %4697 = vmatprep.subr.bf16.mxu0 0
    %4698 = vmatpush1.bf16.msra.mxu0 %v4625
    %4699 = vmatprep.subr.bf16.mxu0 0
    %4700 = vmatpush1.bf16.msra.mxu0 %v4624
    %4701 = vmatprep.subr.bf16.mxu0 0
    %4702 = vmatpush1.bf16.msra.mxu0 %v4623
    %4703 = vmatprep.subr.bf16.mxu0 0
    %4704 = vmatpush2.bf16.msra.mxu0 %v4638
    %4705 = vmatprep.subr.bf16.mxu0 0
    %4706 = vmatpush2.bf16.msra.mxu0 %v4637
    %4707 = vmatprep.subr.bf16.mxu0 0
    %4708 = vmatpush2.bf16.msra.mxu0 %v4636
    %4709 = vmatprep.subr.bf16.mxu0 0
    %4710 = vmatpush2.bf16.msra.mxu0 %v4635
    %4711 = vmatprep.subr.bf16.mxu0 0
    %4712 = vmatpush2.bf16.msra.mxu0 %v4634
    %4713 = vmatprep.subr.bf16.mxu0 0
    %4714 = vmatpush2.bf16.msra.mxu0 %v4633
    %4715 = vmatprep.subr.bf16.mxu0 0
    %4716 = vmatpush2.bf16.msra.mxu0 %v4632
    %4717 = vmatprep.subr.bf16.mxu0 0
    %4718 = vmatpush2.bf16.msra.mxu0 %v4631
    %4719 = vmatprep.mubr.bf16.mxu0 %v4419
    %4720 = vmatmul.mubr.bf16.gmra.mxu0 %v4418
    %v4721 = vpop.f32.mrf.mxu0
    %v4722 = vadd.f32 %v4493, %v4721
    %v4723 = vpop.f32.mrf.mxu0
    %v4724 = vpop.f32.mrf.mxu0
    %v4725 = vpop.f32.mrf.mxu0
    %4726 = vdwg.mxu0
    %4727 = vmatprep.subr.bf16.mxu0 0
    %4728 = vmatpush1.bf16.msra.mxu0 %v4646
    %4729 = vmatprep.subr.bf16.mxu0 0
    %4730 = vmatpush1.bf16.msra.mxu0 %v4645
    %4731 = vmatprep.subr.bf16.mxu0 0
    %4732 = vmatpush1.bf16.msra.mxu0 %v4644
    %4733 = vmatprep.subr.bf16.mxu0 0
    %4734 = vmatpush1.bf16.msra.mxu0 %v4643
    %4735 = vmatprep.subr.bf16.mxu0 0
    %4736 = vmatpush1.bf16.msra.mxu0 %v4642
    %4737 = vmatprep.subr.bf16.mxu0 0
    %4738 = vmatpush1.bf16.msra.mxu0 %v4641
    %4739 = vmatprep.subr.bf16.mxu0 0
    %4740 = vmatpush1.bf16.msra.mxu0 %v4640
    %4741 = vmatprep.subr.bf16.mxu0 0
    %4742 = vmatpush1.bf16.msra.mxu0 %v4639
    %4743 = vmatprep.subr.bf16.mxu0 0
    %4744 = vmatpush2.bf16.msra.mxu0 %v4654
    %4745 = vmatprep.subr.bf16.mxu0 0
    %4746 = vmatpush2.bf16.msra.mxu0 %v4653
    %4747 = vmatprep.subr.bf16.mxu0 0
    %4748 = vmatpush2.bf16.msra.mxu0 %v4652
    %4749 = vmatprep.subr.bf16.mxu0 0
    %4750 = vmatpush2.bf16.msra.mxu0 %v4651
    %4751 = vmatprep.subr.bf16.mxu0 0
    %4752 = vmatpush2.bf16.msra.mxu0 %v4650
    %4753 = vmatprep.subr.bf16.mxu0 0
    %4754 = vmatpush2.bf16.msra.mxu0 %v4649
    %4755 = vmatprep.subr.bf16.mxu0 0
    %4756 = vmatpush2.bf16.msra.mxu0 %v4648
    %4757 = vmatprep.subr.bf16.mxu0 0
    %4758 = vmatpush2.bf16.msra.mxu0 %v4647
    %4759 = vmatprep.mubr.bf16.mxu0 %v4421
    %4760 = vmatmul.mubr.bf16.gmra.mxu0 %v4420
    %v4761 = vpop.f32.mrf.mxu0
    %v4762 = vadd.f32 %v4722, %v4761
    %v4763 = vpop.f32.mrf.mxu0
    %v4764 = vpop.f32.mrf.mxu0
    %v4765 = vpop.f32.mrf.mxu0
    %4766 = vdwg.mxu0
    %s4767 = scalar_lea.vmem [#allocation11], 4
    %4768 = vst [vmem:[%s4767] sm:$0x3] %v4409
    %4769 = vst [vmem:[%s4767 + $0x2] sm:$0x3] %v4762
    // Predicated region
    $region42: #{tpu_custom_call.1} parent=1 // pred_check
      _
    $region43: #{tpu_custom_call.1} parent=1 // pred_check_branch
      %4771 = sbr.rel (0) target = $region45
    $region44: #{tpu_custom_call.1} parent=1 // pred_region
      %s4773 = ssub.s32 128, 128
      %4774 = vsyncadd [#allocation4], %s4773
      %s4775 = sshll.u32 [#allocation11], 4
      %s4776 = int_to_ptr.vmem [resolvable:$true] %s4775
      %4781 = dma.vmem_to_hbm [thread:$0]  %s4776, 128, %s5, [#allocation4], 64, 64, 4
    $region45: #{tpu_custom_call.1} parent=1 // pred_fallthru
      _
    // Predicated region
    $region46: #{tpu_custom_call.1} parent=1 // pred_check
      _
    $region47: #{tpu_custom_call.1} parent=1 // pred_check_branch
      %4783 = sbr.rel (0) target = $region49
    $region48: #{tpu_custom_call.1} parent=1 // pred_region
      %4784 = dma.done [#allocation4], 128
    $region49: #{tpu_custom_call.1} parent=1 // pred_fallthru
      _
    %4785 = vsyncpa [#allocation3], 1
    %4786 = vsyncpa [#allocation6], 1
    %4787 = vsyncpa [#allocation9], 1
    %4788 = vsyncpa [#allocation4], 1

</llo_original>
